<compile_context>
chip_gen: v6e
topology: v6e:2x2x1
jax: 0.10.0
libtpu: 0.0.40
codegen_flags: <defaults>
</compile_context>

<pallas_src>
from functools import partial

import jax
import jax.numpy as jnp
from jax.experimental import pallas as pl
from jax.experimental.pallas import tpu as pltpu


def _round_up(a, b):
    return ((a + b - 1) // b) * b


def _covariance_kernel(coef_ref, amp_ref, xa_ref, xxta_ref, o_ref, *, num_kernels):
    # coef_ref, amp_ref : (K,) SMEM scalars  (c_k = -0.5/l_k^2, a_k = s_k^2)
    # xa_ref   : (TN, D+2) VMEM tile of [x, ||x||^2, 1]
    # xxta_ref : (D+2, TM) VMEM tile of [-2*xx.T ; 1 ; ||xx||^2]   (lane-dense)
    # o_ref    : (TN, TM)  output tile
    # Single MXU contraction gives the full pairwise squared distance:
    #   -2<x,xx> + ||x||^2 + ||xx||^2
    sq = jnp.maximum(
        jnp.dot(xa_ref[...], xxta_ref[...], preferred_element_type=jnp.float32),
        0.0,
    )
    # First kernel term initializes the accumulator (no zero fill / extra add).
    acc = amp_ref[0] * jnp.exp(coef_ref[0] * sq)
    for k in range(1, num_kernels):  # static unroll over base kernels
        acc = acc + amp_ref[k] * jnp.exp(coef_ref[k] * sq)
    o_ref[...] = acc.astype(o_ref.dtype)


def covariance_func(x, xx, lengthscales, signal_stds, *,
                    tn=512, tm=1024, out_dtype=jnp.float32):
    """Covariance.forward(x, xx, operation='func') — summed RBF base kernels."""
    N, D = x.shape
    M, _ = xx.shape
    K = int(lengthscales.shape[0])
    assert signal_stds.shape[0] == K, "lengthscales / signal_stds length mismatch"
    assert K >= 1

    # ---- tile selection -----------------------------------------------------
    # Clamp tiles to the (aligned) problem size.
    tn = min(tn, _round_up(N, 8))
    tm = min(tm, _round_up(M, 128))
    # VMEM safety cap: output tile is double-buffered; keep ~<= 8 MiB total
    # (far under the 32 MiB scoped default and v7x's 64 MiB physical VMEM).
    while 2 * tn * tm * 4 > (8 << 20) and (tm >= 256 or tn >= 16):
        if tm >= 256:
            tm //= 2
        else:
            tn //= 2
    N_pad = _round_up(N, tn)
    M_pad = _round_up(M, tm)
    # Keep >= 2 programs along a 'parallel' axis so both v7x TensorCores work.
    if (N_pad // tn) * (M_pad // tm) < 2:
        if tm >= 256:
            tm //= 2
            M_pad = _round_up(M, tm)
        elif tn >= 16:
            tn //= 2
            N_pad = _round_up(N, tn)

    # ---- one-time O((N+M)*D) precompute in XLA ------------------------------
    coef = (-0.5 / (lengthscales * lengthscales)).astype(jnp.float32)      # (K,)
    amp = (signal_stds * signal_stds).astype(jnp.float32)                  # (K,)

    xf = x.astype(jnp.float32)
    xxf = xx.astype(jnp.float32)
    xn = jnp.sum(xf * xf, axis=-1, keepdims=True)                          # (N, 1)
    xxn = jnp.sum(xxf * xxf, axis=-1)[None, :]                             # (1, M)

    # Augmented operands so one MXU dot produces the squared distance.
    xa = jnp.concatenate([xf, xn, jnp.ones((N, 1), jnp.float32)], axis=1)  # (N, D+2)
    xxta = jnp.concatenate([-2.0 * xxf.T,
                            jnp.ones((1, M), jnp.float32),
                            xxn], axis=0)                                  # (D+2, M)

    # Zero-pad to tile multiples (padded rows/cols are sliced off below).
    if N_pad != N:
        xa = jnp.pad(xa, ((0, N_pad - N), (0, 0)))
    if M_pad != M:
        xxta = jnp.pad(xxta, ((0, 0), (0, M_pad - M)))

    Dp2 = D + 2
    grid = (N_pad // tn, M_pad // tm)

    cost = pl.CostEstimate(
        flops=2 * Dp2 * N_pad * M_pad + (2 * K + 1) * N_pad * M_pad,
        transcendentals=K * N_pad * M_pad,
        bytes_accessed=4 * (N_pad * M_pad + N_pad * Dp2 + Dp2 * M_pad),
    )

    out = pl.pallas_call(
        partial(_covariance_kernel, num_kernels=K),
        out_shape=jax.ShapeDtypeStruct((N_pad, M_pad), out_dtype),
        grid_spec=pltpu.PrefetchScalarGridSpec(
            num_scalar_prefetch=0,
            grid=grid,
            in_specs=[
                pl.BlockSpec(memory_space=pltpu.SMEM),              # coef (K,)
                pl.BlockSpec(memory_space=pltpu.SMEM),              # amp  (K,)
                pl.BlockSpec((tn, Dp2), lambda i, j: (i, 0)),       # [x, xn, 1] tile
                pl.BlockSpec((Dp2, tm), lambda i, j: (0, j)),       # [-2xx.T; 1; xxn] tile
            ],
            out_specs=pl.BlockSpec((tn, tm), lambda i, j: (i, j)),
        ),
        compiler_params=pltpu.CompilerParams(
            dimension_semantics=("parallel", "parallel")),
        cost_estimate=cost,
    )(coef, amp, xa, xxta)

    if N_pad != N or M_pad != M:
        out = out[:N, :M]
    return out


def covariance_ref(x, xx, lengthscales, signal_stds):
    """Pure-JAX reference (mirrors torch.stack([kern(x, xx) ...]).sum(dim=0))."""
    sq = (jnp.sum(x * x, -1)[:, None] + jnp.sum(xx * xx, -1)[None, :]
          - 2.0 * x @ xx.T)
    sq = jnp.maximum(sq, 0.0)
    mats = jnp.stack([
        (s * s) * jnp.exp(-0.5 * sq / (l * l))
        for l, s in zip(lengthscales, signal_stds)
    ])
    return mats.sum(axis=0)


if __name__ == "__main__":
    key = jax.random.PRNGKey(0)
    kx, kxx = jax.random.split(key)

    # Small problem consistent with the module: N points x M inducing points,
    # D-dim descriptors. Deliberately NOT tile-divisible to exercise the
    # pad/slice path, and large enough that the grid splits over 2 programs.
    N, M, D = 500, 1000, 8
    x = jax.random.normal(kx, (N, D), dtype=jnp.float32)
    xx = jax.random.normal(kxx, (M, D), dtype=jnp.float32)

    # Deterministic per-kernel hyperparameters (lengthscale, signal std).
    lengthscales = jnp.array([1.0, 2.0], dtype=jnp.float32)
    signal_stds = jnp.array([1.0, 0.5], dtype=jnp.float32)

    out = covariance_func(x, xx, lengthscales, signal_stds)
    out = jax.block_until_ready(out)

    ref = covariance_ref(x, xx, lengthscales, signal_stds)
    assert out.shape == (N, M)
    assert jnp.allclose(out, ref, atol=1e-5, rtol=1e-5)

    print("KERNEL_OK")
</pallas_src>

<mosaic_0001>
module attributes {stable_mosaic.version = 11 : i64} {
  func.func @_covariance_kernel(%arg0: i32, %arg1: i32, %arg2: memref<2xf32, #tpu.memory_space<smem>>, %arg3: memref<2xf32, #tpu.memory_space<smem>>, %arg4: memref<504x10xf32, #tpu.memory_space<vmem>>, %arg5: memref<10x512xf32, #tpu.memory_space<vmem>>, %arg6: memref<504x512xf32, #tpu.memory_space<vmem>>) attributes {dimension_semantics = [#tpu.dimension_semantics<parallel>, #tpu.dimension_semantics<parallel>], iteration_bounds = array<i64: 1, 2>, scalar_prefetch = 0 : i64, scratch_operands = 0 : i64, tpu.core_type = #tpu.core_type<tc>, window_params = [{transform_indices = @transform_0, window_bounds = array<i64: 2>}, {transform_indices = @transform_1, window_bounds = array<i64: 2>}, {transform_indices = @transform_2, window_bounds = array<i64: 504, 10>}, {transform_indices = @transform_3, window_bounds = array<i64: 10, 512>}, {transform_indices = @transform_4, window_bounds = array<i64: 504, 512>}]} {
    %c0 = arith.constant 0 : index
    %c0_0 = arith.constant 0 : index
    %0 = vector.load %arg4[%c0, %c0_0] : memref<504x10xf32, #tpu.memory_space<vmem>>, vector<504x10xf32>
    %c0_1 = arith.constant 0 : index
    %c0_2 = arith.constant 0 : index
    %1 = vector.load %arg5[%c0_1, %c0_2] : memref<10x512xf32, #tpu.memory_space<vmem>>, vector<10x512xf32>
    %cst = arith.constant dense<0.000000e+00> : vector<504x512xf32>
    %2 = tpu.matmul %0, %1, %cst {dimension_numbers = #tpu.dot_dimension_numbers<[1], [0], [0], [1], [0, 0, 1, 1], [], []>} : vector<504x10xf32>, vector<10x512xf32>, vector<504x512xf32> -> vector<504x512xf32>
    %cst_3 = arith.constant 0.000000e+00 : f32
    %3 = vector.broadcast %cst_3 : f32 to vector<504x512xf32>
    %4 = arith.maximumf %2, %3 : vector<504x512xf32>
    %c0_4 = arith.constant 0 : index
    %5 = memref.load %arg3[%c0_4] : memref<2xf32, #tpu.memory_space<smem>>
    %c0_5 = arith.constant 0 : index
    %6 = memref.load %arg2[%c0_5] : memref<2xf32, #tpu.memory_space<smem>>
    %7 = vector.broadcast %6 : f32 to vector<504x512xf32>
    %8 = arith.mulf %7, %4 : vector<504x512xf32>
    %9 = math.exp %8 : vector<504x512xf32>
    %10 = vector.broadcast %5 : f32 to vector<504x512xf32>
    %11 = arith.mulf %10, %9 : vector<504x512xf32>
    %c1 = arith.constant 1 : index
    %12 = memref.load %arg3[%c1] : memref<2xf32, #tpu.memory_space<smem>>
    %c1_6 = arith.constant 1 : index
    %13 = memref.load %arg2[%c1_6] : memref<2xf32, #tpu.memory_space<smem>>
    %14 = vector.broadcast %13 : f32 to vector<504x512xf32>
    %15 = arith.mulf %14, %4 : vector<504x512xf32>
    %16 = math.exp %15 : vector<504x512xf32>
    %17 = vector.broadcast %12 : f32 to vector<504x512xf32>
    %18 = arith.mulf %17, %16 : vector<504x512xf32>
    %19 = arith.addf %11, %18 : vector<504x512xf32>
    %c0_7 = arith.constant 0 : index
    %c0_8 = arith.constant 0 : index
    %20 = vector.load %arg6[%c0_7, %c0_8] : memref<504x512xf32, #tpu.memory_space<vmem>>, vector<504x512xf32>
    tpu.vector_store %arg6[%c0_7, %c0_8], %19 {strides = array<i32>} : memref<504x512xf32, #tpu.memory_space<vmem>>, vector<504x512xf32>,
    return
  }
  func.func @transform_0(%arg0: i32, %arg1: i32) -> i32 {
    %c0_i32 = arith.constant 0 : i32
    %c0_i32_0 = arith.constant 0 : i32
    return %c0_i32 : i32
  }
  func.func @transform_1(%arg0: i32, %arg1: i32) -> i32 {
    %c0_i32 = arith.constant 0 : i32
    %c0_i32_0 = arith.constant 0 : i32
    return %c0_i32 : i32
  }
  func.func @transform_2(%arg0: i32, %arg1: i32) -> (i32, i32) {
    %c0_i32 = arith.constant 0 : i32
    %c0_i32_0 = arith.constant 0 : i32
    return %arg0, %c0_i32 : i32, i32
  }
  func.func @transform_3(%arg0: i32, %arg1: i32) -> (i32, i32) {
    %c0_i32 = arith.constant 0 : i32
    %c0_i32_0 = arith.constant 0 : i32
    return %c0_i32, %arg1 : i32, i32
  }
  func.func @transform_4(%arg0: i32, %arg1: i32) -> (i32, i32) {
    %c0_i32 = arith.constant 0 : i32
    return %arg0, %arg1 : i32, i32
  }
}

</mosaic_0001>

<llo_original>
// kernel: tpu_custom_call.1
$region0: #{tpu_custom_call.1}
  #allocation0 [shape = 'u32[]', space=smem, size = 0x4, offset = 0x4, fixed_abs, tag = 'smem constant byte address 0x4 - core index']
  #allocation1 [shape = 'u32[144,128]{1,0:T(1,128)}', space=vmem, size = 0x12000, scoped, tag = 'internal scratch']
  %s0 = inlined_call_operand.hbm [shape: f32[2], index: 0, kind: input, shape index: {}]
  %s1 = inlined_call_operand.hbm [shape: f32[2], index: 1, kind: input, shape index: {}]
  %s2 = inlined_call_operand.vmem [shape: f32[504,10], index: 2, kind: input, shape index: {}]
  %s3 = inlined_call_operand.hbm [shape: f32[10,1024], index: 3, kind: input, shape index: {}]
  %s4 = inlined_call_operand.hbm [shape: f32[504,1024], index: 4, kind: output, shape index: {}]
  %s5 = sld [smem:[#allocation0]]
  $region61: #{tpu_custom_call.1} parent=0
    _
  %s7 = ssub.s32 1, %s5
  %s8 = scalar_select 0, %s7, %s5
  $region1: #{tpu_custom_call.1} parent=0
    #allocation2 [shape = 'u8[512]{0}', space=smem, size = 0x200, scoped, tag = 'input window, operand 0, single buffered']
    #allocation3 [shape = 's32[2]{0}', space=sflag, size = 0x8, scoped, tag = 'scoped memory for tpu_custom_call.1']
    #allocation4 [shape = 's32[2]{0}', space=sflag, size = 0x8, scoped, tag = 'scoped memory for tpu_custom_call.1']
    #allocation5 [shape = 's32[2]{0}', space=sflag, size = 0x8, scoped, tag = 'scoped memory for tpu_custom_call.1']
    #allocation6 [shape = 'u8[512]{0}', space=smem, size = 0x200, scoped, tag = 'input window, operand 1, single buffered']
    #allocation7 [shape = 's32[1]{0}', space=sflag, size = 0x4, scoped, tag = 'scoped memory for tpu_custom_call.1']
    #allocation8 [shape = 'u8[65536]{0}', space=vmem, size = 0x10000, scoped, tag = 'input window, operand 3']
    #allocation9 [shape = 'u8[2064384]{0}', space=vmem, size = 0x1f8000, scoped, tag = 'output window, operand 0']
    %9 = vsyncpa [#allocation5], 0
    %10 = vsyncpa [#allocation7], 0
    %11 = vsyncpa [#allocation3], 0
    %s12 = scalar_lea.sflag [#allocation3], 1
    %13 = vsyncpa %s12, 0
    %14 = vsyncpa [#allocation4], 0
    %s15 = scalar_lea.sflag [#allocation4], 1
    %16 = vsyncpa %s15, 0
    loop: start=0, step=1, limit=4
    $region2: #{tpu_custom_call.1} parent=1 // loop_pre_header
      _
    $region3: #{tpu_custom_call.1} parent=1 // loop_header
      %s18 = sphi 0, %s22
      %p19 = scmp.ge.s32.totalorder %s18, 4
      %s25 = sphi 0, %s37
      %s26 = sphi 0, %s33
      %s27 = sphi 0, %s25
      %s28 = sphi 0, %s26
      %s29 = sphi 0, %s27
      %s30 = sphi 0, %s28
      %s38 = sphi 0, %s38
      %s40 = sphi 0, %s38
      %s41 = sphi 0, %s40
      %s55 = sphi 0, %s41
      %s59 = sphi 0, %s59
      %s61 = sphi 0, %s59
      %s62 = sphi 0, %s61
      %s76 = sphi 0, %s62
      %s82 = sphi 0, %s84
      %s85 = sphi 0, %s82
      %s86 = sphi 0, %s85
      %s102 = sphi 0, %s86
      %s108 = sphi 0, %s110
      %s111 = sphi 0, %s108
      %s112 = sphi 0, %s111
      %s128 = sphi 0, %s112
      %s136 = sphi 0, %s138
      %s139 = sphi 0, %s136
      %s140 = sphi 0, %s139
      %s156 = sphi 0, %s140
    $region4: #{tpu_custom_call.1} parent=1 // loop_header_branch
      %21 = sbr.rel (%p19) target = $region8
    $region5: #{tpu_custom_call.1} parent=1 // loop_body
      %s23 = ssub.s32 %s18, 1
      %s24 = ssub.s32 %s18, 2
      %s31 = sadd.s32 1, %s26
      %p32 = scmp.ge.s32.totalorder %s31, 2
      %s33 = scalar_select %p32, 0, %s31
      %s34 = sadd.s32 1, %s25
      %s35 = scalar_select %p32, %s34, %s25
      %p36 = scmp.ge.s32.totalorder %s35, 1
      %s37 = scalar_select %p36, 0, %s35
      %s39 = sadd.s32 %s38, 1
      %p42 = scmp.eq.s32.totalorder %s18, 1
      %p43 = scmp.ne.s32.totalorder %s38, %s40
      %p44 = scmp.eq.s32.totalorder %s18, 0
      %p45 = por %p43, %p44
      %p46 = scmp.ne.s32.totalorder %s38, %s40
      %p47 = scmp.eq.s32.totalorder %s23, 1
      %p48 = por %p46, %p47
      %p49 = scmp.ne.s32.totalorder %s40, %s41
      %p50 = scmp.eq.s32.totalorder %s23, 0
      %p51 = por %p49, %p50
      %p52 = scmp.ne.s32.totalorder %s40, %s41
      %p53 = scmp.eq.s32.totalorder %s24, 1
      %p54 = por %p52, %p53
      %p56 = scmp.ne.s32.totalorder %s41, %s55
      %p57 = scmp.eq.s32.totalorder %s24, 0
      %p58 = por %p56, %p57
      %s60 = sadd.s32 %s59, 1
      %p63 = scmp.eq.s32.totalorder %s18, 1
      %p64 = scmp.ne.s32.totalorder %s59, %s61
      %p65 = scmp.eq.s32.totalorder %s18, 0
      %p66 = por %p64, %p65
      %p67 = scmp.ne.s32.totalorder %s59, %s61
      %p68 = scmp.eq.s32.totalorder %s23, 1
      %p69 = por %p67, %p68
      %p70 = scmp.ne.s32.totalorder %s61, %s62
      %p71 = scmp.eq.s32.totalorder %s23, 0
      %p72 = por %p70, %p71
      %p73 = scmp.ne.s32.totalorder %s61, %s62
      %p74 = scmp.eq.s32.totalorder %s24, 1
      %p75 = por %p73, %p74
      %p77 = scmp.ne.s32.totalorder %s62, %s76
      %p78 = scmp.eq.s32.totalorder %s24, 0
      %p79 = por %p77, %p78
      %s80 = ssub.s32 %s25, %s37
      %p81 = scmp.eq.s32.totalorder %s80, 0
      %s83 = sadd.s32 %s82, 1
      %s84 = scalar_select %p81, %s82, %s83
      %p87 = pneg %p81
      %p88 = scmp.eq.s32.totalorder %s18, 1
      %p89 = por %p87, %p88
      %p90 = scmp.ne.s32.totalorder %s82, %s85
      %p91 = scmp.eq.s32.totalorder %s18, 0
      %p92 = por %p90, %p91
      %p93 = scmp.ne.s32.totalorder %s82, %s85
      %p94 = scmp.eq.s32.totalorder %s23, 1
      %p95 = por %p93, %p94
      %p96 = scmp.ne.s32.totalorder %s85, %s86
      %p97 = scmp.eq.s32.totalorder %s23, 0
      %p98 = por %p96, %p97
      %p99 = scmp.ne.s32.totalorder %s85, %s86
      %p100 = scmp.eq.s32.totalorder %s24, 1
      %p101 = por %p99, %p100
      %p103 = scmp.ne.s32.totalorder %s86, %s102
      %p104 = scmp.eq.s32.totalorder %s24, 0
      %p105 = por %p103, %p104
      %s106 = ssub.s32 %s26, %s33
      %p107 = scmp.eq.s32.totalorder %s106, 0
      %s109 = sadd.s32 %s108, 1
      %s110 = scalar_select %p107, %s108, %s109
      %p113 = pneg %p107
      %p114 = scmp.eq.s32.totalorder %s18, 1
      %p115 = por %p113, %p114
      %p116 = scmp.ne.s32.totalorder %s108, %s111
      %p117 = scmp.eq.s32.totalorder %s18, 0
      %p118 = por %p116, %p117
      %p119 = scmp.ne.s32.totalorder %s108, %s111
      %p120 = scmp.eq.s32.totalorder %s23, 1
      %p121 = por %p119, %p120
      %p122 = scmp.ne.s32.totalorder %s111, %s112
      %p123 = scmp.eq.s32.totalorder %s23, 0
      %p124 = por %p122, %p123
      %p125 = scmp.ne.s32.totalorder %s111, %s112
      %p126 = scmp.eq.s32.totalorder %s24, 1
      %p127 = por %p125, %p126
      %p129 = scmp.ne.s32.totalorder %s112, %s128
      %p130 = scmp.eq.s32.totalorder %s24, 0
      %p131 = por %p129, %p130
      %s132 = ssub.s32 %s25, %s37
      %s133 = ssub.s32 %s26, %s33
      %s134 = sor.u32 %s132, %s133
      %p135 = scmp.eq.s32.totalorder %s134, 0
      %s137 = sadd.s32 %s136, 1
      %s138 = scalar_select %p135, %s136, %s137
      %p141 = pneg %p135
      %p142 = scmp.eq.s32.totalorder %s18, 1
      %p143 = por %p141, %p142
      %p144 = scmp.ne.s32.totalorder %s136, %s139
      %p145 = scmp.eq.s32.totalorder %s18, 0
      %p146 = por %p144, %p145
      %p147 = scmp.ne.s32.totalorder %s136, %s139
      %p148 = scmp.eq.s32.totalorder %s23, 1
      %p149 = por %p147, %p148
      %p150 = scmp.ne.s32.totalorder %s139, %s140
      %p151 = scmp.eq.s32.totalorder %s23, 0
      %p152 = por %p150, %p151
      %p153 = scmp.ne.s32.totalorder %s139, %s140
      %p154 = scmp.eq.s32.totalorder %s24, 1
      %p155 = por %p153, %p154
      %p157 = scmp.ne.s32.totalorder %s140, %s156
      %p158 = scmp.eq.s32.totalorder %s24, 0
      %p159 = por %p157, %p158
      %p160 = scmp.le.s32.totalorder 1, %s18
      %p161 = scmp.lt.s32.totalorder %s18, 3
      %p162 = pnand %p160, %p161
      %p163 = pneg %p162
      // Predicated region
      $region9: #{tpu_custom_call.1} parent=5 // pred_check
        _
      $region10: #{tpu_custom_call.1} parent=5 // pred_check_branch
        %165 = sbr.rel (%p162) target = $region12
      $region11: #{tpu_custom_call.1} parent=5 // pred_region
        %s166 = ssub.s32 %s18, 1
        // Predicated region
        $region13: #{tpu_custom_call.1} parent=11 // pred_check
          %p167 = pneg %p51
        $region14: #{tpu_custom_call.1} parent=11 // pred_check_branch
          %169 = sbr.rel (%p167) target = $region16
        $region15: #{tpu_custom_call.1} parent=11 // pred_region
          %s171 = ssub.s32 16, 16
          %172 = vsyncadd [#allocation5], %s171
          %175 = dma.hbm_to_smem %s0, 16, [#allocation2], [#allocation5]
        $region16: #{tpu_custom_call.1} parent=11 // pred_fallthru
          _
        // Predicated region
        $region17: #{tpu_custom_call.1} parent=11 // pred_check
          %p176 = pneg %p72
        $region18: #{tpu_custom_call.1} parent=11 // pred_check_branch
          %178 = sbr.rel (%p176) target = $region20
        $region19: #{tpu_custom_call.1} parent=11 // pred_region
          %s180 = ssub.s32 16, 16
          %181 = vsyncadd [#allocation7], %s180
          %184 = dma.hbm_to_smem %s1, 16, [#allocation6], [#allocation7]
        $region20: #{tpu_custom_call.1} parent=11 // pred_fallthru
          _
        // Predicated region
        $region21: #{tpu_custom_call.1} parent=11 // pred_check
          %p185 = pneg %p98
        $region22: #{tpu_custom_call.1} parent=11 // pred_check_branch
          %187 = sbr.rel (%p185) target = $region24
        $region23: #{tpu_custom_call.1} parent=11 // pred_region
          %s188 = smul.u32 63, %s27
          %p189 = scmp.lt.s32.totalorder %s188, 62
          %s190 = scalar_select %p189, %s188, 62
          %s191 = smul.addr %s190, 8
          %s192 = scalar_lea.vmem %s2, %s191
          %s193 = smul.u32 63, %s27
        $region24: #{tpu_custom_call.1} parent=11 // pred_fallthru
          _
      $region12: #{tpu_custom_call.1} parent=5 // pred_fallthru
        _
      %p194 = scmp.lt.s32.totalorder %s18, 2
      // Predicated region
      $region25: #{tpu_custom_call.1} parent=5 // pred_check
        %p195 = pneg %p194
      $region26: #{tpu_custom_call.1} parent=5 // pred_check_branch
        %197 = sbr.rel (%p195) target = $region28
      $region27: #{tpu_custom_call.1} parent=5 // pred_region
        // Predicated region
        $region29: #{tpu_custom_call.1} parent=27 // pred_check
          %p198 = pneg %p118
        $region30: #{tpu_custom_call.1} parent=27 // pred_check_branch
          %200 = sbr.rel (%p198) target = $region32
        $region31: #{tpu_custom_call.1} parent=27 // pred_region
          %s201 = sand.u32 %s108, 1
          %s202 = scalar_lea.sflag [#allocation3], %s201
          %s203 = sand.u32 %s108, 1
          %s204 = smul.addr %s203, 64
          %s205 = scalar_lea.vmem [#allocation8], %s204
          %s206 = smul.u32 4, %s26
          %s208 = ssub.s32 1024, 1024
          %209 = vsyncadd %s202, %s208
          %s210 = smul.addr %s206, 128
          %s211 = scalar_lea.hbm %s3, %s210
          %s212 = sshll.u32 %s205, 4
          %s213 = int_to_ptr.vmem [resolvable:$true] %s212
          %218 = dma.hbm_to_vmem [thread:$0]  %s211, 1024, %s213, %s202, 1024, 512, 32
        $region32: #{tpu_custom_call.1} parent=27 // pred_fallthru
          _
      $region28: #{tpu_custom_call.1} parent=5 // pred_fallthru
        _
      %p219 = scmp.le.s32.totalorder 1, %s18
      %p220 = scmp.lt.s32.totalorder %s18, 3
      %p221 = pnand %p219, %p220
      %p222 = pneg %p221
      // Predicated region
      $region33: #{tpu_custom_call.1} parent=5 // pred_check
        _
      $region34: #{tpu_custom_call.1} parent=5 // pred_check_branch
        %224 = sbr.rel (%p221) target = $region36
      $region35: #{tpu_custom_call.1} parent=5 // pred_region
        %s225 = ssub.s32 %s18, 1
        // Predicated region
        $region37: #{tpu_custom_call.1} parent=35 // pred_check
          %p226 = pneg %p51
        $region38: #{tpu_custom_call.1} parent=35 // pred_check_branch
          %228 = sbr.rel (%p226) target = $region40
        $region39: #{tpu_custom_call.1} parent=35 // pred_region
          %229 = dma.done [#allocation5], 16
        $region40: #{tpu_custom_call.1} parent=35 // pred_fallthru
          _
        // Predicated region
        $region41: #{tpu_custom_call.1} parent=35 // pred_check
          %p230 = pneg %p72
        $region42: #{tpu_custom_call.1} parent=35 // pred_check_branch
          %232 = sbr.rel (%p230) target = $region44
        $region43: #{tpu_custom_call.1} parent=35 // pred_region
          %233 = dma.done [#allocation7], 16
        $region44: #{tpu_custom_call.1} parent=35 // pred_fallthru
          _
        %s234 = sand.u32 %s111, 1
        %s235 = scalar_lea.sflag [#allocation3], %s234
        %s236 = sand.u32 %s111, 1
        %s237 = smul.addr %s236, 64
        %s238 = scalar_lea.vmem [#allocation8], %s237
        // Predicated region
        $region45: #{tpu_custom_call.1} parent=35 // pred_check
          %p239 = pneg %p124
        $region46: #{tpu_custom_call.1} parent=35 // pred_check_branch
          %241 = sbr.rel (%p239) target = $region48
        $region47: #{tpu_custom_call.1} parent=35 // pred_region
          %242 = dma.done %s235, 1024
        $region48: #{tpu_custom_call.1} parent=35 // pred_fallthru
          _
        %243 = sfence
        %p244 = pneg %p51
        %p245 = pneg %p48
        %p246 = pneg %p72
        %p247 = pneg %p69
        %s248 = smul.u32 63, %s27
        %p249 = scmp.lt.s32.totalorder %s248, 62
        %s250 = scalar_select %p249, %s248, 62
        %s251 = smul.addr %s250, 8
        %s252 = scalar_lea.vmem %s2, %s251
        %p253 = pneg %p98
        %p254 = pneg %p95
        %s255 = sand.u32 %s111, 1
        %s256 = scalar_lea.sflag [#allocation3], %s255
        %s257 = sand.u32 %s111, 1
        %s258 = smul.addr %s257, 64
        %s259 = scalar_lea.vmem [#allocation8], %s258
        %p260 = pneg %p124
        %p261 = pneg %p121
        %p262 = pneg %p152
        %p263 = pneg %p149
        %s264 = sand.u32 %s139, 1
        %s265 = scalar_lea.sflag [#allocation4], %s264
        %s266 = sand.u32 %s139, 1
        %s267 = smul.addr %s266, 2016
        %s268 = scalar_lea.vmem [#allocation9], %s267
        %s269 = smul.u32 63, %s27
        %p270 = scmp.lt.s32.totalorder %s269, 62
        %s271 = scalar_select %p270, %s269, 62
        %s272 = smul.addr %s271, 8
        %s273 = scalar_lea.vmem %s2, %s272
        %s274 = smul.u32 63, %s27
        %s275 = smul.u32 4, %s28
        %s276 = smul.u32 63, %s27
        %s277 = smul.u32 4, %s28
        %v278 = vld [vmem:[%s273] sm:$0xff]
        %v279 = vld [vmem:[%s273 + $0x8] sm:$0xff]
        %v280 = vld [vmem:[%s273 + $0x10] sm:$0xff]
        %v281 = vld [vmem:[%s273 + $0x18] sm:$0xff]
        %v282 = vld [vmem:[%s273 + $0x20] sm:$0xff]
        %v283 = vld [vmem:[%s273 + $0x28] sm:$0xff]
        %v284 = vld [vmem:[%s273 + $0x30] sm:$0xff]
        %v285 = vld [vmem:[%s273 + $0x38] sm:$0xff]
        %v286 = vld [vmem:[%s273 + $0x40] sm:$0xff]
        %v287 = vld [vmem:[%s273 + $0x48] sm:$0xff]
        %v288 = vld [vmem:[%s273 + $0x50] sm:$0xff]
        %v289 = vld [vmem:[%s273 + $0x58] sm:$0xff]
        %v290 = vld [vmem:[%s273 + $0x60] sm:$0xff]
        %v291 = vld [vmem:[%s273 + $0x68] sm:$0xff]
        %v292 = vld [vmem:[%s273 + $0x70] sm:$0xff]
        %v293 = vld [vmem:[%s273 + $0x78] sm:$0xff]
        %v294 = vld [vmem:[%s273 + $0x80] sm:$0xff]
        %v295 = vld [vmem:[%s273 + $0x88] sm:$0xff]
        %v296 = vld [vmem:[%s273 + $0x90] sm:$0xff]
        %v297 = vld [vmem:[%s273 + $0x98] sm:$0xff]
        %v298 = vld [vmem:[%s273 + $0xa0] sm:$0xff]
        %v299 = vld [vmem:[%s273 + $0xa8] sm:$0xff]
        %v300 = vld [vmem:[%s273 + $0xb0] sm:$0xff]
        %v301 = vld [vmem:[%s273 + $0xb8] sm:$0xff]
        %v302 = vld [vmem:[%s273 + $0xc0] sm:$0xff]
        %v303 = vld [vmem:[%s273 + $0xc8] sm:$0xff]
        %v304 = vld [vmem:[%s273 + $0xd0] sm:$0xff]
        %v305 = vld [vmem:[%s273 + $0xd8] sm:$0xff]
        %v306 = vld [vmem:[%s273 + $0xe0] sm:$0xff]
        %v307 = vld [vmem:[%s273 + $0xe8] sm:$0xff]
        %v308 = vld [vmem:[%s273 + $0xf0] sm:$0xff]
        %v309 = vld [vmem:[%s273 + $0xf8] sm:$0xff]
        %v310 = vld [vmem:[%s273 + $0x100] sm:$0xff]
        %v311 = vld [vmem:[%s273 + $0x108] sm:$0xff]
        %v312 = vld [vmem:[%s273 + $0x110] sm:$0xff]
        %v313 = vld [vmem:[%s273 + $0x118] sm:$0xff]
        %v314 = vld [vmem:[%s273 + $0x120] sm:$0xff]
        %v315 = vld [vmem:[%s273 + $0x128] sm:$0xff]
        %v316 = vld [vmem:[%s273 + $0x130] sm:$0xff]
        %v317 = vld [vmem:[%s273 + $0x138] sm:$0xff]
        %v318 = vld [vmem:[%s273 + $0x140] sm:$0xff]
        %v319 = vld [vmem:[%s273 + $0x148] sm:$0xff]
        %v320 = vld [vmem:[%s273 + $0x150] sm:$0xff]
        %v321 = vld [vmem:[%s273 + $0x158] sm:$0xff]
        %v322 = vld [vmem:[%s273 + $0x160] sm:$0xff]
        %v323 = vld [vmem:[%s273 + $0x168] sm:$0xff]
        %v324 = vld [vmem:[%s273 + $0x170] sm:$0xff]
        %v325 = vld [vmem:[%s273 + $0x178] sm:$0xff]
        %v326 = vld [vmem:[%s273 + $0x180] sm:$0xff]
        %v327 = vld [vmem:[%s273 + $0x188] sm:$0xff]
        %v328 = vld [vmem:[%s273 + $0x190] sm:$0xff]
        %v329 = vld [vmem:[%s273 + $0x198] sm:$0xff]
        %v330 = vld [vmem:[%s273 + $0x1a0] sm:$0xff]
        %v331 = vld [vmem:[%s273 + $0x1a8] sm:$0xff]
        %v332 = vld [vmem:[%s273 + $0x1b0] sm:$0xff]
        %v333 = vld [vmem:[%s273 + $0x1b8] sm:$0xff]
        %v334 = vld [vmem:[%s273 + $0x1c0] sm:$0xff]
        %v335 = vld [vmem:[%s273 + $0x1c8] sm:$0xff]
        %v336 = vld [vmem:[%s273 + $0x1d0] sm:$0xff]
        %v337 = vld [vmem:[%s273 + $0x1d8] sm:$0xff]
        %v338 = vld [vmem:[%s273 + $0x1e0] sm:$0xff]
        %v339 = vld [vmem:[%s273 + $0x1e8] sm:$0xff]
        %v340 = vld [vmem:[%s273 + $0x1f0] sm:$0xff]
        %v341 = vld [vmem:[%s238] sm:$0xff]
        %v342 = vld [vmem:[%s238 + $0x8] sm:$0xff]
        %v343 = vld [vmem:[%s238 + $0x10] sm:$0xff]
        %v344 = vld [vmem:[%s238 + $0x18] sm:$0xff]
        %v345 = vld [vmem:[%s238 + $0x20] sm:$0x3]
        %v346 = vld [vmem:[%s238 + $0x28] sm:$0x3]
        %v347 = vld [vmem:[%s238 + $0x30] sm:$0x3]
        %v348 = vld [vmem:[%s238 + $0x38] sm:$0x3]
        %vm349 = vcmask 80896
        %v351 = vsel %vm349, %v278, 0
        %v354 = vsel %vm349, %v279, 0
        %v357 = vsel %vm349, %v280, 0
        %v360 = vsel %vm349, %v281, 0
        %v363 = vsel %vm349, %v282, 0
        %v366 = vsel %vm349, %v283, 0
        %v369 = vsel %vm349, %v284, 0
        %v372 = vsel %vm349, %v285, 0
        %v375 = vsel %vm349, %v286, 0
        %v378 = vsel %vm349, %v287, 0
        %v381 = vsel %vm349, %v288, 0
        %v384 = vsel %vm349, %v289, 0
        %v387 = vsel %vm349, %v290, 0
        %v390 = vsel %vm349, %v291, 0
        %v393 = vsel %vm349, %v292, 0
        %v396 = vsel %vm349, %v293, 0
        %v399 = vsel %vm349, %v294, 0
        %v402 = vsel %vm349, %v295, 0
        %v405 = vsel %vm349, %v296, 0
        %v408 = vsel %vm349, %v297, 0
        %v411 = vsel %vm349, %v298, 0
        %v414 = vsel %vm349, %v299, 0
        %v417 = vsel %vm349, %v300, 0
        %v420 = vsel %vm349, %v301, 0
        %v423 = vsel %vm349, %v302, 0
        %v426 = vsel %vm349, %v303, 0
        %v429 = vsel %vm349, %v304, 0
        %v432 = vsel %vm349, %v305, 0
        %v435 = vsel %vm349, %v306, 0
        %v438 = vsel %vm349, %v307, 0
        %v441 = vsel %vm349, %v308, 0
        %v444 = vsel %vm349, %v309, 0
        %v447 = vsel %vm349, %v310, 0
        %v450 = vsel %vm349, %v311, 0
        %v453 = vsel %vm349, %v312, 0
        %v456 = vsel %vm349, %v313, 0
        %v459 = vsel %vm349, %v314, 0
        %v462 = vsel %vm349, %v315, 0
        %v465 = vsel %vm349, %v316, 0
        %v468 = vsel %vm349, %v317, 0
        %v471 = vsel %vm349, %v318, 0
        %v474 = vsel %vm349, %v319, 0
        %v477 = vsel %vm349, %v320, 0
        %v480 = vsel %vm349, %v321, 0
        %v483 = vsel %vm349, %v322, 0
        %v486 = vsel %vm349, %v323, 0
        %v489 = vsel %vm349, %v324, 0
        %v492 = vsel %vm349, %v325, 0
        %v495 = vsel %vm349, %v326, 0
        %v498 = vsel %vm349, %v327, 0
        %v501 = vsel %vm349, %v328, 0
        %v504 = vsel %vm349, %v329, 0
        %v507 = vsel %vm349, %v330, 0
        %v510 = vsel %vm349, %v331, 0
        %v513 = vsel %vm349, %v332, 0
        %v516 = vsel %vm349, %v333, 0
        %v519 = vsel %vm349, %v334, 0
        %v522 = vsel %vm349, %v335, 0
        %v525 = vsel %vm349, %v336, 0
        %v528 = vsel %vm349, %v337, 0
        %v531 = vsel %vm349, %v338, 0
        %v534 = vsel %vm349, %v339, 0
        %v537 = vsel %vm349, %v340, 0
        %vm539 = vcmask 1041408
        %v541 = vsel %vm539, %v345, 0
        %v544 = vsel %vm539, %v346, 0
        %v547 = vsel %vm539, %v347, 0
        %v550 = vsel %vm539, %v348, 0
        %552 = vmatprep.subr.mxu0 0.0
        %553 = vmatpush1.msra.mxu0 0.0
        %554 = vmatprep.subr.mxu0 0.0
        %555 = vmatpush1.msra.mxu0 0.0
        %556 = vmatprep.subr.mxu0 0.0
        %557 = vmatpush1.msra.mxu0 0.0
        %558 = vmatprep.subr.mxu0 0.0
        %559 = vmatpush1.msra.mxu0 0.0
        %560 = vmatprep.subr.mxu0 0.0
        %561 = vmatpush1.msra.mxu0 0.0
        %562 = vmatprep.subr.mxu0 0.0
        %563 = vmatpush1.msra.mxu0 0.0
        %564 = vmatprep.subr.mxu0 0.0
        %565 = vmatpush1.msra.mxu0 0.0
        %566 = vmatprep.subr.mxu0 0.0
        %567 = vmatpush1.msra.mxu0 0.0
        %568 = vmatprep.subr.mxu0 0.0
        %569 = vmatpush1.msra.mxu0 0.0
        %570 = vmatprep.subr.mxu0 0.0
        %571 = vmatpush1.msra.mxu0 0.0
        %572 = vmatprep.subr.mxu0 0.0
        %573 = vmatpush1.msra.mxu0 0.0
        %574 = vmatprep.subr.mxu0 0.0
        %575 = vmatpush1.msra.mxu0 0.0
        %576 = vmatprep.subr.mxu0 0.0
        %577 = vmatpush1.msra.mxu0 0.0
        %578 = vmatprep.subr.mxu0 0.0
        %579 = vmatpush1.msra.mxu0 0.0
        %580 = vmatprep.subr.mxu0 %v544
        %581 = vmatpush1.msra.mxu0 %v541
        %582 = vmatprep.subr.mxu0 %v342
        %583 = vmatpush1.msra.mxu0 %v341
        %584 = vmatprep.subr.mxu0 0.0
        %585 = vmatpush2.msra.mxu0 0.0
        %586 = vmatprep.subr.mxu0 0.0
        %587 = vmatpush2.msra.mxu0 0.0
        %588 = vmatprep.subr.mxu0 0.0
        %589 = vmatpush2.msra.mxu0 0.0
        %590 = vmatprep.subr.mxu0 0.0
        %591 = vmatpush2.msra.mxu0 0.0
        %592 = vmatprep.subr.mxu0 0.0
        %593 = vmatpush2.msra.mxu0 0.0
        %594 = vmatprep.subr.mxu0 0.0
        %595 = vmatpush2.msra.mxu0 0.0
        %596 = vmatprep.subr.mxu0 0.0
        %597 = vmatpush2.msra.mxu0 0.0
        %598 = vmatprep.subr.mxu0 0.0
        %599 = vmatpush2.msra.mxu0 0.0
        %600 = vmatprep.subr.mxu0 0.0
        %601 = vmatpush2.msra.mxu0 0.0
        %602 = vmatprep.subr.mxu0 0.0
        %603 = vmatpush2.msra.mxu0 0.0
        %604 = vmatprep.subr.mxu0 0.0
        %605 = vmatpush2.msra.mxu0 0.0
        %606 = vmatprep.subr.mxu0 0.0
        %607 = vmatpush2.msra.mxu0 0.0
        %608 = vmatprep.subr.mxu0 0.0
        %609 = vmatpush2.msra.mxu0 0.0
        %610 = vmatprep.subr.mxu0 0.0
        %611 = vmatpush2.msra.mxu0 0.0
        %612 = vmatprep.subr.mxu0 0.0
        %613 = vmatpush2.msra.mxu0 0.0
        %614 = vmatprep.subr.mxu0 0.0
        %615 = vmatpush2.msra.mxu0 0.0
        %616 = vmatprep.mubr.f32.mxu0 0.0
        %617 = vmatmul.mubr.f32.gmra.mxu0 %v351
        %v618 = vpop.f32.mrf.mxu0
        %v619 = vadd.f32 0.0, %v618
        %v620 = vpop.f32.mrf.mxu0
        %v621 = vadd.f32 0.0, %v620
        %622 = vmatprep.mubr.f32.mxu0 0.0
        %623 = vmatmul.mubr.f32.gmra.mxu0 %v354
        %v624 = vpop.f32.mrf.mxu0
        %v625 = vadd.f32 0.0, %v624
        %v626 = vpop.f32.mrf.mxu0
        %v627 = vadd.f32 0.0, %v626
        %628 = vmatprep.mubr.f32.mxu0 0.0
        %629 = vmatmul.mubr.f32.gmra.mxu0 %v357
        %v630 = vpop.f32.mrf.mxu0
        %v631 = vadd.f32 0.0, %v630
        %v632 = vpop.f32.mrf.mxu0
        %v633 = vadd.f32 0.0, %v632
        %634 = vmatprep.mubr.f32.mxu0 0.0
        %635 = vmatmul.mubr.f32.gmra.mxu0 %v360
        %v636 = vpop.f32.mrf.mxu0
        %v637 = vadd.f32 0.0, %v636
        %v638 = vpop.f32.mrf.mxu0
        %v639 = vadd.f32 0.0, %v638
        %640 = vmatprep.mubr.f32.mxu0 0.0
        %641 = vmatmul.mubr.f32.gmra.mxu0 %v363
        %v642 = vpop.f32.mrf.mxu0
        %v643 = vadd.f32 0.0, %v642
        %v644 = vpop.f32.mrf.mxu0
        %v645 = vadd.f32 0.0, %v644
        %646 = vmatprep.mubr.f32.mxu0 0.0
        %647 = vmatmul.mubr.f32.gmra.mxu0 %v366
        %v648 = vpop.f32.mrf.mxu0
        %v649 = vadd.f32 0.0, %v648
        %v650 = vpop.f32.mrf.mxu0
        %v651 = vadd.f32 0.0, %v650
        %652 = vmatprep.mubr.f32.mxu0 0.0
        %653 = vmatmul.mubr.f32.gmra.mxu0 %v369
        %v654 = vpop.f32.mrf.mxu0
        %v655 = vadd.f32 0.0, %v654
        %v656 = vpop.f32.mrf.mxu0
        %v657 = vadd.f32 0.0, %v656
        %658 = vmatprep.mubr.f32.mxu0 0.0
        %659 = vmatmul.mubr.f32.gmra.mxu0 %v372
        %v660 = vpop.f32.mrf.mxu0
        %v661 = vadd.f32 0.0, %v660
        %v662 = vpop.f32.mrf.mxu0
        %v663 = vadd.f32 0.0, %v662
        %664 = vmatprep.mubr.f32.mxu0 0.0
        %665 = vmatmul.mubr.f32.gmra.mxu0 %v375
        %v666 = vpop.f32.mrf.mxu0
        %v667 = vadd.f32 0.0, %v666
        %v668 = vpop.f32.mrf.mxu0
        %v669 = vadd.f32 0.0, %v668
        %670 = vmatprep.mubr.f32.mxu0 0.0
        %671 = vmatmul.mubr.f32.gmra.mxu0 %v378
        %v672 = vpop.f32.mrf.mxu0
        %v673 = vadd.f32 0.0, %v672
        %v674 = vpop.f32.mrf.mxu0
        %v675 = vadd.f32 0.0, %v674
        %676 = vmatprep.mubr.f32.mxu0 0.0
        %677 = vmatmul.mubr.f32.gmra.mxu0 %v381
        %v678 = vpop.f32.mrf.mxu0
        %v679 = vadd.f32 0.0, %v678
        %v680 = vpop.f32.mrf.mxu0
        %v681 = vadd.f32 0.0, %v680
        %682 = vmatprep.mubr.f32.mxu0 0.0
        %683 = vmatmul.mubr.f32.gmra.mxu0 %v384
        %v684 = vpop.f32.mrf.mxu0
        %v685 = vadd.f32 0.0, %v684
        %v686 = vpop.f32.mrf.mxu0
        %v687 = vadd.f32 0.0, %v686
        %688 = vmatprep.mubr.f32.mxu0 0.0
        %689 = vmatmul.mubr.f32.gmra.mxu0 %v387
        %v690 = vpop.f32.mrf.mxu0
        %v691 = vadd.f32 0.0, %v690
        %v692 = vpop.f32.mrf.mxu0
        %v693 = vadd.f32 0.0, %v692
        %694 = vmatprep.mubr.f32.mxu0 0.0
        %695 = vmatmul.mubr.f32.gmra.mxu0 %v390
        %v696 = vpop.f32.mrf.mxu0
        %v697 = vadd.f32 0.0, %v696
        %v698 = vpop.f32.mrf.mxu0
        %v699 = vadd.f32 0.0, %v698
        %700 = vmatprep.mubr.f32.mxu0 0.0
        %701 = vmatmul.mubr.f32.gmra.mxu0 %v393
        %v702 = vpop.f32.mrf.mxu0
        %v703 = vadd.f32 0.0, %v702
        %v704 = vpop.f32.mrf.mxu0
        %v705 = vadd.f32 0.0, %v704
        %706 = vmatprep.mubr.f32.mxu0 0.0
        %707 = vmatmul.mubr.f32.gmra.mxu0 %v396
        %v708 = vpop.f32.mrf.mxu0
        %v709 = vadd.f32 0.0, %v708
        %v710 = vpop.f32.mrf.mxu0
        %v711 = vadd.f32 0.0, %v710
        %712 = vmatprep.mubr.f32.mxu0 0.0
        %713 = vmatmul.mubr.f32.gmra.mxu0 %v399
        %v714 = vpop.f32.mrf.mxu0
        %v715 = vadd.f32 0.0, %v714
        %v716 = vpop.f32.mrf.mxu0
        %v717 = vadd.f32 0.0, %v716
        %718 = vmatprep.mubr.f32.mxu0 0.0
        %719 = vmatmul.mubr.f32.gmra.mxu0 %v402
        %v720 = vpop.f32.mrf.mxu0
        %v721 = vadd.f32 0.0, %v720
        %v722 = vpop.f32.mrf.mxu0
        %v723 = vadd.f32 0.0, %v722
        %724 = vmatprep.mubr.f32.mxu0 0.0
        %725 = vmatmul.mubr.f32.gmra.mxu0 %v405
        %v726 = vpop.f32.mrf.mxu0
        %v727 = vadd.f32 0.0, %v726
        %v728 = vpop.f32.mrf.mxu0
        %v729 = vadd.f32 0.0, %v728
        %730 = vmatprep.mubr.f32.mxu0 0.0
        %731 = vmatmul.mubr.f32.gmra.mxu0 %v408
        %v732 = vpop.f32.mrf.mxu0
        %v733 = vadd.f32 0.0, %v732
        %v734 = vpop.f32.mrf.mxu0
        %v735 = vadd.f32 0.0, %v734
        %736 = vmatprep.mubr.f32.mxu0 0.0
        %737 = vmatmul.mubr.f32.gmra.mxu0 %v411
        %v738 = vpop.f32.mrf.mxu0
        %v739 = vadd.f32 0.0, %v738
        %v740 = vpop.f32.mrf.mxu0
        %v741 = vadd.f32 0.0, %v740
        %742 = vmatprep.mubr.f32.mxu0 0.0
        %743 = vmatmul.mubr.f32.gmra.mxu0 %v414
        %v744 = vpop.f32.mrf.mxu0
        %v745 = vadd.f32 0.0, %v744
        %v746 = vpop.f32.mrf.mxu0
        %v747 = vadd.f32 0.0, %v746
        %748 = vmatprep.mubr.f32.mxu0 0.0
        %749 = vmatmul.mubr.f32.gmra.mxu0 %v417
        %v750 = vpop.f32.mrf.mxu0
        %v751 = vadd.f32 0.0, %v750
        %v752 = vpop.f32.mrf.mxu0
        %v753 = vadd.f32 0.0, %v752
        %754 = vmatprep.mubr.f32.mxu0 0.0
        %755 = vmatmul.mubr.f32.gmra.mxu0 %v420
        %v756 = vpop.f32.mrf.mxu0
        %v757 = vadd.f32 0.0, %v756
        %v758 = vpop.f32.mrf.mxu0
        %v759 = vadd.f32 0.0, %v758
        %760 = vmatprep.mubr.f32.mxu0 0.0
        %761 = vmatmul.mubr.f32.gmra.mxu0 %v423
        %v762 = vpop.f32.mrf.mxu0
        %v763 = vadd.f32 0.0, %v762
        %v764 = vpop.f32.mrf.mxu0
        %v765 = vadd.f32 0.0, %v764
        %766 = vmatprep.mubr.f32.mxu0 0.0
        %767 = vmatmul.mubr.f32.gmra.mxu0 %v426
        %v768 = vpop.f32.mrf.mxu0
        %v769 = vadd.f32 0.0, %v768
        %v770 = vpop.f32.mrf.mxu0
        %v771 = vadd.f32 0.0, %v770
        %772 = vmatprep.mubr.f32.mxu0 0.0
        %773 = vmatmul.mubr.f32.gmra.mxu0 %v429
        %v774 = vpop.f32.mrf.mxu0
        %v775 = vadd.f32 0.0, %v774
        %v776 = vpop.f32.mrf.mxu0
        %v777 = vadd.f32 0.0, %v776
        %778 = vmatprep.mubr.f32.mxu0 0.0
        %779 = vmatmul.mubr.f32.gmra.mxu0 %v432
        %v780 = vpop.f32.mrf.mxu0
        %v781 = vadd.f32 0.0, %v780
        %v782 = vpop.f32.mrf.mxu0
        %v783 = vadd.f32 0.0, %v782
        %784 = vmatprep.mubr.f32.mxu0 0.0
        %785 = vmatmul.mubr.f32.gmra.mxu0 %v435
        %v786 = vpop.f32.mrf.mxu0
        %v787 = vadd.f32 0.0, %v786
        %v788 = vpop.f32.mrf.mxu0
        %v789 = vadd.f32 0.0, %v788
        %790 = vmatprep.mubr.f32.mxu0 0.0
        %791 = vmatmul.mubr.f32.gmra.mxu0 %v438
        %v792 = vpop.f32.mrf.mxu0
        %v793 = vadd.f32 0.0, %v792
        %v794 = vpop.f32.mrf.mxu0
        %v795 = vadd.f32 0.0, %v794
        %796 = vmatprep.mubr.f32.mxu0 0.0
        %797 = vmatmul.mubr.f32.gmra.mxu0 %v441
        %v798 = vpop.f32.mrf.mxu0
        %v799 = vadd.f32 0.0, %v798
        %v800 = vpop.f32.mrf.mxu0
        %v801 = vadd.f32 0.0, %v800
        %802 = vmatprep.mubr.f32.mxu0 0.0
        %803 = vmatmul.mubr.f32.gmra.mxu0 %v444
        %v804 = vpop.f32.mrf.mxu0
        %v805 = vadd.f32 0.0, %v804
        %v806 = vpop.f32.mrf.mxu0
        %v807 = vadd.f32 0.0, %v806
        %808 = vmatprep.mubr.f32.mxu0 0.0
        %809 = vmatmul.mubr.f32.gmra.mxu0 %v447
        %v810 = vpop.f32.mrf.mxu0
        %v811 = vadd.f32 0.0, %v810
        %v812 = vpop.f32.mrf.mxu0
        %v813 = vadd.f32 0.0, %v812
        %814 = vmatprep.mubr.f32.mxu0 0.0
        %815 = vmatmul.mubr.f32.gmra.mxu0 %v450
        %v816 = vpop.f32.mrf.mxu0
        %v817 = vadd.f32 0.0, %v816
        %v818 = vpop.f32.mrf.mxu0
        %v819 = vadd.f32 0.0, %v818
        %820 = vmatprep.mubr.f32.mxu0 0.0
        %821 = vmatmul.mubr.f32.gmra.mxu0 %v453
        %v822 = vpop.f32.mrf.mxu0
        %v823 = vadd.f32 0.0, %v822
        %v824 = vpop.f32.mrf.mxu0
        %v825 = vadd.f32 0.0, %v824
        %826 = vmatprep.mubr.f32.mxu0 0.0
        %827 = vmatmul.mubr.f32.gmra.mxu0 %v456
        %v828 = vpop.f32.mrf.mxu0
        %v829 = vadd.f32 0.0, %v828
        %v830 = vpop.f32.mrf.mxu0
        %v831 = vadd.f32 0.0, %v830
        %832 = vmatprep.mubr.f32.mxu0 0.0
        %833 = vmatmul.mubr.f32.gmra.mxu0 %v459
        %v834 = vpop.f32.mrf.mxu0
        %v835 = vadd.f32 0.0, %v834
        %v836 = vpop.f32.mrf.mxu0
        %v837 = vadd.f32 0.0, %v836
        %838 = vmatprep.mubr.f32.mxu0 0.0
        %839 = vmatmul.mubr.f32.gmra.mxu0 %v462
        %v840 = vpop.f32.mrf.mxu0
        %v841 = vadd.f32 0.0, %v840
        %v842 = vpop.f32.mrf.mxu0
        %v843 = vadd.f32 0.0, %v842
        %844 = vmatprep.mubr.f32.mxu0 0.0
        %845 = vmatmul.mubr.f32.gmra.mxu0 %v465
        %v846 = vpop.f32.mrf.mxu0
        %v847 = vadd.f32 0.0, %v846
        %v848 = vpop.f32.mrf.mxu0
        %v849 = vadd.f32 0.0, %v848
        %850 = vmatprep.mubr.f32.mxu0 0.0
        %851 = vmatmul.mubr.f32.gmra.mxu0 %v468
        %v852 = vpop.f32.mrf.mxu0
        %v853 = vadd.f32 0.0, %v852
        %v854 = vpop.f32.mrf.mxu0
        %v855 = vadd.f32 0.0, %v854
        %856 = vmatprep.mubr.f32.mxu0 0.0
        %857 = vmatmul.mubr.f32.gmra.mxu0 %v471
        %v858 = vpop.f32.mrf.mxu0
        %v859 = vadd.f32 0.0, %v858
        %v860 = vpop.f32.mrf.mxu0
        %v861 = vadd.f32 0.0, %v860
        %862 = vmatprep.mubr.f32.mxu0 0.0
        %863 = vmatmul.mubr.f32.gmra.mxu0 %v474
        %v864 = vpop.f32.mrf.mxu0
        %v865 = vadd.f32 0.0, %v864
        %v866 = vpop.f32.mrf.mxu0
        %v867 = vadd.f32 0.0, %v866
        %868 = vmatprep.mubr.f32.mxu0 0.0
        %869 = vmatmul.mubr.f32.gmra.mxu0 %v477
        %v870 = vpop.f32.mrf.mxu0
        %v871 = vadd.f32 0.0, %v870
        %v872 = vpop.f32.mrf.mxu0
        %v873 = vadd.f32 0.0, %v872
        %874 = vmatprep.mubr.f32.mxu0 0.0
        %875 = vmatmul.mubr.f32.gmra.mxu0 %v480
        %v876 = vpop.f32.mrf.mxu0
        %v877 = vadd.f32 0.0, %v876
        %v878 = vpop.f32.mrf.mxu0
        %v879 = vadd.f32 0.0, %v878
        %880 = vmatprep.mubr.f32.mxu0 0.0
        %881 = vmatmul.mubr.f32.gmra.mxu0 %v483
        %v882 = vpop.f32.mrf.mxu0
        %v883 = vadd.f32 0.0, %v882
        %v884 = vpop.f32.mrf.mxu0
        %v885 = vadd.f32 0.0, %v884
        %886 = vmatprep.mubr.f32.mxu0 0.0
        %887 = vmatmul.mubr.f32.gmra.mxu0 %v486
        %v888 = vpop.f32.mrf.mxu0
        %v889 = vadd.f32 0.0, %v888
        %v890 = vpop.f32.mrf.mxu0
        %v891 = vadd.f32 0.0, %v890
        %892 = vmatprep.mubr.f32.mxu0 0.0
        %893 = vmatmul.mubr.f32.gmra.mxu0 %v489
        %v894 = vpop.f32.mrf.mxu0
        %v895 = vadd.f32 0.0, %v894
        %v896 = vpop.f32.mrf.mxu0
        %v897 = vadd.f32 0.0, %v896
        %898 = vmatprep.mubr.f32.mxu0 0.0
        %899 = vmatmul.mubr.f32.gmra.mxu0 %v492
        %v900 = vpop.f32.mrf.mxu0
        %v901 = vadd.f32 0.0, %v900
        %v902 = vpop.f32.mrf.mxu0
        %v903 = vadd.f32 0.0, %v902
        %904 = vmatprep.mubr.f32.mxu0 0.0
        %905 = vmatmul.mubr.f32.gmra.mxu0 %v495
        %v906 = vpop.f32.mrf.mxu0
        %v907 = vadd.f32 0.0, %v906
        %v908 = vpop.f32.mrf.mxu0
        %v909 = vadd.f32 0.0, %v908
        %910 = vmatprep.mubr.f32.mxu0 0.0
        %911 = vmatmul.mubr.f32.gmra.mxu0 %v498
        %v912 = vpop.f32.mrf.mxu0
        %v913 = vadd.f32 0.0, %v912
        %v914 = vpop.f32.mrf.mxu0
        %v915 = vadd.f32 0.0, %v914
        %916 = vmatprep.mubr.f32.mxu0 0.0
        %917 = vmatmul.mubr.f32.gmra.mxu0 %v501
        %v918 = vpop.f32.mrf.mxu0
        %v919 = vadd.f32 0.0, %v918
        %v920 = vpop.f32.mrf.mxu0
        %v921 = vadd.f32 0.0, %v920
        %922 = vmatprep.mubr.f32.mxu0 0.0
        %923 = vmatmul.mubr.f32.gmra.mxu0 %v504
        %v924 = vpop.f32.mrf.mxu0
        %v925 = vadd.f32 0.0, %v924
        %v926 = vpop.f32.mrf.mxu0
        %v927 = vadd.f32 0.0, %v926
        %928 = vmatprep.mubr.f32.mxu0 0.0
        %929 = vmatmul.mubr.f32.gmra.mxu0 %v507
        %v930 = vpop.f32.mrf.mxu0
        %v931 = vadd.f32 0.0, %v930
        %v932 = vpop.f32.mrf.mxu0
        %v933 = vadd.f32 0.0, %v932
        %934 = vmatprep.mubr.f32.mxu0 0.0
        %935 = vmatmul.mubr.f32.gmra.mxu0 %v510
        %v936 = vpop.f32.mrf.mxu0
        %v937 = vadd.f32 0.0, %v936
        %v938 = vpop.f32.mrf.mxu0
        %v939 = vadd.f32 0.0, %v938
        %940 = vmatprep.mubr.f32.mxu0 0.0
        %941 = vmatmul.mubr.f32.gmra.mxu0 %v513
        %v942 = vpop.f32.mrf.mxu0
        %v943 = vadd.f32 0.0, %v942
        %v944 = vpop.f32.mrf.mxu0
        %v945 = vadd.f32 0.0, %v944
        %946 = vmatprep.mubr.f32.mxu0 0.0
        %947 = vmatmul.mubr.f32.gmra.mxu0 %v516
        %v948 = vpop.f32.mrf.mxu0
        %v949 = vadd.f32 0.0, %v948
        %v950 = vpop.f32.mrf.mxu0
        %v951 = vadd.f32 0.0, %v950
        %952 = vmatprep.mubr.f32.mxu0 0.0
        %953 = vmatmul.mubr.f32.gmra.mxu0 %v519
        %v954 = vpop.f32.mrf.mxu0
        %v955 = vadd.f32 0.0, %v954
        %v956 = vpop.f32.mrf.mxu0
        %v957 = vadd.f32 0.0, %v956
        %958 = vmatprep.mubr.f32.mxu0 0.0
        %959 = vmatmul.mubr.f32.gmra.mxu0 %v522
        %v960 = vpop.f32.mrf.mxu0
        %v961 = vadd.f32 0.0, %v960
        %v962 = vpop.f32.mrf.mxu0
        %v963 = vadd.f32 0.0, %v962
        %964 = vmatprep.mubr.f32.mxu0 0.0
        %965 = vmatmul.mubr.f32.gmra.mxu0 %v525
        %v966 = vpop.f32.mrf.mxu0
        %v967 = vadd.f32 0.0, %v966
        %v968 = vpop.f32.mrf.mxu0
        %v969 = vadd.f32 0.0, %v968
        %970 = vmatprep.mubr.f32.mxu0 0.0
        %971 = vmatmul.mubr.f32.gmra.mxu0 %v528
        %v972 = vpop.f32.mrf.mxu0
        %v973 = vadd.f32 0.0, %v972
        %v974 = vpop.f32.mrf.mxu0
        %v975 = vadd.f32 0.0, %v974
        %976 = vmatprep.mubr.f32.mxu0 0.0
        %977 = vmatmul.mubr.f32.gmra.mxu0 %v531
        %v978 = vpop.f32.mrf.mxu0
        %v979 = vadd.f32 0.0, %v978
        %v980 = vpop.f32.mrf.mxu0
        %v981 = vadd.f32 0.0, %v980
        %982 = vmatprep.mubr.f32.mxu0 0.0
        %983 = vmatmul.mubr.f32.gmra.mxu0 %v534
        %v984 = vpop.f32.mrf.mxu0
        %v985 = vadd.f32 0.0, %v984
        %v986 = vpop.f32.mrf.mxu0
        %v987 = vadd.f32 0.0, %v986
        %988 = vmatprep.mubr.f32.mxu0 0.0
        %989 = vmatmul.mubr.f32.gmra.mxu0 %v537
        %v990 = vpop.f32.mrf.mxu0
        %v991 = vadd.f32 0.0, %v990
        %v992 = vpop.f32.mrf.mxu0
        %v993 = vadd.f32 0.0, %v992
        %994 = vdwg.mxu0
        %995 = vmatprep.subr.mxu0 0.0
        %996 = vmatpush1.msra.mxu0 0.0
        %997 = vmatprep.subr.mxu0 0.0
        %998 = vmatpush1.msra.mxu0 0.0
        %999 = vmatprep.subr.mxu0 0.0
        %1000 = vmatpush1.msra.mxu0 0.0
        %1001 = vmatprep.subr.mxu0 0.0
        %1002 = vmatpush1.msra.mxu0 0.0
        %1003 = vmatprep.subr.mxu0 0.0
        %1004 = vmatpush1.msra.mxu0 0.0
        %1005 = vmatprep.subr.mxu0 0.0
        %1006 = vmatpush1.msra.mxu0 0.0
        %1007 = vmatprep.subr.mxu0 0.0
        %1008 = vmatpush1.msra.mxu0 0.0
        %1009 = vmatprep.subr.mxu0 0.0
        %1010 = vmatpush1.msra.mxu0 0.0
        %1011 = vmatprep.subr.mxu0 0.0
        %1012 = vmatpush1.msra.mxu0 0.0
        %1013 = vmatprep.subr.mxu0 0.0
        %1014 = vmatpush1.msra.mxu0 0.0
        %1015 = vmatprep.subr.mxu0 0.0
        %1016 = vmatpush1.msra.mxu0 0.0
        %1017 = vmatprep.subr.mxu0 0.0
        %1018 = vmatpush1.msra.mxu0 0.0
        %1019 = vmatprep.subr.mxu0 0.0
        %1020 = vmatpush1.msra.mxu0 0.0
        %1021 = vmatprep.subr.mxu0 0.0
        %1022 = vmatpush1.msra.mxu0 0.0
        %1023 = vmatprep.subr.mxu0 %v550
        %1024 = vmatpush1.msra.mxu0 %v547
        %1025 = vmatprep.subr.mxu0 %v344
        %1026 = vmatpush1.msra.mxu0 %v343
        %1027 = vmatprep.subr.mxu0 0.0
        %1028 = vmatpush2.msra.mxu0 0.0
        %1029 = vmatprep.subr.mxu0 0.0
        %1030 = vmatpush2.msra.mxu0 0.0
        %1031 = vmatprep.subr.mxu0 0.0
        %1032 = vmatpush2.msra.mxu0 0.0
        %1033 = vmatprep.subr.mxu0 0.0
        %1034 = vmatpush2.msra.mxu0 0.0
        %1035 = vmatprep.subr.mxu0 0.0
        %1036 = vmatpush2.msra.mxu0 0.0
        %1037 = vmatprep.subr.mxu0 0.0
        %1038 = vmatpush2.msra.mxu0 0.0
        %1039 = vmatprep.subr.mxu0 0.0
        %1040 = vmatpush2.msra.mxu0 0.0
        %1041 = vmatprep.subr.mxu0 0.0
        %1042 = vmatpush2.msra.mxu0 0.0
        %1043 = vmatprep.subr.mxu0 0.0
        %1044 = vmatpush2.msra.mxu0 0.0
        %1045 = vmatprep.subr.mxu0 0.0
        %1046 = vmatpush2.msra.mxu0 0.0
        %1047 = vmatprep.subr.mxu0 0.0
        %1048 = vmatpush2.msra.mxu0 0.0
        %1049 = vmatprep.subr.mxu0 0.0
        %1050 = vmatpush2.msra.mxu0 0.0
        %1051 = vmatprep.subr.mxu0 0.0
        %1052 = vmatpush2.msra.mxu0 0.0
        %1053 = vmatprep.subr.mxu0 0.0
        %1054 = vmatpush2.msra.mxu0 0.0
        %1055 = vmatprep.subr.mxu0 0.0
        %1056 = vmatpush2.msra.mxu0 0.0
        %1057 = vmatprep.subr.mxu0 0.0
        %1058 = vmatpush2.msra.mxu0 0.0
        %1059 = vmatprep.mubr.f32.mxu0 0.0
        %1060 = vmatmul.mubr.f32.gmra.mxu0 %v351
        %v1061 = vpop.f32.mrf.mxu0
        %v1062 = vadd.f32 0.0, %v1061
        %v1063 = vpop.f32.mrf.mxu0
        %v1064 = vadd.f32 0.0, %v1063
        %1065 = vmatprep.mubr.f32.mxu0 0.0
        %1066 = vmatmul.mubr.f32.gmra.mxu0 %v354
        %v1067 = vpop.f32.mrf.mxu0
        %v1068 = vadd.f32 0.0, %v1067
        %v1069 = vpop.f32.mrf.mxu0
        %v1070 = vadd.f32 0.0, %v1069
        %1071 = vmatprep.mubr.f32.mxu0 0.0
        %1072 = vmatmul.mubr.f32.gmra.mxu0 %v357
        %v1073 = vpop.f32.mrf.mxu0
        %v1074 = vadd.f32 0.0, %v1073
        %v1075 = vpop.f32.mrf.mxu0
        %v1076 = vadd.f32 0.0, %v1075
        %1077 = vmatprep.mubr.f32.mxu0 0.0
        %1078 = vmatmul.mubr.f32.gmra.mxu0 %v360
        %v1079 = vpop.f32.mrf.mxu0
        %v1080 = vadd.f32 0.0, %v1079
        %v1081 = vpop.f32.mrf.mxu0
        %v1082 = vadd.f32 0.0, %v1081
        %1083 = vmatprep.mubr.f32.mxu0 0.0
        %1084 = vmatmul.mubr.f32.gmra.mxu0 %v363
        %v1085 = vpop.f32.mrf.mxu0
        %v1086 = vadd.f32 0.0, %v1085
        %v1087 = vpop.f32.mrf.mxu0
        %v1088 = vadd.f32 0.0, %v1087
        %1089 = vmatprep.mubr.f32.mxu0 0.0
        %1090 = vmatmul.mubr.f32.gmra.mxu0 %v366
        %v1091 = vpop.f32.mrf.mxu0
        %v1092 = vadd.f32 0.0, %v1091
        %v1093 = vpop.f32.mrf.mxu0
        %v1094 = vadd.f32 0.0, %v1093
        %1095 = vmatprep.mubr.f32.mxu0 0.0
        %1096 = vmatmul.mubr.f32.gmra.mxu0 %v369
        %v1097 = vpop.f32.mrf.mxu0
        %v1098 = vadd.f32 0.0, %v1097
        %v1099 = vpop.f32.mrf.mxu0
        %v1100 = vadd.f32 0.0, %v1099
        %1101 = vmatprep.mubr.f32.mxu0 0.0
        %1102 = vmatmul.mubr.f32.gmra.mxu0 %v372
        %v1103 = vpop.f32.mrf.mxu0
        %v1104 = vadd.f32 0.0, %v1103
        %v1105 = vpop.f32.mrf.mxu0
        %v1106 = vadd.f32 0.0, %v1105
        %1107 = vmatprep.mubr.f32.mxu0 0.0
        %1108 = vmatmul.mubr.f32.gmra.mxu0 %v375
        %v1109 = vpop.f32.mrf.mxu0
        %v1110 = vadd.f32 0.0, %v1109
        %v1111 = vpop.f32.mrf.mxu0
        %v1112 = vadd.f32 0.0, %v1111
        %1113 = vmatprep.mubr.f32.mxu0 0.0
        %1114 = vmatmul.mubr.f32.gmra.mxu0 %v378
        %v1115 = vpop.f32.mrf.mxu0
        %v1116 = vadd.f32 0.0, %v1115
        %v1117 = vpop.f32.mrf.mxu0
        %v1118 = vadd.f32 0.0, %v1117
        %1119 = vmatprep.mubr.f32.mxu0 0.0
        %1120 = vmatmul.mubr.f32.gmra.mxu0 %v381
        %v1121 = vpop.f32.mrf.mxu0
        %v1122 = vadd.f32 0.0, %v1121
        %v1123 = vpop.f32.mrf.mxu0
        %v1124 = vadd.f32 0.0, %v1123
        %1125 = vmatprep.mubr.f32.mxu0 0.0
        %1126 = vmatmul.mubr.f32.gmra.mxu0 %v384
        %v1127 = vpop.f32.mrf.mxu0
        %v1128 = vadd.f32 0.0, %v1127
        %v1129 = vpop.f32.mrf.mxu0
        %v1130 = vadd.f32 0.0, %v1129
        %1131 = vmatprep.mubr.f32.mxu0 0.0
        %1132 = vmatmul.mubr.f32.gmra.mxu0 %v387
        %v1133 = vpop.f32.mrf.mxu0
        %v1134 = vadd.f32 0.0, %v1133
        %v1135 = vpop.f32.mrf.mxu0
        %v1136 = vadd.f32 0.0, %v1135
        %1137 = vmatprep.mubr.f32.mxu0 0.0
        %1138 = vmatmul.mubr.f32.gmra.mxu0 %v390
        %v1139 = vpop.f32.mrf.mxu0
        %v1140 = vadd.f32 0.0, %v1139
        %v1141 = vpop.f32.mrf.mxu0
        %v1142 = vadd.f32 0.0, %v1141
        %1143 = vmatprep.mubr.f32.mxu0 0.0
        %1144 = vmatmul.mubr.f32.gmra.mxu0 %v393
        %v1145 = vpop.f32.mrf.mxu0
        %v1146 = vadd.f32 0.0, %v1145
        %v1147 = vpop.f32.mrf.mxu0
        %v1148 = vadd.f32 0.0, %v1147
        %1149 = vmatprep.mubr.f32.mxu0 0.0
        %1150 = vmatmul.mubr.f32.gmra.mxu0 %v396
        %v1151 = vpop.f32.mrf.mxu0
        %v1152 = vadd.f32 0.0, %v1151
        %v1153 = vpop.f32.mrf.mxu0
        %v1154 = vadd.f32 0.0, %v1153
        %1155 = vmatprep.mubr.f32.mxu0 0.0
        %1156 = vmatmul.mubr.f32.gmra.mxu0 %v399
        %v1157 = vpop.f32.mrf.mxu0
        %v1158 = vadd.f32 0.0, %v1157
        %v1159 = vpop.f32.mrf.mxu0
        %v1160 = vadd.f32 0.0, %v1159
        %1161 = vmatprep.mubr.f32.mxu0 0.0
        %1162 = vmatmul.mubr.f32.gmra.mxu0 %v402
        %v1163 = vpop.f32.mrf.mxu0
        %v1164 = vadd.f32 0.0, %v1163
        %v1165 = vpop.f32.mrf.mxu0
        %v1166 = vadd.f32 0.0, %v1165
        %1167 = vmatprep.mubr.f32.mxu0 0.0
        %1168 = vmatmul.mubr.f32.gmra.mxu0 %v405
        %v1169 = vpop.f32.mrf.mxu0
        %v1170 = vadd.f32 0.0, %v1169
        %v1171 = vpop.f32.mrf.mxu0
        %v1172 = vadd.f32 0.0, %v1171
        %1173 = vmatprep.mubr.f32.mxu0 0.0
        %1174 = vmatmul.mubr.f32.gmra.mxu0 %v408
        %v1175 = vpop.f32.mrf.mxu0
        %v1176 = vadd.f32 0.0, %v1175
        %v1177 = vpop.f32.mrf.mxu0
        %v1178 = vadd.f32 0.0, %v1177
        %1179 = vmatprep.mubr.f32.mxu0 0.0
        %1180 = vmatmul.mubr.f32.gmra.mxu0 %v411
        %v1181 = vpop.f32.mrf.mxu0
        %v1182 = vadd.f32 0.0, %v1181
        %v1183 = vpop.f32.mrf.mxu0
        %v1184 = vadd.f32 0.0, %v1183
        %1185 = vmatprep.mubr.f32.mxu0 0.0
        %1186 = vmatmul.mubr.f32.gmra.mxu0 %v414
        %v1187 = vpop.f32.mrf.mxu0
        %v1188 = vadd.f32 0.0, %v1187
        %v1189 = vpop.f32.mrf.mxu0
        %v1190 = vadd.f32 0.0, %v1189
        %1191 = vmatprep.mubr.f32.mxu0 0.0
        %1192 = vmatmul.mubr.f32.gmra.mxu0 %v417
        %v1193 = vpop.f32.mrf.mxu0
        %v1194 = vadd.f32 0.0, %v1193
        %v1195 = vpop.f32.mrf.mxu0
        %v1196 = vadd.f32 0.0, %v1195
        %1197 = vmatprep.mubr.f32.mxu0 0.0
        %1198 = vmatmul.mubr.f32.gmra.mxu0 %v420
        %v1199 = vpop.f32.mrf.mxu0
        %v1200 = vadd.f32 0.0, %v1199
        %v1201 = vpop.f32.mrf.mxu0
        %v1202 = vadd.f32 0.0, %v1201
        %1203 = vmatprep.mubr.f32.mxu0 0.0
        %1204 = vmatmul.mubr.f32.gmra.mxu0 %v423
        %v1205 = vpop.f32.mrf.mxu0
        %v1206 = vadd.f32 0.0, %v1205
        %v1207 = vpop.f32.mrf.mxu0
        %v1208 = vadd.f32 0.0, %v1207
        %1209 = vmatprep.mubr.f32.mxu0 0.0
        %1210 = vmatmul.mubr.f32.gmra.mxu0 %v426
        %v1211 = vpop.f32.mrf.mxu0
        %v1212 = vadd.f32 0.0, %v1211
        %v1213 = vpop.f32.mrf.mxu0
        %v1214 = vadd.f32 0.0, %v1213
        %1215 = vmatprep.mubr.f32.mxu0 0.0
        %1216 = vmatmul.mubr.f32.gmra.mxu0 %v429
        %v1217 = vpop.f32.mrf.mxu0
        %v1218 = vadd.f32 0.0, %v1217
        %v1219 = vpop.f32.mrf.mxu0
        %v1220 = vadd.f32 0.0, %v1219
        %1221 = vmatprep.mubr.f32.mxu0 0.0
        %1222 = vmatmul.mubr.f32.gmra.mxu0 %v432
        %v1223 = vpop.f32.mrf.mxu0
        %v1224 = vadd.f32 0.0, %v1223
        %v1225 = vpop.f32.mrf.mxu0
        %v1226 = vadd.f32 0.0, %v1225
        %1227 = vmatprep.mubr.f32.mxu0 0.0
        %1228 = vmatmul.mubr.f32.gmra.mxu0 %v435
        %v1229 = vpop.f32.mrf.mxu0
        %v1230 = vadd.f32 0.0, %v1229
        %v1231 = vpop.f32.mrf.mxu0
        %v1232 = vadd.f32 0.0, %v1231
        %1233 = vmatprep.mubr.f32.mxu0 0.0
        %1234 = vmatmul.mubr.f32.gmra.mxu0 %v438
        %v1235 = vpop.f32.mrf.mxu0
        %v1236 = vadd.f32 0.0, %v1235
        %v1237 = vpop.f32.mrf.mxu0
        %v1238 = vadd.f32 0.0, %v1237
        %1239 = vmatprep.mubr.f32.mxu0 0.0
        %1240 = vmatmul.mubr.f32.gmra.mxu0 %v441
        %v1241 = vpop.f32.mrf.mxu0
        %v1242 = vadd.f32 0.0, %v1241
        %v1243 = vpop.f32.mrf.mxu0
        %v1244 = vadd.f32 0.0, %v1243
        %1245 = vmatprep.mubr.f32.mxu0 0.0
        %1246 = vmatmul.mubr.f32.gmra.mxu0 %v444
        %v1247 = vpop.f32.mrf.mxu0
        %v1248 = vadd.f32 0.0, %v1247
        %v1249 = vpop.f32.mrf.mxu0
        %v1250 = vadd.f32 0.0, %v1249
        %1251 = vmatprep.mubr.f32.mxu0 0.0
        %1252 = vmatmul.mubr.f32.gmra.mxu0 %v447
        %v1253 = vpop.f32.mrf.mxu0
        %v1254 = vadd.f32 0.0, %v1253
        %v1255 = vpop.f32.mrf.mxu0
        %v1256 = vadd.f32 0.0, %v1255
        %1257 = vmatprep.mubr.f32.mxu0 0.0
        %1258 = vmatmul.mubr.f32.gmra.mxu0 %v450
        %v1259 = vpop.f32.mrf.mxu0
        %v1260 = vadd.f32 0.0, %v1259
        %v1261 = vpop.f32.mrf.mxu0
        %v1262 = vadd.f32 0.0, %v1261
        %1263 = vmatprep.mubr.f32.mxu0 0.0
        %1264 = vmatmul.mubr.f32.gmra.mxu0 %v453
        %v1265 = vpop.f32.mrf.mxu0
        %v1266 = vadd.f32 0.0, %v1265
        %v1267 = vpop.f32.mrf.mxu0
        %v1268 = vadd.f32 0.0, %v1267
        %1269 = vmatprep.mubr.f32.mxu0 0.0
        %1270 = vmatmul.mubr.f32.gmra.mxu0 %v456
        %v1271 = vpop.f32.mrf.mxu0
        %v1272 = vadd.f32 0.0, %v1271
        %v1273 = vpop.f32.mrf.mxu0
        %v1274 = vadd.f32 0.0, %v1273
        %1275 = vmatprep.mubr.f32.mxu0 0.0
        %1276 = vmatmul.mubr.f32.gmra.mxu0 %v459
        %v1277 = vpop.f32.mrf.mxu0
        %v1278 = vadd.f32 0.0, %v1277
        %v1279 = vpop.f32.mrf.mxu0
        %v1280 = vadd.f32 0.0, %v1279
        %1281 = vmatprep.mubr.f32.mxu0 0.0
        %1282 = vmatmul.mubr.f32.gmra.mxu0 %v462
        %v1283 = vpop.f32.mrf.mxu0
        %v1284 = vadd.f32 0.0, %v1283
        %v1285 = vpop.f32.mrf.mxu0
        %v1286 = vadd.f32 0.0, %v1285
        %1287 = vmatprep.mubr.f32.mxu0 0.0
        %1288 = vmatmul.mubr.f32.gmra.mxu0 %v465
        %v1289 = vpop.f32.mrf.mxu0
        %v1290 = vadd.f32 0.0, %v1289
        %v1291 = vpop.f32.mrf.mxu0
        %v1292 = vadd.f32 0.0, %v1291
        %1293 = vmatprep.mubr.f32.mxu0 0.0
        %1294 = vmatmul.mubr.f32.gmra.mxu0 %v468
        %v1295 = vpop.f32.mrf.mxu0
        %v1296 = vadd.f32 0.0, %v1295
        %v1297 = vpop.f32.mrf.mxu0
        %v1298 = vadd.f32 0.0, %v1297
        %1299 = vmatprep.mubr.f32.mxu0 0.0
        %1300 = vmatmul.mubr.f32.gmra.mxu0 %v471
        %v1301 = vpop.f32.mrf.mxu0
        %v1302 = vadd.f32 0.0, %v1301
        %v1303 = vpop.f32.mrf.mxu0
        %v1304 = vadd.f32 0.0, %v1303
        %1305 = vmatprep.mubr.f32.mxu0 0.0
        %1306 = vmatmul.mubr.f32.gmra.mxu0 %v474
        %v1307 = vpop.f32.mrf.mxu0
        %v1308 = vadd.f32 0.0, %v1307
        %v1309 = vpop.f32.mrf.mxu0
        %v1310 = vadd.f32 0.0, %v1309
        %1311 = vmatprep.mubr.f32.mxu0 0.0
        %1312 = vmatmul.mubr.f32.gmra.mxu0 %v477
        %v1313 = vpop.f32.mrf.mxu0
        %v1314 = vadd.f32 0.0, %v1313
        %v1315 = vpop.f32.mrf.mxu0
        %v1316 = vadd.f32 0.0, %v1315
        %1317 = vmatprep.mubr.f32.mxu0 0.0
        %1318 = vmatmul.mubr.f32.gmra.mxu0 %v480
        %v1319 = vpop.f32.mrf.mxu0
        %v1320 = vadd.f32 0.0, %v1319
        %v1321 = vpop.f32.mrf.mxu0
        %v1322 = vadd.f32 0.0, %v1321
        %1323 = vmatprep.mubr.f32.mxu0 0.0
        %1324 = vmatmul.mubr.f32.gmra.mxu0 %v483
        %v1325 = vpop.f32.mrf.mxu0
        %v1326 = vadd.f32 0.0, %v1325
        %v1327 = vpop.f32.mrf.mxu0
        %v1328 = vadd.f32 0.0, %v1327
        %1329 = vmatprep.mubr.f32.mxu0 0.0
        %1330 = vmatmul.mubr.f32.gmra.mxu0 %v486
        %v1331 = vpop.f32.mrf.mxu0
        %v1332 = vadd.f32 0.0, %v1331
        %v1333 = vpop.f32.mrf.mxu0
        %v1334 = vadd.f32 0.0, %v1333
        %1335 = vmatprep.mubr.f32.mxu0 0.0
        %1336 = vmatmul.mubr.f32.gmra.mxu0 %v489
        %v1337 = vpop.f32.mrf.mxu0
        %v1338 = vadd.f32 0.0, %v1337
        %v1339 = vpop.f32.mrf.mxu0
        %v1340 = vadd.f32 0.0, %v1339
        %1341 = vmatprep.mubr.f32.mxu0 0.0
        %1342 = vmatmul.mubr.f32.gmra.mxu0 %v492
        %v1343 = vpop.f32.mrf.mxu0
        %v1344 = vadd.f32 0.0, %v1343
        %v1345 = vpop.f32.mrf.mxu0
        %v1346 = vadd.f32 0.0, %v1345
        %1347 = vmatprep.mubr.f32.mxu0 0.0
        %1348 = vmatmul.mubr.f32.gmra.mxu0 %v495
        %v1349 = vpop.f32.mrf.mxu0
        %v1350 = vadd.f32 0.0, %v1349
        %v1351 = vpop.f32.mrf.mxu0
        %v1352 = vadd.f32 0.0, %v1351
        %1353 = vmatprep.mubr.f32.mxu0 0.0
        %1354 = vmatmul.mubr.f32.gmra.mxu0 %v498
        %v1355 = vpop.f32.mrf.mxu0
        %v1356 = vadd.f32 0.0, %v1355
        %v1357 = vpop.f32.mrf.mxu0
        %v1358 = vadd.f32 0.0, %v1357
        %1359 = vmatprep.mubr.f32.mxu0 0.0
        %1360 = vmatmul.mubr.f32.gmra.mxu0 %v501
        %v1361 = vpop.f32.mrf.mxu0
        %v1362 = vadd.f32 0.0, %v1361
        %v1363 = vpop.f32.mrf.mxu0
        %v1364 = vadd.f32 0.0, %v1363
        %1365 = vmatprep.mubr.f32.mxu0 0.0
        %1366 = vmatmul.mubr.f32.gmra.mxu0 %v504
        %v1367 = vpop.f32.mrf.mxu0
        %v1368 = vadd.f32 0.0, %v1367
        %v1369 = vpop.f32.mrf.mxu0
        %v1370 = vadd.f32 0.0, %v1369
        %1371 = vmatprep.mubr.f32.mxu0 0.0
        %1372 = vmatmul.mubr.f32.gmra.mxu0 %v507
        %v1373 = vpop.f32.mrf.mxu0
        %v1374 = vadd.f32 0.0, %v1373
        %v1375 = vpop.f32.mrf.mxu0
        %v1376 = vadd.f32 0.0, %v1375
        %1377 = vmatprep.mubr.f32.mxu0 0.0
        %1378 = vmatmul.mubr.f32.gmra.mxu0 %v510
        %v1379 = vpop.f32.mrf.mxu0
        %v1380 = vadd.f32 0.0, %v1379
        %v1381 = vpop.f32.mrf.mxu0
        %v1382 = vadd.f32 0.0, %v1381
        %1383 = vmatprep.mubr.f32.mxu0 0.0
        %1384 = vmatmul.mubr.f32.gmra.mxu0 %v513
        %v1385 = vpop.f32.mrf.mxu0
        %v1386 = vadd.f32 0.0, %v1385
        %v1387 = vpop.f32.mrf.mxu0
        %v1388 = vadd.f32 0.0, %v1387
        %1389 = vmatprep.mubr.f32.mxu0 0.0
        %1390 = vmatmul.mubr.f32.gmra.mxu0 %v516
        %v1391 = vpop.f32.mrf.mxu0
        %v1392 = vadd.f32 0.0, %v1391
        %v1393 = vpop.f32.mrf.mxu0
        %v1394 = vadd.f32 0.0, %v1393
        %1395 = vmatprep.mubr.f32.mxu0 0.0
        %1396 = vmatmul.mubr.f32.gmra.mxu0 %v519
        %v1397 = vpop.f32.mrf.mxu0
        %v1398 = vadd.f32 0.0, %v1397
        %v1399 = vpop.f32.mrf.mxu0
        %v1400 = vadd.f32 0.0, %v1399
        %1401 = vmatprep.mubr.f32.mxu0 0.0
        %1402 = vmatmul.mubr.f32.gmra.mxu0 %v522
        %v1403 = vpop.f32.mrf.mxu0
        %v1404 = vadd.f32 0.0, %v1403
        %v1405 = vpop.f32.mrf.mxu0
        %v1406 = vadd.f32 0.0, %v1405
        %1407 = vmatprep.mubr.f32.mxu0 0.0
        %1408 = vmatmul.mubr.f32.gmra.mxu0 %v525
        %v1409 = vpop.f32.mrf.mxu0
        %v1410 = vadd.f32 0.0, %v1409
        %v1411 = vpop.f32.mrf.mxu0
        %v1412 = vadd.f32 0.0, %v1411
        %1413 = vmatprep.mubr.f32.mxu0 0.0
        %1414 = vmatmul.mubr.f32.gmra.mxu0 %v528
        %v1415 = vpop.f32.mrf.mxu0
        %v1416 = vadd.f32 0.0, %v1415
        %v1417 = vpop.f32.mrf.mxu0
        %v1418 = vadd.f32 0.0, %v1417
        %1419 = vmatprep.mubr.f32.mxu0 0.0
        %1420 = vmatmul.mubr.f32.gmra.mxu0 %v531
        %v1421 = vpop.f32.mrf.mxu0
        %v1422 = vadd.f32 0.0, %v1421
        %v1423 = vpop.f32.mrf.mxu0
        %v1424 = vadd.f32 0.0, %v1423
        %1425 = vmatprep.mubr.f32.mxu0 0.0
        %1426 = vmatmul.mubr.f32.gmra.mxu0 %v534
        %v1427 = vpop.f32.mrf.mxu0
        %v1428 = vadd.f32 0.0, %v1427
        %v1429 = vpop.f32.mrf.mxu0
        %v1430 = vadd.f32 0.0, %v1429
        %1431 = vmatprep.mubr.f32.mxu0 0.0
        %1432 = vmatmul.mubr.f32.gmra.mxu0 %v537
        %v1433 = vpop.f32.mrf.mxu0
        %v1434 = vadd.f32 0.0, %v1433
        %v1435 = vpop.f32.mrf.mxu0
        %v1436 = vadd.f32 0.0, %v1435
        %1437 = vdwg.mxu0
        %v1438 = vmax.f32 %v619, 0.0
        %v1439 = vmax.f32 %v621, 0.0
        %v1440 = vmax.f32 %v1062, 0.0
        %v1441 = vmax.f32 %v1064, 0.0
        %v1442 = vmax.f32 %v625, 0.0
        %v1443 = vmax.f32 %v627, 0.0
        %v1444 = vmax.f32 %v1068, 0.0
        %v1445 = vmax.f32 %v1070, 0.0
        %v1446 = vmax.f32 %v631, 0.0
        %v1447 = vmax.f32 %v633, 0.0
        %v1448 = vmax.f32 %v1074, 0.0
        %v1449 = vmax.f32 %v1076, 0.0
        %v1450 = vmax.f32 %v637, 0.0
        %v1451 = vmax.f32 %v639, 0.0
        %v1452 = vmax.f32 %v1080, 0.0
        %v1453 = vmax.f32 %v1082, 0.0
        %v1454 = vmax.f32 %v643, 0.0
        %v1455 = vmax.f32 %v645, 0.0
        %v1456 = vmax.f32 %v1086, 0.0
        %v1457 = vmax.f32 %v1088, 0.0
        %v1458 = vmax.f32 %v649, 0.0
        %v1459 = vmax.f32 %v651, 0.0
        %v1460 = vmax.f32 %v1092, 0.0
        %v1461 = vmax.f32 %v1094, 0.0
        %v1462 = vmax.f32 %v655, 0.0
        %v1463 = vmax.f32 %v657, 0.0
        %v1464 = vmax.f32 %v1098, 0.0
        %v1465 = vmax.f32 %v1100, 0.0
        %v1466 = vmax.f32 %v661, 0.0
        %v1467 = vmax.f32 %v663, 0.0
        %v1468 = vmax.f32 %v1104, 0.0
        %v1469 = vmax.f32 %v1106, 0.0
        %v1470 = vmax.f32 %v667, 0.0
        %v1471 = vmax.f32 %v669, 0.0
        %v1472 = vmax.f32 %v1110, 0.0
        %v1473 = vmax.f32 %v1112, 0.0
        %v1474 = vmax.f32 %v673, 0.0
        %v1475 = vmax.f32 %v675, 0.0
        %v1476 = vmax.f32 %v1116, 0.0
        %v1477 = vmax.f32 %v1118, 0.0
        %v1478 = vmax.f32 %v679, 0.0
        %v1479 = vmax.f32 %v681, 0.0
        %v1480 = vmax.f32 %v1122, 0.0
        %v1481 = vmax.f32 %v1124, 0.0
        %v1482 = vmax.f32 %v685, 0.0
        %v1483 = vmax.f32 %v687, 0.0
        %v1484 = vmax.f32 %v1128, 0.0
        %v1485 = vmax.f32 %v1130, 0.0
        %v1486 = vmax.f32 %v691, 0.0
        %v1487 = vmax.f32 %v693, 0.0
        %v1488 = vmax.f32 %v1134, 0.0
        %v1489 = vmax.f32 %v1136, 0.0
        %v1490 = vmax.f32 %v697, 0.0
        %v1491 = vmax.f32 %v699, 0.0
        %v1492 = vmax.f32 %v1140, 0.0
        %v1493 = vmax.f32 %v1142, 0.0
        %v1494 = vmax.f32 %v703, 0.0
        %v1495 = vmax.f32 %v705, 0.0
        %v1496 = vmax.f32 %v1146, 0.0
        %v1497 = vmax.f32 %v1148, 0.0
        %v1498 = vmax.f32 %v709, 0.0
        %v1499 = vmax.f32 %v711, 0.0
        %v1500 = vmax.f32 %v1152, 0.0
        %v1501 = vmax.f32 %v1154, 0.0
        %v1502 = vmax.f32 %v715, 0.0
        %v1503 = vmax.f32 %v717, 0.0
        %v1504 = vmax.f32 %v1158, 0.0
        %v1505 = vmax.f32 %v1160, 0.0
        %v1506 = vmax.f32 %v721, 0.0
        %v1507 = vmax.f32 %v723, 0.0
        %v1508 = vmax.f32 %v1164, 0.0
        %v1509 = vmax.f32 %v1166, 0.0
        %v1510 = vmax.f32 %v727, 0.0
        %v1511 = vmax.f32 %v729, 0.0
        %v1512 = vmax.f32 %v1170, 0.0
        %v1513 = vmax.f32 %v1172, 0.0
        %v1514 = vmax.f32 %v733, 0.0
        %v1515 = vmax.f32 %v735, 0.0
        %v1516 = vmax.f32 %v1176, 0.0
        %v1517 = vmax.f32 %v1178, 0.0
        %v1518 = vmax.f32 %v739, 0.0
        %v1519 = vmax.f32 %v741, 0.0
        %v1520 = vmax.f32 %v1182, 0.0
        %v1521 = vmax.f32 %v1184, 0.0
        %v1522 = vmax.f32 %v745, 0.0
        %v1523 = vmax.f32 %v747, 0.0
        %v1524 = vmax.f32 %v1188, 0.0
        %v1525 = vmax.f32 %v1190, 0.0
        %v1526 = vmax.f32 %v751, 0.0
        %v1527 = vmax.f32 %v753, 0.0
        %v1528 = vmax.f32 %v1194, 0.0
        %v1529 = vmax.f32 %v1196, 0.0
        %v1530 = vmax.f32 %v757, 0.0
        %v1531 = vmax.f32 %v759, 0.0
        %v1532 = vmax.f32 %v1200, 0.0
        %v1533 = vmax.f32 %v1202, 0.0
        %v1534 = vmax.f32 %v763, 0.0
        %v1535 = vmax.f32 %v765, 0.0
        %v1536 = vmax.f32 %v1206, 0.0
        %v1537 = vmax.f32 %v1208, 0.0
        %v1538 = vmax.f32 %v769, 0.0
        %v1539 = vmax.f32 %v771, 0.0
        %v1540 = vmax.f32 %v1212, 0.0
        %v1541 = vmax.f32 %v1214, 0.0
        %v1542 = vmax.f32 %v775, 0.0
        %v1543 = vmax.f32 %v777, 0.0
        %v1544 = vmax.f32 %v1218, 0.0
        %v1545 = vmax.f32 %v1220, 0.0
        %v1546 = vmax.f32 %v781, 0.0
        %v1547 = vmax.f32 %v783, 0.0
        %v1548 = vmax.f32 %v1224, 0.0
        %v1549 = vmax.f32 %v1226, 0.0
        %v1550 = vmax.f32 %v787, 0.0
        %v1551 = vmax.f32 %v789, 0.0
        %v1552 = vmax.f32 %v1230, 0.0
        %v1553 = vmax.f32 %v1232, 0.0
        %v1554 = vmax.f32 %v793, 0.0
        %v1555 = vmax.f32 %v795, 0.0
        %v1556 = vmax.f32 %v1236, 0.0
        %v1557 = vmax.f32 %v1238, 0.0
        %v1558 = vmax.f32 %v799, 0.0
        %v1559 = vmax.f32 %v801, 0.0
        %v1560 = vmax.f32 %v1242, 0.0
        %v1561 = vmax.f32 %v1244, 0.0
        %v1562 = vmax.f32 %v805, 0.0
        %v1563 = vmax.f32 %v807, 0.0
        %v1564 = vmax.f32 %v1248, 0.0
        %v1565 = vmax.f32 %v1250, 0.0
        %v1566 = vmax.f32 %v811, 0.0
        %v1567 = vmax.f32 %v813, 0.0
        %v1568 = vmax.f32 %v1254, 0.0
        %v1569 = vmax.f32 %v1256, 0.0
        %v1570 = vmax.f32 %v817, 0.0
        %v1571 = vmax.f32 %v819, 0.0
        %v1572 = vmax.f32 %v1260, 0.0
        %v1573 = vmax.f32 %v1262, 0.0
        %v1574 = vmax.f32 %v823, 0.0
        %v1575 = vmax.f32 %v825, 0.0
        %v1576 = vmax.f32 %v1266, 0.0
        %v1577 = vmax.f32 %v1268, 0.0
        %v1578 = vmax.f32 %v829, 0.0
        %v1579 = vmax.f32 %v831, 0.0
        %v1580 = vmax.f32 %v1272, 0.0
        %v1581 = vmax.f32 %v1274, 0.0
        %v1582 = vmax.f32 %v835, 0.0
        %v1583 = vmax.f32 %v837, 0.0
        %v1584 = vmax.f32 %v1278, 0.0
        %v1585 = vmax.f32 %v1280, 0.0
        %v1586 = vmax.f32 %v841, 0.0
        %v1587 = vmax.f32 %v843, 0.0
        %v1588 = vmax.f32 %v1284, 0.0
        %v1589 = vmax.f32 %v1286, 0.0
        %v1590 = vmax.f32 %v847, 0.0
        %v1591 = vmax.f32 %v849, 0.0
        %v1592 = vmax.f32 %v1290, 0.0
        %v1593 = vmax.f32 %v1292, 0.0
        %v1594 = vmax.f32 %v853, 0.0
        %v1595 = vmax.f32 %v855, 0.0
        %v1596 = vmax.f32 %v1296, 0.0
        %v1597 = vmax.f32 %v1298, 0.0
        %v1598 = vmax.f32 %v859, 0.0
        %v1599 = vmax.f32 %v861, 0.0
        %v1600 = vmax.f32 %v1302, 0.0
        %v1601 = vmax.f32 %v1304, 0.0
        %v1602 = vmax.f32 %v865, 0.0
        %v1603 = vmax.f32 %v867, 0.0
        %v1604 = vmax.f32 %v1308, 0.0
        %v1605 = vmax.f32 %v1310, 0.0
        %v1606 = vmax.f32 %v871, 0.0
        %v1607 = vmax.f32 %v873, 0.0
        %v1608 = vmax.f32 %v1314, 0.0
        %v1609 = vmax.f32 %v1316, 0.0
        %v1610 = vmax.f32 %v877, 0.0
        %v1611 = vmax.f32 %v879, 0.0
        %v1612 = vmax.f32 %v1320, 0.0
        %v1613 = vmax.f32 %v1322, 0.0
        %v1614 = vmax.f32 %v883, 0.0
        %v1615 = vmax.f32 %v885, 0.0
        %v1616 = vmax.f32 %v1326, 0.0
        %v1617 = vmax.f32 %v1328, 0.0
        %v1618 = vmax.f32 %v889, 0.0
        %v1619 = vmax.f32 %v891, 0.0
        %v1620 = vmax.f32 %v1332, 0.0
        %v1621 = vmax.f32 %v1334, 0.0
        %v1622 = vmax.f32 %v895, 0.0
        %v1623 = vmax.f32 %v897, 0.0
        %v1624 = vmax.f32 %v1338, 0.0
        %v1625 = vmax.f32 %v1340, 0.0
        %v1626 = vmax.f32 %v901, 0.0
        %v1627 = vmax.f32 %v903, 0.0
        %v1628 = vmax.f32 %v1344, 0.0
        %v1629 = vmax.f32 %v1346, 0.0
        %v1630 = vmax.f32 %v907, 0.0
        %v1631 = vmax.f32 %v909, 0.0
        %v1632 = vmax.f32 %v1350, 0.0
        %v1633 = vmax.f32 %v1352, 0.0
        %v1634 = vmax.f32 %v913, 0.0
        %v1635 = vmax.f32 %v915, 0.0
        %v1636 = vmax.f32 %v1356, 0.0
        %v1637 = vmax.f32 %v1358, 0.0
        %v1638 = vmax.f32 %v919, 0.0
        %v1639 = vmax.f32 %v921, 0.0
        %v1640 = vmax.f32 %v1362, 0.0
        %v1641 = vmax.f32 %v1364, 0.0
        %v1642 = vmax.f32 %v925, 0.0
        %v1643 = vmax.f32 %v927, 0.0
        %v1644 = vmax.f32 %v1368, 0.0
        %v1645 = vmax.f32 %v1370, 0.0
        %v1646 = vmax.f32 %v931, 0.0
        %v1647 = vmax.f32 %v933, 0.0
        %v1648 = vmax.f32 %v1374, 0.0
        %v1649 = vmax.f32 %v1376, 0.0
        %v1650 = vmax.f32 %v937, 0.0
        %v1651 = vmax.f32 %v939, 0.0
        %v1652 = vmax.f32 %v1380, 0.0
        %v1653 = vmax.f32 %v1382, 0.0
        %v1654 = vmax.f32 %v943, 0.0
        %v1655 = vmax.f32 %v945, 0.0
        %v1656 = vmax.f32 %v1386, 0.0
        %v1657 = vmax.f32 %v1388, 0.0
        %v1658 = vmax.f32 %v949, 0.0
        %v1659 = vmax.f32 %v951, 0.0
        %v1660 = vmax.f32 %v1392, 0.0
        %v1661 = vmax.f32 %v1394, 0.0
        %v1662 = vmax.f32 %v955, 0.0
        %v1663 = vmax.f32 %v957, 0.0
        %v1664 = vmax.f32 %v1398, 0.0
        %v1665 = vmax.f32 %v1400, 0.0
        %v1666 = vmax.f32 %v961, 0.0
        %v1667 = vmax.f32 %v963, 0.0
        %v1668 = vmax.f32 %v1404, 0.0
        %v1669 = vmax.f32 %v1406, 0.0
        %v1670 = vmax.f32 %v967, 0.0
        %v1671 = vmax.f32 %v969, 0.0
        %v1672 = vmax.f32 %v1410, 0.0
        %v1673 = vmax.f32 %v1412, 0.0
        %v1674 = vmax.f32 %v973, 0.0
        %v1675 = vmax.f32 %v975, 0.0
        %v1676 = vmax.f32 %v1416, 0.0
        %v1677 = vmax.f32 %v1418, 0.0
        %v1678 = vmax.f32 %v979, 0.0
        %v1679 = vmax.f32 %v981, 0.0
        %v1680 = vmax.f32 %v1422, 0.0
        %v1681 = vmax.f32 %v1424, 0.0
        %v1682 = vmax.f32 %v985, 0.0
        %v1683 = vmax.f32 %v987, 0.0
        %v1684 = vmax.f32 %v1428, 0.0
        %v1685 = vmax.f32 %v1430, 0.0
        %v1686 = vmax.f32 %v991, 0.0
        %v1687 = vmax.f32 %v993, 0.0
        %v1688 = vmax.f32 %v1434, 0.0
        %v1689 = vmax.f32 %v1436, 0.0
        %s1690 = sld [smem:[#allocation6]]
        %s1691 = sld [smem:[#allocation2]]
        %v1692 = vstv %s1691
        %v1693 = vmul.f32 %v1692, %v1438
        %v1694 = vmul.f32 %v1692, %v1439
        %v1695 = vmul.f32 %v1692, %v1440
        %v1696 = vmul.f32 %v1692, %v1441
        %v1697 = vmul.f32 %v1692, %v1442
        %v1698 = vmul.f32 %v1692, %v1443
        %v1699 = vmul.f32 %v1692, %v1444
        %v1700 = vmul.f32 %v1692, %v1445
        %v1701 = vmul.f32 %v1692, %v1446
        %v1702 = vmul.f32 %v1692, %v1447
        %v1703 = vmul.f32 %v1692, %v1448
        %v1704 = vmul.f32 %v1692, %v1449
        %v1705 = vmul.f32 %v1692, %v1450
        %v1706 = vmul.f32 %v1692, %v1451
        %v1707 = vmul.f32 %v1692, %v1452
        %v1708 = vmul.f32 %v1692, %v1453
        %v1709 = vmul.f32 %v1692, %v1454
        %v1710 = vmul.f32 %v1692, %v1455
        %v1711 = vmul.f32 %v1692, %v1456
        %v1712 = vmul.f32 %v1692, %v1457
        %v1713 = vmul.f32 %v1692, %v1458
        %v1714 = vmul.f32 %v1692, %v1459
        %v1715 = vmul.f32 %v1692, %v1460
        %v1716 = vmul.f32 %v1692, %v1461
        %v1717 = vmul.f32 %v1692, %v1462
        %v1718 = vmul.f32 %v1692, %v1463
        %v1719 = vmul.f32 %v1692, %v1464
        %v1720 = vmul.f32 %v1692, %v1465
        %v1721 = vmul.f32 %v1692, %v1466
        %v1722 = vmul.f32 %v1692, %v1467
        %v1723 = vmul.f32 %v1692, %v1468
        %v1724 = vmul.f32 %v1692, %v1469
        %v1725 = vmul.f32 %v1692, %v1470
        %v1726 = vmul.f32 %v1692, %v1471
        %v1727 = vmul.f32 %v1692, %v1472
        %v1728 = vmul.f32 %v1692, %v1473
        %v1729 = vmul.f32 %v1692, %v1474
        %v1730 = vmul.f32 %v1692, %v1475
        %v1731 = vmul.f32 %v1692, %v1476
        %v1732 = vmul.f32 %v1692, %v1477
        %v1733 = vmul.f32 %v1692, %v1478
        %v1734 = vmul.f32 %v1692, %v1479
        %v1735 = vmul.f32 %v1692, %v1480
        %v1736 = vmul.f32 %v1692, %v1481
        %v1737 = vmul.f32 %v1692, %v1482
        %v1738 = vmul.f32 %v1692, %v1483
        %v1739 = vmul.f32 %v1692, %v1484
        %v1740 = vmul.f32 %v1692, %v1485
        %v1741 = vmul.f32 %v1692, %v1486
        %v1742 = vmul.f32 %v1692, %v1487
        %v1743 = vmul.f32 %v1692, %v1488
        %v1744 = vmul.f32 %v1692, %v1489
        %v1745 = vmul.f32 %v1692, %v1490
        %v1746 = vmul.f32 %v1692, %v1491
        %v1747 = vmul.f32 %v1692, %v1492
        %v1748 = vmul.f32 %v1692, %v1493
        %v1749 = vmul.f32 %v1692, %v1494
        %v1750 = vmul.f32 %v1692, %v1495
        %v1751 = vmul.f32 %v1692, %v1496
        %v1752 = vmul.f32 %v1692, %v1497
        %v1753 = vmul.f32 %v1692, %v1498
        %v1754 = vmul.f32 %v1692, %v1499
        %v1755 = vmul.f32 %v1692, %v1500
        %v1756 = vmul.f32 %v1692, %v1501
        %v1757 = vmul.f32 %v1692, %v1502
        %v1758 = vmul.f32 %v1692, %v1503
        %v1759 = vmul.f32 %v1692, %v1504
        %v1760 = vmul.f32 %v1692, %v1505
        %v1761 = vmul.f32 %v1692, %v1506
        %v1762 = vmul.f32 %v1692, %v1507
        %v1763 = vmul.f32 %v1692, %v1508
        %v1764 = vmul.f32 %v1692, %v1509
        %v1765 = vmul.f32 %v1692, %v1510
        %v1766 = vmul.f32 %v1692, %v1511
        %v1767 = vmul.f32 %v1692, %v1512
        %v1768 = vmul.f32 %v1692, %v1513
        %v1769 = vmul.f32 %v1692, %v1514
        %v1770 = vmul.f32 %v1692, %v1515
        %v1771 = vmul.f32 %v1692, %v1516
        %v1772 = vmul.f32 %v1692, %v1517
        %v1773 = vmul.f32 %v1692, %v1518
        %v1774 = vmul.f32 %v1692, %v1519
        %v1775 = vmul.f32 %v1692, %v1520
        %v1776 = vmul.f32 %v1692, %v1521
        %v1777 = vmul.f32 %v1692, %v1522
        %v1778 = vmul.f32 %v1692, %v1523
        %v1779 = vmul.f32 %v1692, %v1524
        %v1780 = vmul.f32 %v1692, %v1525
        %v1781 = vmul.f32 %v1692, %v1526
        %v1782 = vmul.f32 %v1692, %v1527
        %v1783 = vmul.f32 %v1692, %v1528
        %v1784 = vmul.f32 %v1692, %v1529
        %v1785 = vmul.f32 %v1692, %v1530
        %v1786 = vmul.f32 %v1692, %v1531
        %v1787 = vmul.f32 %v1692, %v1532
        %v1788 = vmul.f32 %v1692, %v1533
        %v1789 = vmul.f32 %v1692, %v1534
        %v1790 = vmul.f32 %v1692, %v1535
        %v1791 = vmul.f32 %v1692, %v1536
        %v1792 = vmul.f32 %v1692, %v1537
        %v1793 = vmul.f32 %v1692, %v1538
        %v1794 = vmul.f32 %v1692, %v1539
        %v1795 = vmul.f32 %v1692, %v1540
        %v1796 = vmul.f32 %v1692, %v1541
        %v1797 = vmul.f32 %v1692, %v1542
        %v1798 = vmul.f32 %v1692, %v1543
        %v1799 = vmul.f32 %v1692, %v1544
        %v1800 = vmul.f32 %v1692, %v1545
        %v1801 = vmul.f32 %v1692, %v1546
        %v1802 = vmul.f32 %v1692, %v1547
        %v1803 = vmul.f32 %v1692, %v1548
        %v1804 = vmul.f32 %v1692, %v1549
        %v1805 = vmul.f32 %v1692, %v1550
        %v1806 = vmul.f32 %v1692, %v1551
        %v1807 = vmul.f32 %v1692, %v1552
        %v1808 = vmul.f32 %v1692, %v1553
        %v1809 = vmul.f32 %v1692, %v1554
        %v1810 = vmul.f32 %v1692, %v1555
        %v1811 = vmul.f32 %v1692, %v1556
        %v1812 = vmul.f32 %v1692, %v1557
        %v1813 = vmul.f32 %v1692, %v1558
        %v1814 = vmul.f32 %v1692, %v1559
        %v1815 = vmul.f32 %v1692, %v1560
        %v1816 = vmul.f32 %v1692, %v1561
        %v1817 = vmul.f32 %v1692, %v1562
        %v1818 = vmul.f32 %v1692, %v1563
        %v1819 = vmul.f32 %v1692, %v1564
        %v1820 = vmul.f32 %v1692, %v1565
        %v1821 = vmul.f32 %v1692, %v1566
        %v1822 = vmul.f32 %v1692, %v1567
        %v1823 = vmul.f32 %v1692, %v1568
        %v1824 = vmul.f32 %v1692, %v1569
        %v1825 = vmul.f32 %v1692, %v1570
        %v1826 = vmul.f32 %v1692, %v1571
        %v1827 = vmul.f32 %v1692, %v1572
        %v1828 = vmul.f32 %v1692, %v1573
        %v1829 = vmul.f32 %v1692, %v1574
        %v1830 = vmul.f32 %v1692, %v1575
        %v1831 = vmul.f32 %v1692, %v1576
        %v1832 = vmul.f32 %v1692, %v1577
        %v1833 = vmul.f32 %v1692, %v1578
        %v1834 = vmul.f32 %v1692, %v1579
        %v1835 = vmul.f32 %v1692, %v1580
        %v1836 = vmul.f32 %v1692, %v1581
        %v1837 = vmul.f32 %v1692, %v1582
        %v1838 = vmul.f32 %v1692, %v1583
        %v1839 = vmul.f32 %v1692, %v1584
        %v1840 = vmul.f32 %v1692, %v1585
        %v1841 = vmul.f32 %v1692, %v1586
        %v1842 = vmul.f32 %v1692, %v1587
        %v1843 = vmul.f32 %v1692, %v1588
        %v1844 = vmul.f32 %v1692, %v1589
        %v1845 = vmul.f32 %v1692, %v1590
        %v1846 = vmul.f32 %v1692, %v1591
        %v1847 = vmul.f32 %v1692, %v1592
        %v1848 = vmul.f32 %v1692, %v1593
        %v1849 = vmul.f32 %v1692, %v1594
        %v1850 = vmul.f32 %v1692, %v1595
        %v1851 = vmul.f32 %v1692, %v1596
        %v1852 = vmul.f32 %v1692, %v1597
        %v1853 = vmul.f32 %v1692, %v1598
        %v1854 = vmul.f32 %v1692, %v1599
        %v1855 = vmul.f32 %v1692, %v1600
        %v1856 = vmul.f32 %v1692, %v1601
        %v1857 = vmul.f32 %v1692, %v1602
        %v1858 = vmul.f32 %v1692, %v1603
        %v1859 = vmul.f32 %v1692, %v1604
        %v1860 = vmul.f32 %v1692, %v1605
        %v1861 = vmul.f32 %v1692, %v1606
        %v1862 = vmul.f32 %v1692, %v1607
        %v1863 = vmul.f32 %v1692, %v1608
        %v1864 = vmul.f32 %v1692, %v1609
        %v1865 = vmul.f32 %v1692, %v1610
        %v1866 = vmul.f32 %v1692, %v1611
        %v1867 = vmul.f32 %v1692, %v1612
        %v1868 = vmul.f32 %v1692, %v1613
        %v1869 = vmul.f32 %v1692, %v1614
        %v1870 = vmul.f32 %v1692, %v1615
        %v1871 = vmul.f32 %v1692, %v1616
        %v1872 = vmul.f32 %v1692, %v1617
        %v1873 = vmul.f32 %v1692, %v1618
        %v1874 = vmul.f32 %v1692, %v1619
        %v1875 = vmul.f32 %v1692, %v1620
        %v1876 = vmul.f32 %v1692, %v1621
        %v1877 = vmul.f32 %v1692, %v1622
        %v1878 = vmul.f32 %v1692, %v1623
        %v1879 = vmul.f32 %v1692, %v1624
        %v1880 = vmul.f32 %v1692, %v1625
        %v1881 = vmul.f32 %v1692, %v1626
        %v1882 = vmul.f32 %v1692, %v1627
        %v1883 = vmul.f32 %v1692, %v1628
        %v1884 = vmul.f32 %v1692, %v1629
        %v1885 = vmul.f32 %v1692, %v1630
        %v1886 = vmul.f32 %v1692, %v1631
        %v1887 = vmul.f32 %v1692, %v1632
        %v1888 = vmul.f32 %v1692, %v1633
        %v1889 = vmul.f32 %v1692, %v1634
        %v1890 = vmul.f32 %v1692, %v1635
        %v1891 = vmul.f32 %v1692, %v1636
        %v1892 = vmul.f32 %v1692, %v1637
        %v1893 = vmul.f32 %v1692, %v1638
        %v1894 = vmul.f32 %v1692, %v1639
        %v1895 = vmul.f32 %v1692, %v1640
        %v1896 = vmul.f32 %v1692, %v1641
        %v1897 = vmul.f32 %v1692, %v1642
        %v1898 = vmul.f32 %v1692, %v1643
        %v1899 = vmul.f32 %v1692, %v1644
        %v1900 = vmul.f32 %v1692, %v1645
        %v1901 = vmul.f32 %v1692, %v1646
        %v1902 = vmul.f32 %v1692, %v1647
        %v1903 = vmul.f32 %v1692, %v1648
        %v1904 = vmul.f32 %v1692, %v1649
        %v1905 = vmul.f32 %v1692, %v1650
        %v1906 = vmul.f32 %v1692, %v1651
        %v1907 = vmul.f32 %v1692, %v1652
        %v1908 = vmul.f32 %v1692, %v1653
        %v1909 = vmul.f32 %v1692, %v1654
        %v1910 = vmul.f32 %v1692, %v1655
        %v1911 = vmul.f32 %v1692, %v1656
        %v1912 = vmul.f32 %v1692, %v1657
        %v1913 = vmul.f32 %v1692, %v1658
        %v1914 = vmul.f32 %v1692, %v1659
        %v1915 = vmul.f32 %v1692, %v1660
        %v1916 = vmul.f32 %v1692, %v1661
        %v1917 = vmul.f32 %v1692, %v1662
        %v1918 = vmul.f32 %v1692, %v1663
        %v1919 = vmul.f32 %v1692, %v1664
        %v1920 = vmul.f32 %v1692, %v1665
        %v1921 = vmul.f32 %v1692, %v1666
        %v1922 = vmul.f32 %v1692, %v1667
        %v1923 = vmul.f32 %v1692, %v1668
        %v1924 = vmul.f32 %v1692, %v1669
        %v1925 = vmul.f32 %v1692, %v1670
        %v1926 = vmul.f32 %v1692, %v1671
        %v1927 = vmul.f32 %v1692, %v1672
        %v1928 = vmul.f32 %v1692, %v1673
        %v1929 = vmul.f32 %v1692, %v1674
        %v1930 = vmul.f32 %v1692, %v1675
        %v1931 = vmul.f32 %v1692, %v1676
        %v1932 = vmul.f32 %v1692, %v1677
        %v1933 = vmul.f32 %v1692, %v1678
        %v1934 = vmul.f32 %v1692, %v1679
        %v1935 = vmul.f32 %v1692, %v1680
        %v1936 = vmul.f32 %v1692, %v1681
        %v1937 = vmul.f32 %v1692, %v1682
        %v1938 = vmul.f32 %v1692, %v1683
        %v1939 = vmul.f32 %v1692, %v1684
        %v1940 = vmul.f32 %v1692, %v1685
        %v1941 = vmul.f32 %v1692, %v1686
        %v1942 = vmul.f32 %v1692, %v1687
        %v1943 = vmul.f32 %v1692, %v1688
        %v1944 = vmul.f32 %v1692, %v1689
        %v1945 = vmul.f32 %v1693, 1.442695
        %v1946 = vpow.pop %v1945
        %v1947 = vmul.f32 %v1694, 1.442695
        %v1948 = vpow.pop %v1947
        %v1949 = vmul.f32 %v1695, 1.442695
        %v1950 = vpow.pop %v1949
        %v1951 = vmul.f32 %v1696, 1.442695
        %v1952 = vpow.pop %v1951
        %v1953 = vmul.f32 %v1697, 1.442695
        %v1954 = vpow.pop %v1953
        %v1955 = vmul.f32 %v1698, 1.442695
        %v1956 = vpow.pop %v1955
        %v1957 = vmul.f32 %v1699, 1.442695
        %v1958 = vpow.pop %v1957
        %v1959 = vmul.f32 %v1700, 1.442695
        %v1960 = vpow.pop %v1959
        %v1961 = vmul.f32 %v1701, 1.442695
        %v1962 = vpow.pop %v1961
        %v1963 = vmul.f32 %v1702, 1.442695
        %v1964 = vpow.pop %v1963
        %v1965 = vmul.f32 %v1703, 1.442695
        %v1966 = vpow.pop %v1965
        %v1967 = vmul.f32 %v1704, 1.442695
        %v1968 = vpow.pop %v1967
        %v1969 = vmul.f32 %v1705, 1.442695
        %v1970 = vpow.pop %v1969
        %v1971 = vmul.f32 %v1706, 1.442695
        %v1972 = vpow.pop %v1971
        %v1973 = vmul.f32 %v1707, 1.442695
        %v1974 = vpow.pop %v1973
        %v1975 = vmul.f32 %v1708, 1.442695
        %v1976 = vpow.pop %v1975
        %v1977 = vmul.f32 %v1709, 1.442695
        %v1978 = vpow.pop %v1977
        %v1979 = vmul.f32 %v1710, 1.442695
        %v1980 = vpow.pop %v1979
        %v1981 = vmul.f32 %v1711, 1.442695
        %v1982 = vpow.pop %v1981
        %v1983 = vmul.f32 %v1712, 1.442695
        %v1984 = vpow.pop %v1983
        %v1985 = vmul.f32 %v1713, 1.442695
        %v1986 = vpow.pop %v1985
        %v1987 = vmul.f32 %v1714, 1.442695
        %v1988 = vpow.pop %v1987
        %v1989 = vmul.f32 %v1715, 1.442695
        %v1990 = vpow.pop %v1989
        %v1991 = vmul.f32 %v1716, 1.442695
        %v1992 = vpow.pop %v1991
        %v1993 = vmul.f32 %v1717, 1.442695
        %v1994 = vpow.pop %v1993
        %v1995 = vmul.f32 %v1718, 1.442695
        %v1996 = vpow.pop %v1995
        %v1997 = vmul.f32 %v1719, 1.442695
        %v1998 = vpow.pop %v1997
        %v1999 = vmul.f32 %v1720, 1.442695
        %v2000 = vpow.pop %v1999
        %v2001 = vmul.f32 %v1721, 1.442695
        %v2002 = vpow.pop %v2001
        %v2003 = vmul.f32 %v1722, 1.442695
        %v2004 = vpow.pop %v2003
        %v2005 = vmul.f32 %v1723, 1.442695
        %v2006 = vpow.pop %v2005
        %v2007 = vmul.f32 %v1724, 1.442695
        %v2008 = vpow.pop %v2007
        %v2009 = vmul.f32 %v1725, 1.442695
        %v2010 = vpow.pop %v2009
        %v2011 = vmul.f32 %v1726, 1.442695
        %v2012 = vpow.pop %v2011
        %v2013 = vmul.f32 %v1727, 1.442695
        %v2014 = vpow.pop %v2013
        %v2015 = vmul.f32 %v1728, 1.442695
        %v2016 = vpow.pop %v2015
        %v2017 = vmul.f32 %v1729, 1.442695
        %v2018 = vpow.pop %v2017
        %v2019 = vmul.f32 %v1730, 1.442695
        %v2020 = vpow.pop %v2019
        %v2021 = vmul.f32 %v1731, 1.442695
        %v2022 = vpow.pop %v2021
        %v2023 = vmul.f32 %v1732, 1.442695
        %v2024 = vpow.pop %v2023
        %v2025 = vmul.f32 %v1733, 1.442695
        %v2026 = vpow.pop %v2025
        %v2027 = vmul.f32 %v1734, 1.442695
        %v2028 = vpow.pop %v2027
        %v2029 = vmul.f32 %v1735, 1.442695
        %v2030 = vpow.pop %v2029
        %v2031 = vmul.f32 %v1736, 1.442695
        %v2032 = vpow.pop %v2031
        %v2033 = vmul.f32 %v1737, 1.442695
        %v2034 = vpow.pop %v2033
        %v2035 = vmul.f32 %v1738, 1.442695
        %v2036 = vpow.pop %v2035
        %v2037 = vmul.f32 %v1739, 1.442695
        %v2038 = vpow.pop %v2037
        %v2039 = vmul.f32 %v1740, 1.442695
        %v2040 = vpow.pop %v2039
        %v2041 = vmul.f32 %v1741, 1.442695
        %v2042 = vpow.pop %v2041
        %v2043 = vmul.f32 %v1742, 1.442695
        %v2044 = vpow.pop %v2043
        %v2045 = vmul.f32 %v1743, 1.442695
        %v2046 = vpow.pop %v2045
        %v2047 = vmul.f32 %v1744, 1.442695
        %v2048 = vpow.pop %v2047
        %v2049 = vmul.f32 %v1745, 1.442695
        %v2050 = vpow.pop %v2049
        %v2051 = vmul.f32 %v1746, 1.442695
        %v2052 = vpow.pop %v2051
        %v2053 = vmul.f32 %v1747, 1.442695
        %v2054 = vpow.pop %v2053
        %v2055 = vmul.f32 %v1748, 1.442695
        %v2056 = vpow.pop %v2055
        %v2057 = vmul.f32 %v1749, 1.442695
        %v2058 = vpow.pop %v2057
        %v2059 = vmul.f32 %v1750, 1.442695
        %v2060 = vpow.pop %v2059
        %v2061 = vmul.f32 %v1751, 1.442695
        %v2062 = vpow.pop %v2061
        %v2063 = vmul.f32 %v1752, 1.442695
        %v2064 = vpow.pop %v2063
        %v2065 = vmul.f32 %v1753, 1.442695
        %v2066 = vpow.pop %v2065
        %v2067 = vmul.f32 %v1754, 1.442695
        %v2068 = vpow.pop %v2067
        %v2069 = vmul.f32 %v1755, 1.442695
        %v2070 = vpow.pop %v2069
        %v2071 = vmul.f32 %v1756, 1.442695
        %v2072 = vpow.pop %v2071
        %v2073 = vmul.f32 %v1757, 1.442695
        %v2074 = vpow.pop %v2073
        %v2075 = vmul.f32 %v1758, 1.442695
        %v2076 = vpow.pop %v2075
        %v2077 = vmul.f32 %v1759, 1.442695
        %v2078 = vpow.pop %v2077
        %v2079 = vmul.f32 %v1760, 1.442695
        %v2080 = vpow.pop %v2079
        %v2081 = vmul.f32 %v1761, 1.442695
        %v2082 = vpow.pop %v2081
        %v2083 = vmul.f32 %v1762, 1.442695
        %v2084 = vpow.pop %v2083
        %v2085 = vmul.f32 %v1763, 1.442695
        %v2086 = vpow.pop %v2085
        %v2087 = vmul.f32 %v1764, 1.442695
        %v2088 = vpow.pop %v2087
        %v2089 = vmul.f32 %v1765, 1.442695
        %v2090 = vpow.pop %v2089
        %v2091 = vmul.f32 %v1766, 1.442695
        %v2092 = vpow.pop %v2091
        %v2093 = vmul.f32 %v1767, 1.442695
        %v2094 = vpow.pop %v2093
        %v2095 = vmul.f32 %v1768, 1.442695
        %v2096 = vpow.pop %v2095
        %v2097 = vmul.f32 %v1769, 1.442695
        %v2098 = vpow.pop %v2097
        %v2099 = vmul.f32 %v1770, 1.442695
        %v2100 = vpow.pop %v2099
        %v2101 = vmul.f32 %v1771, 1.442695
        %v2102 = vpow.pop %v2101
        %v2103 = vmul.f32 %v1772, 1.442695
        %v2104 = vpow.pop %v2103
        %v2105 = vmul.f32 %v1773, 1.442695
        %v2106 = vpow.pop %v2105
        %v2107 = vmul.f32 %v1774, 1.442695
        %v2108 = vpow.pop %v2107
        %v2109 = vmul.f32 %v1775, 1.442695
        %v2110 = vpow.pop %v2109
        %v2111 = vmul.f32 %v1776, 1.442695
        %v2112 = vpow.pop %v2111
        %v2113 = vmul.f32 %v1777, 1.442695
        %v2114 = vpow.pop %v2113
        %v2115 = vmul.f32 %v1778, 1.442695
        %v2116 = vpow.pop %v2115
        %v2117 = vmul.f32 %v1779, 1.442695
        %v2118 = vpow.pop %v2117
        %v2119 = vmul.f32 %v1780, 1.442695
        %v2120 = vpow.pop %v2119
        %v2121 = vmul.f32 %v1781, 1.442695
        %v2122 = vpow.pop %v2121
        %v2123 = vmul.f32 %v1782, 1.442695
        %v2124 = vpow.pop %v2123
        %v2125 = vmul.f32 %v1783, 1.442695
        %v2126 = vpow.pop %v2125
        %v2127 = vmul.f32 %v1784, 1.442695
        %v2128 = vpow.pop %v2127
        %v2129 = vmul.f32 %v1785, 1.442695
        %v2130 = vpow.pop %v2129
        %v2131 = vmul.f32 %v1786, 1.442695
        %v2132 = vpow.pop %v2131
        %v2133 = vmul.f32 %v1787, 1.442695
        %v2134 = vpow.pop %v2133
        %v2135 = vmul.f32 %v1788, 1.442695
        %v2136 = vpow.pop %v2135
        %v2137 = vmul.f32 %v1789, 1.442695
        %v2138 = vpow.pop %v2137
        %v2139 = vmul.f32 %v1790, 1.442695
        %v2140 = vpow.pop %v2139
        %v2141 = vmul.f32 %v1791, 1.442695
        %v2142 = vpow.pop %v2141
        %v2143 = vmul.f32 %v1792, 1.442695
        %v2144 = vpow.pop %v2143
        %v2145 = vmul.f32 %v1793, 1.442695
        %v2146 = vpow.pop %v2145
        %v2147 = vmul.f32 %v1794, 1.442695
        %v2148 = vpow.pop %v2147
        %v2149 = vmul.f32 %v1795, 1.442695
        %v2150 = vpow.pop %v2149
        %v2151 = vmul.f32 %v1796, 1.442695
        %v2152 = vpow.pop %v2151
        %v2153 = vmul.f32 %v1797, 1.442695
        %v2154 = vpow.pop %v2153
        %v2155 = vmul.f32 %v1798, 1.442695
        %v2156 = vpow.pop %v2155
        %v2157 = vmul.f32 %v1799, 1.442695
        %v2158 = vpow.pop %v2157
        %v2159 = vmul.f32 %v1800, 1.442695
        %v2160 = vpow.pop %v2159
        %v2161 = vmul.f32 %v1801, 1.442695
        %v2162 = vpow.pop %v2161
        %v2163 = vmul.f32 %v1802, 1.442695
        %v2164 = vpow.pop %v2163
        %v2165 = vmul.f32 %v1803, 1.442695
        %v2166 = vpow.pop %v2165
        %v2167 = vmul.f32 %v1804, 1.442695
        %v2168 = vpow.pop %v2167
        %v2169 = vmul.f32 %v1805, 1.442695
        %v2170 = vpow.pop %v2169
        %v2171 = vmul.f32 %v1806, 1.442695
        %v2172 = vpow.pop %v2171
        %v2173 = vmul.f32 %v1807, 1.442695
        %v2174 = vpow.pop %v2173
        %v2175 = vmul.f32 %v1808, 1.442695
        %v2176 = vpow.pop %v2175
        %v2177 = vmul.f32 %v1809, 1.442695
        %v2178 = vpow.pop %v2177
        %v2179 = vmul.f32 %v1810, 1.442695
        %v2180 = vpow.pop %v2179
        %v2181 = vmul.f32 %v1811, 1.442695
        %v2182 = vpow.pop %v2181
        %v2183 = vmul.f32 %v1812, 1.442695
        %v2184 = vpow.pop %v2183
        %v2185 = vmul.f32 %v1813, 1.442695
        %v2186 = vpow.pop %v2185
        %v2187 = vmul.f32 %v1814, 1.442695
        %v2188 = vpow.pop %v2187
        %v2189 = vmul.f32 %v1815, 1.442695
        %v2190 = vpow.pop %v2189
        %v2191 = vmul.f32 %v1816, 1.442695
        %v2192 = vpow.pop %v2191
        %v2193 = vmul.f32 %v1817, 1.442695
        %v2194 = vpow.pop %v2193
        %v2195 = vmul.f32 %v1818, 1.442695
        %v2196 = vpow.pop %v2195
        %v2197 = vmul.f32 %v1819, 1.442695
        %v2198 = vpow.pop %v2197
        %v2199 = vmul.f32 %v1820, 1.442695
        %v2200 = vpow.pop %v2199
        %v2201 = vmul.f32 %v1821, 1.442695
        %v2202 = vpow.pop %v2201
        %v2203 = vmul.f32 %v1822, 1.442695
        %v2204 = vpow.pop %v2203
        %v2205 = vmul.f32 %v1823, 1.442695
        %v2206 = vpow.pop %v2205
        %v2207 = vmul.f32 %v1824, 1.442695
        %v2208 = vpow.pop %v2207
        %v2209 = vmul.f32 %v1825, 1.442695
        %v2210 = vpow.pop %v2209
        %v2211 = vmul.f32 %v1826, 1.442695
        %v2212 = vpow.pop %v2211
        %v2213 = vmul.f32 %v1827, 1.442695
        %v2214 = vpow.pop %v2213
        %v2215 = vmul.f32 %v1828, 1.442695
        %v2216 = vpow.pop %v2215
        %v2217 = vmul.f32 %v1829, 1.442695
        %v2218 = vpow.pop %v2217
        %v2219 = vmul.f32 %v1830, 1.442695
        %v2220 = vpow.pop %v2219
        %v2221 = vmul.f32 %v1831, 1.442695
        %v2222 = vpow.pop %v2221
        %v2223 = vmul.f32 %v1832, 1.442695
        %v2224 = vpow.pop %v2223
        %v2225 = vmul.f32 %v1833, 1.442695
        %v2226 = vpow.pop %v2225
        %v2227 = vmul.f32 %v1834, 1.442695
        %v2228 = vpow.pop %v2227
        %v2229 = vmul.f32 %v1835, 1.442695
        %v2230 = vpow.pop %v2229
        %v2231 = vmul.f32 %v1836, 1.442695
        %v2232 = vpow.pop %v2231
        %v2233 = vmul.f32 %v1837, 1.442695
        %v2234 = vpow.pop %v2233
        %v2235 = vmul.f32 %v1838, 1.442695
        %v2236 = vpow.pop %v2235
        %v2237 = vmul.f32 %v1839, 1.442695
        %v2238 = vpow.pop %v2237
        %v2239 = vmul.f32 %v1840, 1.442695
        %v2240 = vpow.pop %v2239
        %v2241 = vmul.f32 %v1841, 1.442695
        %v2242 = vpow.pop %v2241
        %v2243 = vmul.f32 %v1842, 1.442695
        %v2244 = vpow.pop %v2243
        %v2245 = vmul.f32 %v1843, 1.442695
        %v2246 = vpow.pop %v2245
        %v2247 = vmul.f32 %v1844, 1.442695
        %v2248 = vpow.pop %v2247
        %v2249 = vmul.f32 %v1845, 1.442695
        %v2250 = vpow.pop %v2249
        %v2251 = vmul.f32 %v1846, 1.442695
        %v2252 = vpow.pop %v2251
        %v2253 = vmul.f32 %v1847, 1.442695
        %v2254 = vpow.pop %v2253
        %v2255 = vmul.f32 %v1848, 1.442695
        %v2256 = vpow.pop %v2255
        %v2257 = vmul.f32 %v1849, 1.442695
        %v2258 = vpow.pop %v2257
        %v2259 = vmul.f32 %v1850, 1.442695
        %v2260 = vpow.pop %v2259
        %v2261 = vmul.f32 %v1851, 1.442695
        %v2262 = vpow.pop %v2261
        %v2263 = vmul.f32 %v1852, 1.442695
        %v2264 = vpow.pop %v2263
        %v2265 = vmul.f32 %v1853, 1.442695
        %v2266 = vpow.pop %v2265
        %v2267 = vmul.f32 %v1854, 1.442695
        %v2268 = vpow.pop %v2267
        %v2269 = vmul.f32 %v1855, 1.442695
        %v2270 = vpow.pop %v2269
        %v2271 = vmul.f32 %v1856, 1.442695
        %v2272 = vpow.pop %v2271
        %v2273 = vmul.f32 %v1857, 1.442695
        %v2274 = vpow.pop %v2273
        %v2275 = vmul.f32 %v1858, 1.442695
        %v2276 = vpow.pop %v2275
        %v2277 = vmul.f32 %v1859, 1.442695
        %v2278 = vpow.pop %v2277
        %v2279 = vmul.f32 %v1860, 1.442695
        %v2280 = vpow.pop %v2279
        %v2281 = vmul.f32 %v1861, 1.442695
        %v2282 = vpow.pop %v2281
        %v2283 = vmul.f32 %v1862, 1.442695
        %v2284 = vpow.pop %v2283
        %v2285 = vmul.f32 %v1863, 1.442695
        %v2286 = vpow.pop %v2285
        %v2287 = vmul.f32 %v1864, 1.442695
        %v2288 = vpow.pop %v2287
        %v2289 = vmul.f32 %v1865, 1.442695
        %v2290 = vpow.pop %v2289
        %v2291 = vmul.f32 %v1866, 1.442695
        %v2292 = vpow.pop %v2291
        %v2293 = vmul.f32 %v1867, 1.442695
        %v2294 = vpow.pop %v2293
        %v2295 = vmul.f32 %v1868, 1.442695
        %v2296 = vpow.pop %v2295
        %v2297 = vmul.f32 %v1869, 1.442695
        %v2298 = vpow.pop %v2297
        %v2299 = vmul.f32 %v1870, 1.442695
        %v2300 = vpow.pop %v2299
        %v2301 = vmul.f32 %v1871, 1.442695
        %v2302 = vpow.pop %v2301
        %v2303 = vmul.f32 %v1872, 1.442695
        %v2304 = vpow.pop %v2303
        %v2305 = vmul.f32 %v1873, 1.442695
        %v2306 = vpow.pop %v2305
        %v2307 = vmul.f32 %v1874, 1.442695
        %v2308 = vpow.pop %v2307
        %v2309 = vmul.f32 %v1875, 1.442695
        %v2310 = vpow.pop %v2309
        %v2311 = vmul.f32 %v1876, 1.442695
        %v2312 = vpow.pop %v2311
        %v2313 = vmul.f32 %v1877, 1.442695
        %v2314 = vpow.pop %v2313
        %v2315 = vmul.f32 %v1878, 1.442695
        %v2316 = vpow.pop %v2315
        %v2317 = vmul.f32 %v1879, 1.442695
        %v2318 = vpow.pop %v2317
        %v2319 = vmul.f32 %v1880, 1.442695
        %v2320 = vpow.pop %v2319
        %v2321 = vmul.f32 %v1881, 1.442695
        %v2322 = vpow.pop %v2321
        %v2323 = vmul.f32 %v1882, 1.442695
        %v2324 = vpow.pop %v2323
        %v2325 = vmul.f32 %v1883, 1.442695
        %v2326 = vpow.pop %v2325
        %v2327 = vmul.f32 %v1884, 1.442695
        %v2328 = vpow.pop %v2327
        %v2329 = vmul.f32 %v1885, 1.442695
        %v2330 = vpow.pop %v2329
        %v2331 = vmul.f32 %v1886, 1.442695
        %v2332 = vpow.pop %v2331
        %v2333 = vmul.f32 %v1887, 1.442695
        %v2334 = vpow.pop %v2333
        %v2335 = vmul.f32 %v1888, 1.442695
        %v2336 = vpow.pop %v2335
        %v2337 = vmul.f32 %v1889, 1.442695
        %v2338 = vpow.pop %v2337
        %v2339 = vmul.f32 %v1890, 1.442695
        %v2340 = vpow.pop %v2339
        %v2341 = vmul.f32 %v1891, 1.442695
        %v2342 = vpow.pop %v2341
        %v2343 = vmul.f32 %v1892, 1.442695
        %v2344 = vpow.pop %v2343
        %v2345 = vmul.f32 %v1893, 1.442695
        %v2346 = vpow.pop %v2345
        %v2347 = vmul.f32 %v1894, 1.442695
        %v2348 = vpow.pop %v2347
        %v2349 = vmul.f32 %v1895, 1.442695
        %v2350 = vpow.pop %v2349
        %v2351 = vmul.f32 %v1896, 1.442695
        %v2352 = vpow.pop %v2351
        %v2353 = vmul.f32 %v1897, 1.442695
        %v2354 = vpow.pop %v2353
        %v2355 = vmul.f32 %v1898, 1.442695
        %v2356 = vpow.pop %v2355
        %v2357 = vmul.f32 %v1899, 1.442695
        %v2358 = vpow.pop %v2357
        %v2359 = vmul.f32 %v1900, 1.442695
        %v2360 = vpow.pop %v2359
        %v2361 = vmul.f32 %v1901, 1.442695
        %v2362 = vpow.pop %v2361
        %v2363 = vmul.f32 %v1902, 1.442695
        %v2364 = vpow.pop %v2363
        %v2365 = vmul.f32 %v1903, 1.442695
        %v2366 = vpow.pop %v2365
        %v2367 = vmul.f32 %v1904, 1.442695
        %v2368 = vpow.pop %v2367
        %v2369 = vmul.f32 %v1905, 1.442695
        %v2370 = vpow.pop %v2369
        %v2371 = vmul.f32 %v1906, 1.442695
        %v2372 = vpow.pop %v2371
        %v2373 = vmul.f32 %v1907, 1.442695
        %v2374 = vpow.pop %v2373
        %v2375 = vmul.f32 %v1908, 1.442695
        %v2376 = vpow.pop %v2375
        %v2377 = vmul.f32 %v1909, 1.442695
        %v2378 = vpow.pop %v2377
        %v2379 = vmul.f32 %v1910, 1.442695
        %v2380 = vpow.pop %v2379
        %v2381 = vmul.f32 %v1911, 1.442695
        %v2382 = vpow.pop %v2381
        %v2383 = vmul.f32 %v1912, 1.442695
        %v2384 = vpow.pop %v2383
        %v2385 = vmul.f32 %v1913, 1.442695
        %v2386 = vpow.pop %v2385
        %v2387 = vmul.f32 %v1914, 1.442695
        %v2388 = vpow.pop %v2387
        %v2389 = vmul.f32 %v1915, 1.442695
        %v2390 = vpow.pop %v2389
        %v2391 = vmul.f32 %v1916, 1.442695
        %v2392 = vpow.pop %v2391
        %v2393 = vmul.f32 %v1917, 1.442695
        %v2394 = vpow.pop %v2393
        %v2395 = vmul.f32 %v1918, 1.442695
        %v2396 = vpow.pop %v2395
        %v2397 = vmul.f32 %v1919, 1.442695
        %v2398 = vpow.pop %v2397
        %v2399 = vmul.f32 %v1920, 1.442695
        %v2400 = vpow.pop %v2399
        %v2401 = vmul.f32 %v1921, 1.442695
        %v2402 = vpow.pop %v2401
        %v2403 = vmul.f32 %v1922, 1.442695
        %v2404 = vpow.pop %v2403
        %v2405 = vmul.f32 %v1923, 1.442695
        %v2406 = vpow.pop %v2405
        %v2407 = vmul.f32 %v1924, 1.442695
        %v2408 = vpow.pop %v2407
        %v2409 = vmul.f32 %v1925, 1.442695
        %v2410 = vpow.pop %v2409
        %v2411 = vmul.f32 %v1926, 1.442695
        %v2412 = vpow.pop %v2411
        %v2413 = vmul.f32 %v1927, 1.442695
        %v2414 = vpow.pop %v2413
        %v2415 = vmul.f32 %v1928, 1.442695
        %v2416 = vpow.pop %v2415
        %v2417 = vmul.f32 %v1929, 1.442695
        %v2418 = vpow.pop %v2417
        %v2419 = vmul.f32 %v1930, 1.442695
        %v2420 = vpow.pop %v2419
        %v2421 = vmul.f32 %v1931, 1.442695
        %v2422 = vpow.pop %v2421
        %v2423 = vmul.f32 %v1932, 1.442695
        %v2424 = vpow.pop %v2423
        %v2425 = vmul.f32 %v1933, 1.442695
        %v2426 = vpow.pop %v2425
        %v2427 = vmul.f32 %v1934, 1.442695
        %v2428 = vpow.pop %v2427
        %v2429 = vmul.f32 %v1935, 1.442695
        %v2430 = vpow.pop %v2429
        %v2431 = vmul.f32 %v1936, 1.442695
        %v2432 = vpow.pop %v2431
        %v2433 = vmul.f32 %v1937, 1.442695
        %v2434 = vpow.pop %v2433
        %v2435 = vmul.f32 %v1938, 1.442695
        %v2436 = vpow.pop %v2435
        %v2437 = vmul.f32 %v1939, 1.442695
        %v2438 = vpow.pop %v2437
        %v2439 = vmul.f32 %v1940, 1.442695
        %v2440 = vpow.pop %v2439
        %v2441 = vmul.f32 %v1941, 1.442695
        %v2442 = vpow.pop %v2441
        %v2443 = vmul.f32 %v1942, 1.442695
        %v2444 = vpow.pop %v2443
        %v2445 = vmul.f32 %v1943, 1.442695
        %v2446 = vpow.pop %v2445
        %v2447 = vmul.f32 %v1944, 1.442695
        %v2448 = vpow.pop %v2447
        %v2449 = vstv %s1690
        %v2450 = vmul.f32 %v2449, %v1946
        %v2451 = vmul.f32 %v2449, %v1948
        %v2452 = vmul.f32 %v2449, %v1950
        %v2453 = vmul.f32 %v2449, %v1952
        %v2454 = vmul.f32 %v2449, %v1954
        %v2455 = vmul.f32 %v2449, %v1956
        %v2456 = vmul.f32 %v2449, %v1958
        %v2457 = vmul.f32 %v2449, %v1960
        %v2458 = vmul.f32 %v2449, %v1962
        %v2459 = vmul.f32 %v2449, %v1964
        %v2460 = vmul.f32 %v2449, %v1966
        %v2461 = vmul.f32 %v2449, %v1968
        %v2462 = vmul.f32 %v2449, %v1970
        %v2463 = vmul.f32 %v2449, %v1972
        %v2464 = vmul.f32 %v2449, %v1974
        %v2465 = vmul.f32 %v2449, %v1976
        %v2466 = vmul.f32 %v2449, %v1978
        %v2467 = vmul.f32 %v2449, %v1980
        %v2468 = vmul.f32 %v2449, %v1982
        %v2469 = vmul.f32 %v2449, %v1984
        %v2470 = vmul.f32 %v2449, %v1986
        %v2471 = vmul.f32 %v2449, %v1988
        %v2472 = vmul.f32 %v2449, %v1990
        %v2473 = vmul.f32 %v2449, %v1992
        %v2474 = vmul.f32 %v2449, %v1994
        %v2475 = vmul.f32 %v2449, %v1996
        %v2476 = vmul.f32 %v2449, %v1998
        %v2477 = vmul.f32 %v2449, %v2000
        %v2478 = vmul.f32 %v2449, %v2002
        %v2479 = vmul.f32 %v2449, %v2004
        %v2480 = vmul.f32 %v2449, %v2006
        %v2481 = vmul.f32 %v2449, %v2008
        %v2482 = vmul.f32 %v2449, %v2010
        %v2483 = vmul.f32 %v2449, %v2012
        %v2484 = vmul.f32 %v2449, %v2014
        %v2485 = vmul.f32 %v2449, %v2016
        %v2486 = vmul.f32 %v2449, %v2018
        %v2487 = vmul.f32 %v2449, %v2020
        %v2488 = vmul.f32 %v2449, %v2022
        %v2489 = vmul.f32 %v2449, %v2024
        %v2490 = vmul.f32 %v2449, %v2026
        %v2491 = vmul.f32 %v2449, %v2028
        %v2492 = vmul.f32 %v2449, %v2030
        %v2493 = vmul.f32 %v2449, %v2032
        %v2494 = vmul.f32 %v2449, %v2034
        %v2495 = vmul.f32 %v2449, %v2036
        %v2496 = vmul.f32 %v2449, %v2038
        %v2497 = vmul.f32 %v2449, %v2040
        %v2498 = vmul.f32 %v2449, %v2042
        %v2499 = vmul.f32 %v2449, %v2044
        %v2500 = vmul.f32 %v2449, %v2046
        %v2501 = vmul.f32 %v2449, %v2048
        %v2502 = vmul.f32 %v2449, %v2050
        %v2503 = vmul.f32 %v2449, %v2052
        %v2504 = vmul.f32 %v2449, %v2054
        %v2505 = vmul.f32 %v2449, %v2056
        %v2506 = vmul.f32 %v2449, %v2058
        %v2507 = vmul.f32 %v2449, %v2060
        %v2508 = vmul.f32 %v2449, %v2062
        %v2509 = vmul.f32 %v2449, %v2064
        %v2510 = vmul.f32 %v2449, %v2066
        %v2511 = vmul.f32 %v2449, %v2068
        %v2512 = vmul.f32 %v2449, %v2070
        %v2513 = vmul.f32 %v2449, %v2072
        %v2514 = vmul.f32 %v2449, %v2074
        %v2515 = vmul.f32 %v2449, %v2076
        %v2516 = vmul.f32 %v2449, %v2078
        %v2517 = vmul.f32 %v2449, %v2080
        %v2518 = vmul.f32 %v2449, %v2082
        %v2519 = vmul.f32 %v2449, %v2084
        %v2520 = vmul.f32 %v2449, %v2086
        %v2521 = vmul.f32 %v2449, %v2088
        %v2522 = vmul.f32 %v2449, %v2090
        %v2523 = vmul.f32 %v2449, %v2092
        %v2524 = vmul.f32 %v2449, %v2094
        %v2525 = vmul.f32 %v2449, %v2096
        %v2526 = vmul.f32 %v2449, %v2098
        %v2527 = vmul.f32 %v2449, %v2100
        %v2528 = vmul.f32 %v2449, %v2102
        %v2529 = vmul.f32 %v2449, %v2104
        %v2530 = vmul.f32 %v2449, %v2106
        %v2531 = vmul.f32 %v2449, %v2108
        %v2532 = vmul.f32 %v2449, %v2110
        %v2533 = vmul.f32 %v2449, %v2112
        %v2534 = vmul.f32 %v2449, %v2114
        %v2535 = vmul.f32 %v2449, %v2116
        %v2536 = vmul.f32 %v2449, %v2118
        %v2537 = vmul.f32 %v2449, %v2120
        %v2538 = vmul.f32 %v2449, %v2122
        %v2539 = vmul.f32 %v2449, %v2124
        %v2540 = vmul.f32 %v2449, %v2126
        %v2541 = vmul.f32 %v2449, %v2128
        %v2542 = vmul.f32 %v2449, %v2130
        %v2543 = vmul.f32 %v2449, %v2132
        %v2544 = vmul.f32 %v2449, %v2134
        %v2545 = vmul.f32 %v2449, %v2136
        %v2546 = vmul.f32 %v2449, %v2138
        %v2547 = vmul.f32 %v2449, %v2140
        %v2548 = vmul.f32 %v2449, %v2142
        %v2549 = vmul.f32 %v2449, %v2144
        %v2550 = vmul.f32 %v2449, %v2146
        %v2551 = vmul.f32 %v2449, %v2148
        %v2552 = vmul.f32 %v2449, %v2150
        %v2553 = vmul.f32 %v2449, %v2152
        %v2554 = vmul.f32 %v2449, %v2154
        %v2555 = vmul.f32 %v2449, %v2156
        %v2556 = vmul.f32 %v2449, %v2158
        %v2557 = vmul.f32 %v2449, %v2160
        %v2558 = vmul.f32 %v2449, %v2162
        %v2559 = vmul.f32 %v2449, %v2164
        %v2560 = vmul.f32 %v2449, %v2166
        %v2561 = vmul.f32 %v2449, %v2168
        %v2562 = vmul.f32 %v2449, %v2170
        %v2563 = vmul.f32 %v2449, %v2172
        %v2564 = vmul.f32 %v2449, %v2174
        %v2565 = vmul.f32 %v2449, %v2176
        %v2566 = vmul.f32 %v2449, %v2178
        %v2567 = vmul.f32 %v2449, %v2180
        %v2568 = vmul.f32 %v2449, %v2182
        %v2569 = vmul.f32 %v2449, %v2184
        %v2570 = vmul.f32 %v2449, %v2186
        %v2571 = vmul.f32 %v2449, %v2188
        %v2572 = vmul.f32 %v2449, %v2190
        %v2573 = vmul.f32 %v2449, %v2192
        %v2574 = vmul.f32 %v2449, %v2194
        %v2575 = vmul.f32 %v2449, %v2196
        %v2576 = vmul.f32 %v2449, %v2198
        %v2577 = vmul.f32 %v2449, %v2200
        %v2578 = vmul.f32 %v2449, %v2202
        %v2579 = vmul.f32 %v2449, %v2204
        %v2580 = vmul.f32 %v2449, %v2206
        %v2581 = vmul.f32 %v2449, %v2208
        %v2582 = vmul.f32 %v2449, %v2210
        %v2583 = vmul.f32 %v2449, %v2212
        %v2584 = vmul.f32 %v2449, %v2214
        %v2585 = vmul.f32 %v2449, %v2216
        %v2586 = vmul.f32 %v2449, %v2218
        %v2587 = vmul.f32 %v2449, %v2220
        %v2588 = vmul.f32 %v2449, %v2222
        %v2589 = vmul.f32 %v2449, %v2224
        %v2590 = vmul.f32 %v2449, %v2226
        %v2591 = vmul.f32 %v2449, %v2228
        %v2592 = vmul.f32 %v2449, %v2230
        %v2593 = vmul.f32 %v2449, %v2232
        %v2594 = vmul.f32 %v2449, %v2234
        %v2595 = vmul.f32 %v2449, %v2236
        %v2596 = vmul.f32 %v2449, %v2238
        %v2597 = vmul.f32 %v2449, %v2240
        %v2598 = vmul.f32 %v2449, %v2242
        %v2599 = vmul.f32 %v2449, %v2244
        %v2600 = vmul.f32 %v2449, %v2246
        %v2601 = vmul.f32 %v2449, %v2248
        %v2602 = vmul.f32 %v2449, %v2250
        %v2603 = vmul.f32 %v2449, %v2252
        %v2604 = vmul.f32 %v2449, %v2254
        %v2605 = vmul.f32 %v2449, %v2256
        %v2606 = vmul.f32 %v2449, %v2258
        %v2607 = vmul.f32 %v2449, %v2260
        %v2608 = vmul.f32 %v2449, %v2262
        %v2609 = vmul.f32 %v2449, %v2264
        %v2610 = vmul.f32 %v2449, %v2266
        %v2611 = vmul.f32 %v2449, %v2268
        %v2612 = vmul.f32 %v2449, %v2270
        %v2613 = vmul.f32 %v2449, %v2272
        %v2614 = vmul.f32 %v2449, %v2274
        %v2615 = vmul.f32 %v2449, %v2276
        %v2616 = vmul.f32 %v2449, %v2278
        %v2617 = vmul.f32 %v2449, %v2280
        %v2618 = vmul.f32 %v2449, %v2282
        %v2619 = vmul.f32 %v2449, %v2284
        %v2620 = vmul.f32 %v2449, %v2286
        %v2621 = vmul.f32 %v2449, %v2288
        %v2622 = vmul.f32 %v2449, %v2290
        %v2623 = vmul.f32 %v2449, %v2292
        %v2624 = vmul.f32 %v2449, %v2294
        %v2625 = vmul.f32 %v2449, %v2296
        %v2626 = vmul.f32 %v2449, %v2298
        %v2627 = vmul.f32 %v2449, %v2300
        %v2628 = vmul.f32 %v2449, %v2302
        %v2629 = vmul.f32 %v2449, %v2304
        %v2630 = vmul.f32 %v2449, %v2306
        %v2631 = vmul.f32 %v2449, %v2308
        %v2632 = vmul.f32 %v2449, %v2310
        %v2633 = vmul.f32 %v2449, %v2312
        %v2634 = vmul.f32 %v2449, %v2314
        %v2635 = vmul.f32 %v2449, %v2316
        %v2636 = vmul.f32 %v2449, %v2318
        %v2637 = vmul.f32 %v2449, %v2320
        %v2638 = vmul.f32 %v2449, %v2322
        %v2639 = vmul.f32 %v2449, %v2324
        %v2640 = vmul.f32 %v2449, %v2326
        %v2641 = vmul.f32 %v2449, %v2328
        %v2642 = vmul.f32 %v2449, %v2330
        %v2643 = vmul.f32 %v2449, %v2332
        %v2644 = vmul.f32 %v2449, %v2334
        %v2645 = vmul.f32 %v2449, %v2336
        %v2646 = vmul.f32 %v2449, %v2338
        %v2647 = vmul.f32 %v2449, %v2340
        %v2648 = vmul.f32 %v2449, %v2342
        %v2649 = vmul.f32 %v2449, %v2344
        %v2650 = vmul.f32 %v2449, %v2346
        %v2651 = vmul.f32 %v2449, %v2348
        %v2652 = vmul.f32 %v2449, %v2350
        %v2653 = vmul.f32 %v2449, %v2352
        %v2654 = vmul.f32 %v2449, %v2354
        %v2655 = vmul.f32 %v2449, %v2356
        %v2656 = vmul.f32 %v2449, %v2358
        %v2657 = vmul.f32 %v2449, %v2360
        %v2658 = vmul.f32 %v2449, %v2362
        %v2659 = vmul.f32 %v2449, %v2364
        %v2660 = vmul.f32 %v2449, %v2366
        %v2661 = vmul.f32 %v2449, %v2368
        %v2662 = vmul.f32 %v2449, %v2370
        %v2663 = vmul.f32 %v2449, %v2372
        %v2664 = vmul.f32 %v2449, %v2374
        %v2665 = vmul.f32 %v2449, %v2376
        %v2666 = vmul.f32 %v2449, %v2378
        %v2667 = vmul.f32 %v2449, %v2380
        %v2668 = vmul.f32 %v2449, %v2382
        %v2669 = vmul.f32 %v2449, %v2384
        %v2670 = vmul.f32 %v2449, %v2386
        %v2671 = vmul.f32 %v2449, %v2388
        %v2672 = vmul.f32 %v2449, %v2390
        %v2673 = vmul.f32 %v2449, %v2392
        %v2674 = vmul.f32 %v2449, %v2394
        %v2675 = vmul.f32 %v2449, %v2396
        %v2676 = vmul.f32 %v2449, %v2398
        %v2677 = vmul.f32 %v2449, %v2400
        %v2678 = vmul.f32 %v2449, %v2402
        %v2679 = vmul.f32 %v2449, %v2404
        %v2680 = vmul.f32 %v2449, %v2406
        %v2681 = vmul.f32 %v2449, %v2408
        %v2682 = vmul.f32 %v2449, %v2410
        %v2683 = vmul.f32 %v2449, %v2412
        %v2684 = vmul.f32 %v2449, %v2414
        %v2685 = vmul.f32 %v2449, %v2416
        %v2686 = vmul.f32 %v2449, %v2418
        %v2687 = vmul.f32 %v2449, %v2420
        %v2688 = vmul.f32 %v2449, %v2422
        %v2689 = vmul.f32 %v2449, %v2424
        %v2690 = vmul.f32 %v2449, %v2426
        %v2691 = vmul.f32 %v2449, %v2428
        %v2692 = vmul.f32 %v2449, %v2430
        %v2693 = vmul.f32 %v2449, %v2432
        %v2694 = vmul.f32 %v2449, %v2434
        %v2695 = vmul.f32 %v2449, %v2436
        %v2696 = vmul.f32 %v2449, %v2438
        %v2697 = vmul.f32 %v2449, %v2440
        %v2698 = vmul.f32 %v2449, %v2442
        %v2699 = vmul.f32 %v2449, %v2444
        %v2700 = vmul.f32 %v2449, %v2446
        %v2701 = vmul.f32 %v2449, %v2448
        %s2702 = sld [smem:[#allocation6 + $0x1]]
        %s2703 = sld [smem:[#allocation2 + $0x1]]
        %v2704 = vstv %s2703
        %v2705 = vmul.f32 %v2704, %v1438
        %v2706 = vmul.f32 %v2704, %v1439
        %v2707 = vmul.f32 %v2704, %v1440
        %v2708 = vmul.f32 %v2704, %v1441
        %v2709 = vmul.f32 %v2704, %v1442
        %v2710 = vmul.f32 %v2704, %v1443
        %v2711 = vmul.f32 %v2704, %v1444
        %v2712 = vmul.f32 %v2704, %v1445
        %v2713 = vmul.f32 %v2704, %v1446
        %v2714 = vmul.f32 %v2704, %v1447
        %v2715 = vmul.f32 %v2704, %v1448
        %v2716 = vmul.f32 %v2704, %v1449
        %v2717 = vmul.f32 %v2704, %v1450
        %v2718 = vmul.f32 %v2704, %v1451
        %v2719 = vmul.f32 %v2704, %v1452
        %v2720 = vmul.f32 %v2704, %v1453
        %v2721 = vmul.f32 %v2704, %v1454
        %v2722 = vmul.f32 %v2704, %v1455
        %v2723 = vmul.f32 %v2704, %v1456
        %v2724 = vmul.f32 %v2704, %v1457
        %v2725 = vmul.f32 %v2704, %v1458
        %v2726 = vmul.f32 %v2704, %v1459
        %v2727 = vmul.f32 %v2704, %v1460
        %v2728 = vmul.f32 %v2704, %v1461
        %v2729 = vmul.f32 %v2704, %v1462
        %v2730 = vmul.f32 %v2704, %v1463
        %v2731 = vmul.f32 %v2704, %v1464
        %v2732 = vmul.f32 %v2704, %v1465
        %v2733 = vmul.f32 %v2704, %v1466
        %v2734 = vmul.f32 %v2704, %v1467
        %v2735 = vmul.f32 %v2704, %v1468
        %v2736 = vmul.f32 %v2704, %v1469
        %v2737 = vmul.f32 %v2704, %v1470
        %v2738 = vmul.f32 %v2704, %v1471
        %v2739 = vmul.f32 %v2704, %v1472
        %v2740 = vmul.f32 %v2704, %v1473
        %v2741 = vmul.f32 %v2704, %v1474
        %v2742 = vmul.f32 %v2704, %v1475
        %v2743 = vmul.f32 %v2704, %v1476
        %v2744 = vmul.f32 %v2704, %v1477
        %v2745 = vmul.f32 %v2704, %v1478
        %v2746 = vmul.f32 %v2704, %v1479
        %v2747 = vmul.f32 %v2704, %v1480
        %v2748 = vmul.f32 %v2704, %v1481
        %v2749 = vmul.f32 %v2704, %v1482
        %v2750 = vmul.f32 %v2704, %v1483
        %v2751 = vmul.f32 %v2704, %v1484
        %v2752 = vmul.f32 %v2704, %v1485
        %v2753 = vmul.f32 %v2704, %v1486
        %v2754 = vmul.f32 %v2704, %v1487
        %v2755 = vmul.f32 %v2704, %v1488
        %v2756 = vmul.f32 %v2704, %v1489
        %v2757 = vmul.f32 %v2704, %v1490
        %v2758 = vmul.f32 %v2704, %v1491
        %v2759 = vmul.f32 %v2704, %v1492
        %v2760 = vmul.f32 %v2704, %v1493
        %v2761 = vmul.f32 %v2704, %v1494
        %v2762 = vmul.f32 %v2704, %v1495
        %v2763 = vmul.f32 %v2704, %v1496
        %v2764 = vmul.f32 %v2704, %v1497
        %v2765 = vmul.f32 %v2704, %v1498
        %v2766 = vmul.f32 %v2704, %v1499
        %v2767 = vmul.f32 %v2704, %v1500
        %v2768 = vmul.f32 %v2704, %v1501
        %v2769 = vmul.f32 %v2704, %v1502
        %v2770 = vmul.f32 %v2704, %v1503
        %v2771 = vmul.f32 %v2704, %v1504
        %v2772 = vmul.f32 %v2704, %v1505
        %v2773 = vmul.f32 %v2704, %v1506
        %v2774 = vmul.f32 %v2704, %v1507
        %v2775 = vmul.f32 %v2704, %v1508
        %v2776 = vmul.f32 %v2704, %v1509
        %v2777 = vmul.f32 %v2704, %v1510
        %v2778 = vmul.f32 %v2704, %v1511
        %v2779 = vmul.f32 %v2704, %v1512
        %v2780 = vmul.f32 %v2704, %v1513
        %v2781 = vmul.f32 %v2704, %v1514
        %v2782 = vmul.f32 %v2704, %v1515
        %v2783 = vmul.f32 %v2704, %v1516
        %v2784 = vmul.f32 %v2704, %v1517
        %v2785 = vmul.f32 %v2704, %v1518
        %v2786 = vmul.f32 %v2704, %v1519
        %v2787 = vmul.f32 %v2704, %v1520
        %v2788 = vmul.f32 %v2704, %v1521
        %v2789 = vmul.f32 %v2704, %v1522
        %v2790 = vmul.f32 %v2704, %v1523
        %v2791 = vmul.f32 %v2704, %v1524
        %v2792 = vmul.f32 %v2704, %v1525
        %v2793 = vmul.f32 %v2704, %v1526
        %v2794 = vmul.f32 %v2704, %v1527
        %v2795 = vmul.f32 %v2704, %v1528
        %v2796 = vmul.f32 %v2704, %v1529
        %v2797 = vmul.f32 %v2704, %v1530
        %v2798 = vmul.f32 %v2704, %v1531
        %v2799 = vmul.f32 %v2704, %v1532
        %v2800 = vmul.f32 %v2704, %v1533
        %v2801 = vmul.f32 %v2704, %v1534
        %v2802 = vmul.f32 %v2704, %v1535
        %v2803 = vmul.f32 %v2704, %v1536
        %v2804 = vmul.f32 %v2704, %v1537
        %v2805 = vmul.f32 %v2704, %v1538
        %v2806 = vmul.f32 %v2704, %v1539
        %v2807 = vmul.f32 %v2704, %v1540
        %v2808 = vmul.f32 %v2704, %v1541
        %v2809 = vmul.f32 %v2704, %v1542
        %v2810 = vmul.f32 %v2704, %v1543
        %v2811 = vmul.f32 %v2704, %v1544
        %v2812 = vmul.f32 %v2704, %v1545
        %v2813 = vmul.f32 %v2704, %v1546
        %v2814 = vmul.f32 %v2704, %v1547
        %v2815 = vmul.f32 %v2704, %v1548
        %v2816 = vmul.f32 %v2704, %v1549
        %v2817 = vmul.f32 %v2704, %v1550
        %v2818 = vmul.f32 %v2704, %v1551
        %v2819 = vmul.f32 %v2704, %v1552
        %v2820 = vmul.f32 %v2704, %v1553
        %v2821 = vmul.f32 %v2704, %v1554
        %v2822 = vmul.f32 %v2704, %v1555
        %v2823 = vmul.f32 %v2704, %v1556
        %v2824 = vmul.f32 %v2704, %v1557
        %v2825 = vmul.f32 %v2704, %v1558
        %v2826 = vmul.f32 %v2704, %v1559
        %v2827 = vmul.f32 %v2704, %v1560
        %v2828 = vmul.f32 %v2704, %v1561
        %v2829 = vmul.f32 %v2704, %v1562
        %v2830 = vmul.f32 %v2704, %v1563
        %v2831 = vmul.f32 %v2704, %v1564
        %v2832 = vmul.f32 %v2704, %v1565
        %v2833 = vmul.f32 %v2704, %v1566
        %v2834 = vmul.f32 %v2704, %v1567
        %v2835 = vmul.f32 %v2704, %v1568
        %v2836 = vmul.f32 %v2704, %v1569
        %v2837 = vmul.f32 %v2704, %v1570
        %v2838 = vmul.f32 %v2704, %v1571
        %v2839 = vmul.f32 %v2704, %v1572
        %v2840 = vmul.f32 %v2704, %v1573
        %v2841 = vmul.f32 %v2704, %v1574
        %v2842 = vmul.f32 %v2704, %v1575
        %v2843 = vmul.f32 %v2704, %v1576
        %v2844 = vmul.f32 %v2704, %v1577
        %v2845 = vmul.f32 %v2704, %v1578
        %v2846 = vmul.f32 %v2704, %v1579
        %v2847 = vmul.f32 %v2704, %v1580
        %v2848 = vmul.f32 %v2704, %v1581
        %v2849 = vmul.f32 %v2704, %v1582
        %v2850 = vmul.f32 %v2704, %v1583
        %v2851 = vmul.f32 %v2704, %v1584
        %v2852 = vmul.f32 %v2704, %v1585
        %v2853 = vmul.f32 %v2704, %v1586
        %v2854 = vmul.f32 %v2704, %v1587
        %v2855 = vmul.f32 %v2704, %v1588
        %v2856 = vmul.f32 %v2704, %v1589
        %v2857 = vmul.f32 %v2704, %v1590
        %v2858 = vmul.f32 %v2704, %v1591
        %v2859 = vmul.f32 %v2704, %v1592
        %v2860 = vmul.f32 %v2704, %v1593
        %v2861 = vmul.f32 %v2704, %v1594
        %v2862 = vmul.f32 %v2704, %v1595
        %v2863 = vmul.f32 %v2704, %v1596
        %v2864 = vmul.f32 %v2704, %v1597
        %v2865 = vmul.f32 %v2704, %v1598
        %v2866 = vmul.f32 %v2704, %v1599
        %v2867 = vmul.f32 %v2704, %v1600
        %v2868 = vmul.f32 %v2704, %v1601
        %v2869 = vmul.f32 %v2704, %v1602
        %v2870 = vmul.f32 %v2704, %v1603
        %v2871 = vmul.f32 %v2704, %v1604
        %v2872 = vmul.f32 %v2704, %v1605
        %v2873 = vmul.f32 %v2704, %v1606
        %v2874 = vmul.f32 %v2704, %v1607
        %v2875 = vmul.f32 %v2704, %v1608
        %v2876 = vmul.f32 %v2704, %v1609
        %v2877 = vmul.f32 %v2704, %v1610
        %v2878 = vmul.f32 %v2704, %v1611
        %v2879 = vmul.f32 %v2704, %v1612
        %v2880 = vmul.f32 %v2704, %v1613
        %v2881 = vmul.f32 %v2704, %v1614
        %v2882 = vmul.f32 %v2704, %v1615
        %v2883 = vmul.f32 %v2704, %v1616
        %v2884 = vmul.f32 %v2704, %v1617
        %v2885 = vmul.f32 %v2704, %v1618
        %v2886 = vmul.f32 %v2704, %v1619
        %v2887 = vmul.f32 %v2704, %v1620
        %v2888 = vmul.f32 %v2704, %v1621
        %v2889 = vmul.f32 %v2704, %v1622
        %v2890 = vmul.f32 %v2704, %v1623
        %v2891 = vmul.f32 %v2704, %v1624
        %v2892 = vmul.f32 %v2704, %v1625
        %v2893 = vmul.f32 %v2704, %v1626
        %v2894 = vmul.f32 %v2704, %v1627
        %v2895 = vmul.f32 %v2704, %v1628
        %v2896 = vmul.f32 %v2704, %v1629
        %v2897 = vmul.f32 %v2704, %v1630
        %v2898 = vmul.f32 %v2704, %v1631
        %v2899 = vmul.f32 %v2704, %v1632
        %v2900 = vmul.f32 %v2704, %v1633
        %v2901 = vmul.f32 %v2704, %v1634
        %v2902 = vmul.f32 %v2704, %v1635
        %v2903 = vmul.f32 %v2704, %v1636
        %v2904 = vmul.f32 %v2704, %v1637
        %v2905 = vmul.f32 %v2704, %v1638
        %v2906 = vmul.f32 %v2704, %v1639
        %v2907 = vmul.f32 %v2704, %v1640
        %v2908 = vmul.f32 %v2704, %v1641
        %v2909 = vmul.f32 %v2704, %v1642
        %v2910 = vmul.f32 %v2704, %v1643
        %v2911 = vmul.f32 %v2704, %v1644
        %v2912 = vmul.f32 %v2704, %v1645
        %v2913 = vmul.f32 %v2704, %v1646
        %v2914 = vmul.f32 %v2704, %v1647
        %v2915 = vmul.f32 %v2704, %v1648
        %v2916 = vmul.f32 %v2704, %v1649
        %v2917 = vmul.f32 %v2704, %v1650
        %v2918 = vmul.f32 %v2704, %v1651
        %v2919 = vmul.f32 %v2704, %v1652
        %v2920 = vmul.f32 %v2704, %v1653
        %v2921 = vmul.f32 %v2704, %v1654
        %v2922 = vmul.f32 %v2704, %v1655
        %v2923 = vmul.f32 %v2704, %v1656
        %v2924 = vmul.f32 %v2704, %v1657
        %v2925 = vmul.f32 %v2704, %v1658
        %v2926 = vmul.f32 %v2704, %v1659
        %v2927 = vmul.f32 %v2704, %v1660
        %v2928 = vmul.f32 %v2704, %v1661
        %v2929 = vmul.f32 %v2704, %v1662
        %v2930 = vmul.f32 %v2704, %v1663
        %v2931 = vmul.f32 %v2704, %v1664
        %v2932 = vmul.f32 %v2704, %v1665
        %v2933 = vmul.f32 %v2704, %v1666
        %v2934 = vmul.f32 %v2704, %v1667
        %v2935 = vmul.f32 %v2704, %v1668
        %v2936 = vmul.f32 %v2704, %v1669
        %v2937 = vmul.f32 %v2704, %v1670
        %v2938 = vmul.f32 %v2704, %v1671
        %v2939 = vmul.f32 %v2704, %v1672
        %v2940 = vmul.f32 %v2704, %v1673
        %v2941 = vmul.f32 %v2704, %v1674
        %v2942 = vmul.f32 %v2704, %v1675
        %v2943 = vmul.f32 %v2704, %v1676
        %v2944 = vmul.f32 %v2704, %v1677
        %v2945 = vmul.f32 %v2704, %v1678
        %v2946 = vmul.f32 %v2704, %v1679
        %v2947 = vmul.f32 %v2704, %v1680
        %v2948 = vmul.f32 %v2704, %v1681
        %v2949 = vmul.f32 %v2704, %v1682
        %v2950 = vmul.f32 %v2704, %v1683
        %v2951 = vmul.f32 %v2704, %v1684
        %v2952 = vmul.f32 %v2704, %v1685
        %v2953 = vmul.f32 %v2704, %v1686
        %v2954 = vmul.f32 %v2704, %v1687
        %v2955 = vmul.f32 %v2704, %v1688
        %v2956 = vmul.f32 %v2704, %v1689
        %v2957 = vmul.f32 %v2705, 1.442695
        %v2958 = vpow.pop %v2957
        %v2959 = vmul.f32 %v2706, 1.442695
        %v2960 = vpow.pop %v2959
        %v2961 = vmul.f32 %v2707, 1.442695
        %v2962 = vpow.pop %v2961
        %v2963 = vmul.f32 %v2708, 1.442695
        %v2964 = vpow.pop %v2963
        %v2965 = vmul.f32 %v2709, 1.442695
        %v2966 = vpow.pop %v2965
        %v2967 = vmul.f32 %v2710, 1.442695
        %v2968 = vpow.pop %v2967
        %v2969 = vmul.f32 %v2711, 1.442695
        %v2970 = vpow.pop %v2969
        %v2971 = vmul.f32 %v2712, 1.442695
        %v2972 = vpow.pop %v2971
        %v2973 = vmul.f32 %v2713, 1.442695
        %v2974 = vpow.pop %v2973
        %v2975 = vmul.f32 %v2714, 1.442695
        %v2976 = vpow.pop %v2975
        %v2977 = vmul.f32 %v2715, 1.442695
        %v2978 = vpow.pop %v2977
        %v2979 = vmul.f32 %v2716, 1.442695
        %v2980 = vpow.pop %v2979
        %v2981 = vmul.f32 %v2717, 1.442695
        %v2982 = vpow.pop %v2981
        %v2983 = vmul.f32 %v2718, 1.442695
        %v2984 = vpow.pop %v2983
        %v2985 = vmul.f32 %v2719, 1.442695
        %v2986 = vpow.pop %v2985
        %v2987 = vmul.f32 %v2720, 1.442695
        %v2988 = vpow.pop %v2987
        %v2989 = vmul.f32 %v2721, 1.442695
        %v2990 = vpow.pop %v2989
        %v2991 = vmul.f32 %v2722, 1.442695
        %v2992 = vpow.pop %v2991
        %v2993 = vmul.f32 %v2723, 1.442695
        %v2994 = vpow.pop %v2993
        %v2995 = vmul.f32 %v2724, 1.442695
        %v2996 = vpow.pop %v2995
        %v2997 = vmul.f32 %v2725, 1.442695
        %v2998 = vpow.pop %v2997
        %v2999 = vmul.f32 %v2726, 1.442695
        %v3000 = vpow.pop %v2999
        %v3001 = vmul.f32 %v2727, 1.442695
        %v3002 = vpow.pop %v3001
        %v3003 = vmul.f32 %v2728, 1.442695
        %v3004 = vpow.pop %v3003
        %v3005 = vmul.f32 %v2729, 1.442695
        %v3006 = vpow.pop %v3005
        %v3007 = vmul.f32 %v2730, 1.442695
        %v3008 = vpow.pop %v3007
        %v3009 = vmul.f32 %v2731, 1.442695
        %v3010 = vpow.pop %v3009
        %v3011 = vmul.f32 %v2732, 1.442695
        %v3012 = vpow.pop %v3011
        %v3013 = vmul.f32 %v2733, 1.442695
        %v3014 = vpow.pop %v3013
        %v3015 = vmul.f32 %v2734, 1.442695
        %v3016 = vpow.pop %v3015
        %v3017 = vmul.f32 %v2735, 1.442695
        %v3018 = vpow.pop %v3017
        %v3019 = vmul.f32 %v2736, 1.442695
        %v3020 = vpow.pop %v3019
        %v3021 = vmul.f32 %v2737, 1.442695
        %v3022 = vpow.pop %v3021
        %v3023 = vmul.f32 %v2738, 1.442695
        %v3024 = vpow.pop %v3023
        %v3025 = vmul.f32 %v2739, 1.442695
        %v3026 = vpow.pop %v3025
        %v3027 = vmul.f32 %v2740, 1.442695
        %v3028 = vpow.pop %v3027
        %v3029 = vmul.f32 %v2741, 1.442695
        %v3030 = vpow.pop %v3029
        %v3031 = vmul.f32 %v2742, 1.442695
        %v3032 = vpow.pop %v3031
        %v3033 = vmul.f32 %v2743, 1.442695
        %v3034 = vpow.pop %v3033
        %v3035 = vmul.f32 %v2744, 1.442695
        %v3036 = vpow.pop %v3035
        %v3037 = vmul.f32 %v2745, 1.442695
        %v3038 = vpow.pop %v3037
        %v3039 = vmul.f32 %v2746, 1.442695
        %v3040 = vpow.pop %v3039
        %v3041 = vmul.f32 %v2747, 1.442695
        %v3042 = vpow.pop %v3041
        %v3043 = vmul.f32 %v2748, 1.442695
        %v3044 = vpow.pop %v3043
        %v3045 = vmul.f32 %v2749, 1.442695
        %v3046 = vpow.pop %v3045
        %v3047 = vmul.f32 %v2750, 1.442695
        %v3048 = vpow.pop %v3047
        %v3049 = vmul.f32 %v2751, 1.442695
        %v3050 = vpow.pop %v3049
        %v3051 = vmul.f32 %v2752, 1.442695
        %v3052 = vpow.pop %v3051
        %v3053 = vmul.f32 %v2753, 1.442695
        %v3054 = vpow.pop %v3053
        %v3055 = vmul.f32 %v2754, 1.442695
        %v3056 = vpow.pop %v3055
        %v3057 = vmul.f32 %v2755, 1.442695
        %v3058 = vpow.pop %v3057
        %v3059 = vmul.f32 %v2756, 1.442695
        %v3060 = vpow.pop %v3059
        %v3061 = vmul.f32 %v2757, 1.442695
        %v3062 = vpow.pop %v3061
        %v3063 = vmul.f32 %v2758, 1.442695
        %v3064 = vpow.pop %v3063
        %v3065 = vmul.f32 %v2759, 1.442695
        %v3066 = vpow.pop %v3065
        %v3067 = vmul.f32 %v2760, 1.442695
        %v3068 = vpow.pop %v3067
        %v3069 = vmul.f32 %v2761, 1.442695
        %v3070 = vpow.pop %v3069
        %v3071 = vmul.f32 %v2762, 1.442695
        %v3072 = vpow.pop %v3071
        %v3073 = vmul.f32 %v2763, 1.442695
        %v3074 = vpow.pop %v3073
        %v3075 = vmul.f32 %v2764, 1.442695
        %v3076 = vpow.pop %v3075
        %v3077 = vmul.f32 %v2765, 1.442695
        %v3078 = vpow.pop %v3077
        %v3079 = vmul.f32 %v2766, 1.442695
        %v3080 = vpow.pop %v3079
        %v3081 = vmul.f32 %v2767, 1.442695
        %v3082 = vpow.pop %v3081
        %v3083 = vmul.f32 %v2768, 1.442695
        %v3084 = vpow.pop %v3083
        %v3085 = vmul.f32 %v2769, 1.442695
        %v3086 = vpow.pop %v3085
        %v3087 = vmul.f32 %v2770, 1.442695
        %v3088 = vpow.pop %v3087
        %v3089 = vmul.f32 %v2771, 1.442695
        %v3090 = vpow.pop %v3089
        %v3091 = vmul.f32 %v2772, 1.442695
        %v3092 = vpow.pop %v3091
        %v3093 = vmul.f32 %v2773, 1.442695
        %v3094 = vpow.pop %v3093
        %v3095 = vmul.f32 %v2774, 1.442695
        %v3096 = vpow.pop %v3095
        %v3097 = vmul.f32 %v2775, 1.442695
        %v3098 = vpow.pop %v3097
        %v3099 = vmul.f32 %v2776, 1.442695
        %v3100 = vpow.pop %v3099
        %v3101 = vmul.f32 %v2777, 1.442695
        %v3102 = vpow.pop %v3101
        %v3103 = vmul.f32 %v2778, 1.442695
        %v3104 = vpow.pop %v3103
        %v3105 = vmul.f32 %v2779, 1.442695
        %v3106 = vpow.pop %v3105
        %v3107 = vmul.f32 %v2780, 1.442695
        %v3108 = vpow.pop %v3107
        %v3109 = vmul.f32 %v2781, 1.442695
        %v3110 = vpow.pop %v3109
        %v3111 = vmul.f32 %v2782, 1.442695
        %v3112 = vpow.pop %v3111
        %v3113 = vmul.f32 %v2783, 1.442695
        %v3114 = vpow.pop %v3113
        %v3115 = vmul.f32 %v2784, 1.442695
        %v3116 = vpow.pop %v3115
        %v3117 = vmul.f32 %v2785, 1.442695
        %v3118 = vpow.pop %v3117
        %v3119 = vmul.f32 %v2786, 1.442695
        %v3120 = vpow.pop %v3119
        %v3121 = vmul.f32 %v2787, 1.442695
        %v3122 = vpow.pop %v3121
        %v3123 = vmul.f32 %v2788, 1.442695
        %v3124 = vpow.pop %v3123
        %v3125 = vmul.f32 %v2789, 1.442695
        %v3126 = vpow.pop %v3125
        %v3127 = vmul.f32 %v2790, 1.442695
        %v3128 = vpow.pop %v3127
        %v3129 = vmul.f32 %v2791, 1.442695
        %v3130 = vpow.pop %v3129
        %v3131 = vmul.f32 %v2792, 1.442695
        %v3132 = vpow.pop %v3131
        %v3133 = vmul.f32 %v2793, 1.442695
        %v3134 = vpow.pop %v3133
        %v3135 = vmul.f32 %v2794, 1.442695
        %v3136 = vpow.pop %v3135
        %v3137 = vmul.f32 %v2795, 1.442695
        %v3138 = vpow.pop %v3137
        %v3139 = vmul.f32 %v2796, 1.442695
        %v3140 = vpow.pop %v3139
        %v3141 = vmul.f32 %v2797, 1.442695
        %v3142 = vpow.pop %v3141
        %v3143 = vmul.f32 %v2798, 1.442695
        %v3144 = vpow.pop %v3143
        %v3145 = vmul.f32 %v2799, 1.442695
        %v3146 = vpow.pop %v3145
        %v3147 = vmul.f32 %v2800, 1.442695
        %v3148 = vpow.pop %v3147
        %v3149 = vmul.f32 %v2801, 1.442695
        %v3150 = vpow.pop %v3149
        %v3151 = vmul.f32 %v2802, 1.442695
        %v3152 = vpow.pop %v3151
        %v3153 = vmul.f32 %v2803, 1.442695
        %v3154 = vpow.pop %v3153
        %v3155 = vmul.f32 %v2804, 1.442695
        %v3156 = vpow.pop %v3155
        %v3157 = vmul.f32 %v2805, 1.442695
        %v3158 = vpow.pop %v3157
        %v3159 = vmul.f32 %v2806, 1.442695
        %v3160 = vpow.pop %v3159
        %v3161 = vmul.f32 %v2807, 1.442695
        %v3162 = vpow.pop %v3161
        %v3163 = vmul.f32 %v2808, 1.442695
        %v3164 = vpow.pop %v3163
        %v3165 = vmul.f32 %v2809, 1.442695
        %v3166 = vpow.pop %v3165
        %v3167 = vmul.f32 %v2810, 1.442695
        %v3168 = vpow.pop %v3167
        %v3169 = vmul.f32 %v2811, 1.442695
        %v3170 = vpow.pop %v3169
        %v3171 = vmul.f32 %v2812, 1.442695
        %v3172 = vpow.pop %v3171
        %v3173 = vmul.f32 %v2813, 1.442695
        %v3174 = vpow.pop %v3173
        %v3175 = vmul.f32 %v2814, 1.442695
        %v3176 = vpow.pop %v3175
        %v3177 = vmul.f32 %v2815, 1.442695
        %v3178 = vpow.pop %v3177
        %v3179 = vmul.f32 %v2816, 1.442695
        %v3180 = vpow.pop %v3179
        %v3181 = vmul.f32 %v2817, 1.442695
        %v3182 = vpow.pop %v3181
        %v3183 = vmul.f32 %v2818, 1.442695
        %v3184 = vpow.pop %v3183
        %v3185 = vmul.f32 %v2819, 1.442695
        %v3186 = vpow.pop %v3185
        %v3187 = vmul.f32 %v2820, 1.442695
        %v3188 = vpow.pop %v3187
        %v3189 = vmul.f32 %v2821, 1.442695
        %v3190 = vpow.pop %v3189
        %v3191 = vmul.f32 %v2822, 1.442695
        %v3192 = vpow.pop %v3191
        %v3193 = vmul.f32 %v2823, 1.442695
        %v3194 = vpow.pop %v3193
        %v3195 = vmul.f32 %v2824, 1.442695
        %v3196 = vpow.pop %v3195
        %v3197 = vmul.f32 %v2825, 1.442695
        %v3198 = vpow.pop %v3197
        %v3199 = vmul.f32 %v2826, 1.442695
        %v3200 = vpow.pop %v3199
        %v3201 = vmul.f32 %v2827, 1.442695
        %v3202 = vpow.pop %v3201
        %v3203 = vmul.f32 %v2828, 1.442695
        %v3204 = vpow.pop %v3203
        %v3205 = vmul.f32 %v2829, 1.442695
        %v3206 = vpow.pop %v3205
        %v3207 = vmul.f32 %v2830, 1.442695
        %v3208 = vpow.pop %v3207
        %v3209 = vmul.f32 %v2831, 1.442695
        %v3210 = vpow.pop %v3209
        %v3211 = vmul.f32 %v2832, 1.442695
        %v3212 = vpow.pop %v3211
        %v3213 = vmul.f32 %v2833, 1.442695
        %v3214 = vpow.pop %v3213
        %v3215 = vmul.f32 %v2834, 1.442695
        %v3216 = vpow.pop %v3215
        %v3217 = vmul.f32 %v2835, 1.442695
        %v3218 = vpow.pop %v3217
        %v3219 = vmul.f32 %v2836, 1.442695
        %v3220 = vpow.pop %v3219
        %v3221 = vmul.f32 %v2837, 1.442695
        %v3222 = vpow.pop %v3221
        %v3223 = vmul.f32 %v2838, 1.442695
        %v3224 = vpow.pop %v3223
        %v3225 = vmul.f32 %v2839, 1.442695
        %v3226 = vpow.pop %v3225
        %v3227 = vmul.f32 %v2840, 1.442695
        %v3228 = vpow.pop %v3227
        %v3229 = vmul.f32 %v2841, 1.442695
        %v3230 = vpow.pop %v3229
        %v3231 = vmul.f32 %v2842, 1.442695
        %v3232 = vpow.pop %v3231
        %v3233 = vmul.f32 %v2843, 1.442695
        %v3234 = vpow.pop %v3233
        %v3235 = vmul.f32 %v2844, 1.442695
        %v3236 = vpow.pop %v3235
        %v3237 = vmul.f32 %v2845, 1.442695
        %v3238 = vpow.pop %v3237
        %v3239 = vmul.f32 %v2846, 1.442695
        %v3240 = vpow.pop %v3239
        %v3241 = vmul.f32 %v2847, 1.442695
        %v3242 = vpow.pop %v3241
        %v3243 = vmul.f32 %v2848, 1.442695
        %v3244 = vpow.pop %v3243
        %v3245 = vmul.f32 %v2849, 1.442695
        %v3246 = vpow.pop %v3245
        %v3247 = vmul.f32 %v2850, 1.442695
        %v3248 = vpow.pop %v3247
        %v3249 = vmul.f32 %v2851, 1.442695
        %v3250 = vpow.pop %v3249
        %v3251 = vmul.f32 %v2852, 1.442695
        %v3252 = vpow.pop %v3251
        %v3253 = vmul.f32 %v2853, 1.442695
        %v3254 = vpow.pop %v3253
        %v3255 = vmul.f32 %v2854, 1.442695
        %v3256 = vpow.pop %v3255
        %v3257 = vmul.f32 %v2855, 1.442695
        %v3258 = vpow.pop %v3257
        %v3259 = vmul.f32 %v2856, 1.442695
        %v3260 = vpow.pop %v3259
        %v3261 = vmul.f32 %v2857, 1.442695
        %v3262 = vpow.pop %v3261
        %v3263 = vmul.f32 %v2858, 1.442695
        %v3264 = vpow.pop %v3263
        %v3265 = vmul.f32 %v2859, 1.442695
        %v3266 = vpow.pop %v3265
        %v3267 = vmul.f32 %v2860, 1.442695
        %v3268 = vpow.pop %v3267
        %v3269 = vmul.f32 %v2861, 1.442695
        %v3270 = vpow.pop %v3269
        %v3271 = vmul.f32 %v2862, 1.442695
        %v3272 = vpow.pop %v3271
        %v3273 = vmul.f32 %v2863, 1.442695
        %v3274 = vpow.pop %v3273
        %v3275 = vmul.f32 %v2864, 1.442695
        %v3276 = vpow.pop %v3275
        %v3277 = vmul.f32 %v2865, 1.442695
        %v3278 = vpow.pop %v3277
        %v3279 = vmul.f32 %v2866, 1.442695
        %v3280 = vpow.pop %v3279
        %v3281 = vmul.f32 %v2867, 1.442695
        %v3282 = vpow.pop %v3281
        %v3283 = vmul.f32 %v2868, 1.442695
        %v3284 = vpow.pop %v3283
        %v3285 = vmul.f32 %v2869, 1.442695
        %v3286 = vpow.pop %v3285
        %v3287 = vmul.f32 %v2870, 1.442695
        %v3288 = vpow.pop %v3287
        %v3289 = vmul.f32 %v2871, 1.442695
        %v3290 = vpow.pop %v3289
        %v3291 = vmul.f32 %v2872, 1.442695
        %v3292 = vpow.pop %v3291
        %v3293 = vmul.f32 %v2873, 1.442695
        %v3294 = vpow.pop %v3293
        %v3295 = vmul.f32 %v2874, 1.442695
        %v3296 = vpow.pop %v3295
        %v3297 = vmul.f32 %v2875, 1.442695
        %v3298 = vpow.pop %v3297
        %v3299 = vmul.f32 %v2876, 1.442695
        %v3300 = vpow.pop %v3299
        %v3301 = vmul.f32 %v2877, 1.442695
        %v3302 = vpow.pop %v3301
        %v3303 = vmul.f32 %v2878, 1.442695
        %v3304 = vpow.pop %v3303
        %v3305 = vmul.f32 %v2879, 1.442695
        %v3306 = vpow.pop %v3305
        %v3307 = vmul.f32 %v2880, 1.442695
        %v3308 = vpow.pop %v3307
        %v3309 = vmul.f32 %v2881, 1.442695
        %v3310 = vpow.pop %v3309
        %v3311 = vmul.f32 %v2882, 1.442695
        %v3312 = vpow.pop %v3311
        %v3313 = vmul.f32 %v2883, 1.442695
        %v3314 = vpow.pop %v3313
        %v3315 = vmul.f32 %v2884, 1.442695
        %v3316 = vpow.pop %v3315
        %v3317 = vmul.f32 %v2885, 1.442695
        %v3318 = vpow.pop %v3317
        %v3319 = vmul.f32 %v2886, 1.442695
        %v3320 = vpow.pop %v3319
        %v3321 = vmul.f32 %v2887, 1.442695
        %v3322 = vpow.pop %v3321
        %v3323 = vmul.f32 %v2888, 1.442695
        %v3324 = vpow.pop %v3323
        %v3325 = vmul.f32 %v2889, 1.442695
        %v3326 = vpow.pop %v3325
        %v3327 = vmul.f32 %v2890, 1.442695
        %v3328 = vpow.pop %v3327
        %v3329 = vmul.f32 %v2891, 1.442695
        %v3330 = vpow.pop %v3329
        %v3331 = vmul.f32 %v2892, 1.442695
        %v3332 = vpow.pop %v3331
        %v3333 = vmul.f32 %v2893, 1.442695
        %v3334 = vpow.pop %v3333
        %v3335 = vmul.f32 %v2894, 1.442695
        %v3336 = vpow.pop %v3335
        %v3337 = vmul.f32 %v2895, 1.442695
        %v3338 = vpow.pop %v3337
        %v3339 = vmul.f32 %v2896, 1.442695
        %v3340 = vpow.pop %v3339
        %v3341 = vmul.f32 %v2897, 1.442695
        %v3342 = vpow.pop %v3341
        %v3343 = vmul.f32 %v2898, 1.442695
        %v3344 = vpow.pop %v3343
        %v3345 = vmul.f32 %v2899, 1.442695
        %v3346 = vpow.pop %v3345
        %v3347 = vmul.f32 %v2900, 1.442695
        %v3348 = vpow.pop %v3347
        %v3349 = vmul.f32 %v2901, 1.442695
        %v3350 = vpow.pop %v3349
        %v3351 = vmul.f32 %v2902, 1.442695
        %v3352 = vpow.pop %v3351
        %v3353 = vmul.f32 %v2903, 1.442695
        %v3354 = vpow.pop %v3353
        %v3355 = vmul.f32 %v2904, 1.442695
        %v3356 = vpow.pop %v3355
        %v3357 = vmul.f32 %v2905, 1.442695
        %v3358 = vpow.pop %v3357
        %v3359 = vmul.f32 %v2906, 1.442695
        %v3360 = vpow.pop %v3359
        %v3361 = vmul.f32 %v2907, 1.442695
        %v3362 = vpow.pop %v3361
        %v3363 = vmul.f32 %v2908, 1.442695
        %v3364 = vpow.pop %v3363
        %v3365 = vmul.f32 %v2909, 1.442695
        %v3366 = vpow.pop %v3365
        %v3367 = vmul.f32 %v2910, 1.442695
        %v3368 = vpow.pop %v3367
        %v3369 = vmul.f32 %v2911, 1.442695
        %v3370 = vpow.pop %v3369
        %v3371 = vmul.f32 %v2912, 1.442695
        %v3372 = vpow.pop %v3371
        %v3373 = vmul.f32 %v2913, 1.442695
        %v3374 = vpow.pop %v3373
        %v3375 = vmul.f32 %v2914, 1.442695
        %v3376 = vpow.pop %v3375
        %v3377 = vmul.f32 %v2915, 1.442695
        %v3378 = vpow.pop %v3377
        %v3379 = vmul.f32 %v2916, 1.442695
        %v3380 = vpow.pop %v3379
        %v3381 = vmul.f32 %v2917, 1.442695
        %v3382 = vpow.pop %v3381
        %v3383 = vmul.f32 %v2918, 1.442695
        %v3384 = vpow.pop %v3383
        %v3385 = vmul.f32 %v2919, 1.442695
        %v3386 = vpow.pop %v3385
        %v3387 = vmul.f32 %v2920, 1.442695
        %v3388 = vpow.pop %v3387
        %v3389 = vmul.f32 %v2921, 1.442695
        %v3390 = vpow.pop %v3389
        %v3391 = vmul.f32 %v2922, 1.442695
        %v3392 = vpow.pop %v3391
        %v3393 = vmul.f32 %v2923, 1.442695
        %v3394 = vpow.pop %v3393
        %v3395 = vmul.f32 %v2924, 1.442695
        %v3396 = vpow.pop %v3395
        %v3397 = vmul.f32 %v2925, 1.442695
        %v3398 = vpow.pop %v3397
        %v3399 = vmul.f32 %v2926, 1.442695
        %v3400 = vpow.pop %v3399
        %v3401 = vmul.f32 %v2927, 1.442695
        %v3402 = vpow.pop %v3401
        %v3403 = vmul.f32 %v2928, 1.442695
        %v3404 = vpow.pop %v3403
        %v3405 = vmul.f32 %v2929, 1.442695
        %v3406 = vpow.pop %v3405
        %v3407 = vmul.f32 %v2930, 1.442695
        %v3408 = vpow.pop %v3407
        %v3409 = vmul.f32 %v2931, 1.442695
        %v3410 = vpow.pop %v3409
        %v3411 = vmul.f32 %v2932, 1.442695
        %v3412 = vpow.pop %v3411
        %v3413 = vmul.f32 %v2933, 1.442695
        %v3414 = vpow.pop %v3413
        %v3415 = vmul.f32 %v2934, 1.442695
        %v3416 = vpow.pop %v3415
        %v3417 = vmul.f32 %v2935, 1.442695
        %v3418 = vpow.pop %v3417
        %v3419 = vmul.f32 %v2936, 1.442695
        %v3420 = vpow.pop %v3419
        %v3421 = vmul.f32 %v2937, 1.442695
        %v3422 = vpow.pop %v3421
        %v3423 = vmul.f32 %v2938, 1.442695
        %v3424 = vpow.pop %v3423
        %v3425 = vmul.f32 %v2939, 1.442695
        %v3426 = vpow.pop %v3425
        %v3427 = vmul.f32 %v2940, 1.442695
        %v3428 = vpow.pop %v3427
        %v3429 = vmul.f32 %v2941, 1.442695
        %v3430 = vpow.pop %v3429
        %v3431 = vmul.f32 %v2942, 1.442695
        %v3432 = vpow.pop %v3431
        %v3433 = vmul.f32 %v2943, 1.442695
        %v3434 = vpow.pop %v3433
        %v3435 = vmul.f32 %v2944, 1.442695
        %v3436 = vpow.pop %v3435
        %v3437 = vmul.f32 %v2945, 1.442695
        %v3438 = vpow.pop %v3437
        %v3439 = vmul.f32 %v2946, 1.442695
        %v3440 = vpow.pop %v3439
        %v3441 = vmul.f32 %v2947, 1.442695
        %v3442 = vpow.pop %v3441
        %v3443 = vmul.f32 %v2948, 1.442695
        %v3444 = vpow.pop %v3443
        %v3445 = vmul.f32 %v2949, 1.442695
        %v3446 = vpow.pop %v3445
        %v3447 = vmul.f32 %v2950, 1.442695
        %v3448 = vpow.pop %v3447
        %v3449 = vmul.f32 %v2951, 1.442695
        %v3450 = vpow.pop %v3449
        %v3451 = vmul.f32 %v2952, 1.442695
        %v3452 = vpow.pop %v3451
        %v3453 = vmul.f32 %v2953, 1.442695
        %v3454 = vpow.pop %v3453
        %v3455 = vmul.f32 %v2954, 1.442695
        %v3456 = vpow.pop %v3455
        %v3457 = vmul.f32 %v2955, 1.442695
        %v3458 = vpow.pop %v3457
        %v3459 = vmul.f32 %v2956, 1.442695
        %v3460 = vpow.pop %v3459
        %v3461 = vstv %s2702
        %v3462 = vmul.f32 %v3461, %v2958
        %v3463 = vmul.f32 %v3461, %v2960
        %v3464 = vmul.f32 %v3461, %v2962
        %v3465 = vmul.f32 %v3461, %v2964
        %v3466 = vmul.f32 %v3461, %v2966
        %v3467 = vmul.f32 %v3461, %v2968
        %v3468 = vmul.f32 %v3461, %v2970
        %v3469 = vmul.f32 %v3461, %v2972
        %v3470 = vmul.f32 %v3461, %v2974
        %v3471 = vmul.f32 %v3461, %v2976
        %v3472 = vmul.f32 %v3461, %v2978
        %v3473 = vmul.f32 %v3461, %v2980
        %v3474 = vmul.f32 %v3461, %v2982
        %v3475 = vmul.f32 %v3461, %v2984
        %v3476 = vmul.f32 %v3461, %v2986
        %v3477 = vmul.f32 %v3461, %v2988
        %v3478 = vmul.f32 %v3461, %v2990
        %v3479 = vmul.f32 %v3461, %v2992
        %v3480 = vmul.f32 %v3461, %v2994
        %v3481 = vmul.f32 %v3461, %v2996
        %v3482 = vmul.f32 %v3461, %v2998
        %v3483 = vmul.f32 %v3461, %v3000
        %v3484 = vmul.f32 %v3461, %v3002
        %v3485 = vmul.f32 %v3461, %v3004
        %v3486 = vmul.f32 %v3461, %v3006
        %v3487 = vmul.f32 %v3461, %v3008
        %v3488 = vmul.f32 %v3461, %v3010
        %v3489 = vmul.f32 %v3461, %v3012
        %v3490 = vmul.f32 %v3461, %v3014
        %v3491 = vmul.f32 %v3461, %v3016
        %v3492 = vmul.f32 %v3461, %v3018
        %v3493 = vmul.f32 %v3461, %v3020
        %v3494 = vmul.f32 %v3461, %v3022
        %v3495 = vmul.f32 %v3461, %v3024
        %v3496 = vmul.f32 %v3461, %v3026
        %v3497 = vmul.f32 %v3461, %v3028
        %v3498 = vmul.f32 %v3461, %v3030
        %v3499 = vmul.f32 %v3461, %v3032
        %v3500 = vmul.f32 %v3461, %v3034
        %v3501 = vmul.f32 %v3461, %v3036
        %v3502 = vmul.f32 %v3461, %v3038
        %v3503 = vmul.f32 %v3461, %v3040
        %v3504 = vmul.f32 %v3461, %v3042
        %v3505 = vmul.f32 %v3461, %v3044
        %v3506 = vmul.f32 %v3461, %v3046
        %v3507 = vmul.f32 %v3461, %v3048
        %v3508 = vmul.f32 %v3461, %v3050
        %v3509 = vmul.f32 %v3461, %v3052
        %v3510 = vmul.f32 %v3461, %v3054
        %v3511 = vmul.f32 %v3461, %v3056
        %v3512 = vmul.f32 %v3461, %v3058
        %v3513 = vmul.f32 %v3461, %v3060
        %v3514 = vmul.f32 %v3461, %v3062
        %v3515 = vmul.f32 %v3461, %v3064
        %v3516 = vmul.f32 %v3461, %v3066
        %v3517 = vmul.f32 %v3461, %v3068
        %v3518 = vmul.f32 %v3461, %v3070
        %v3519 = vmul.f32 %v3461, %v3072
        %v3520 = vmul.f32 %v3461, %v3074
        %v3521 = vmul.f32 %v3461, %v3076
        %v3522 = vmul.f32 %v3461, %v3078
        %v3523 = vmul.f32 %v3461, %v3080
        %v3524 = vmul.f32 %v3461, %v3082
        %v3525 = vmul.f32 %v3461, %v3084
        %v3526 = vmul.f32 %v3461, %v3086
        %v3527 = vmul.f32 %v3461, %v3088
        %v3528 = vmul.f32 %v3461, %v3090
        %v3529 = vmul.f32 %v3461, %v3092
        %v3530 = vmul.f32 %v3461, %v3094
        %v3531 = vmul.f32 %v3461, %v3096
        %v3532 = vmul.f32 %v3461, %v3098
        %v3533 = vmul.f32 %v3461, %v3100
        %v3534 = vmul.f32 %v3461, %v3102
        %v3535 = vmul.f32 %v3461, %v3104
        %v3536 = vmul.f32 %v3461, %v3106
        %v3537 = vmul.f32 %v3461, %v3108
        %v3538 = vmul.f32 %v3461, %v3110
        %v3539 = vmul.f32 %v3461, %v3112
        %v3540 = vmul.f32 %v3461, %v3114
        %v3541 = vmul.f32 %v3461, %v3116
        %v3542 = vmul.f32 %v3461, %v3118
        %v3543 = vmul.f32 %v3461, %v3120
        %v3544 = vmul.f32 %v3461, %v3122
        %v3545 = vmul.f32 %v3461, %v3124
        %v3546 = vmul.f32 %v3461, %v3126
        %v3547 = vmul.f32 %v3461, %v3128
        %v3548 = vmul.f32 %v3461, %v3130
        %v3549 = vmul.f32 %v3461, %v3132
        %v3550 = vmul.f32 %v3461, %v3134
        %v3551 = vmul.f32 %v3461, %v3136
        %v3552 = vmul.f32 %v3461, %v3138
        %v3553 = vmul.f32 %v3461, %v3140
        %v3554 = vmul.f32 %v3461, %v3142
        %v3555 = vmul.f32 %v3461, %v3144
        %v3556 = vmul.f32 %v3461, %v3146
        %v3557 = vmul.f32 %v3461, %v3148
        %v3558 = vmul.f32 %v3461, %v3150
        %v3559 = vmul.f32 %v3461, %v3152
        %v3560 = vmul.f32 %v3461, %v3154
        %v3561 = vmul.f32 %v3461, %v3156
        %v3562 = vmul.f32 %v3461, %v3158
        %v3563 = vmul.f32 %v3461, %v3160
        %v3564 = vmul.f32 %v3461, %v3162
        %v3565 = vmul.f32 %v3461, %v3164
        %v3566 = vmul.f32 %v3461, %v3166
        %v3567 = vmul.f32 %v3461, %v3168
        %v3568 = vmul.f32 %v3461, %v3170
        %v3569 = vmul.f32 %v3461, %v3172
        %v3570 = vmul.f32 %v3461, %v3174
        %v3571 = vmul.f32 %v3461, %v3176
        %v3572 = vmul.f32 %v3461, %v3178
        %v3573 = vmul.f32 %v3461, %v3180
        %v3574 = vmul.f32 %v3461, %v3182
        %v3575 = vmul.f32 %v3461, %v3184
        %v3576 = vmul.f32 %v3461, %v3186
        %v3577 = vmul.f32 %v3461, %v3188
        %v3578 = vmul.f32 %v3461, %v3190
        %v3579 = vmul.f32 %v3461, %v3192
        %v3580 = vmul.f32 %v3461, %v3194
        %v3581 = vmul.f32 %v3461, %v3196
        %v3582 = vmul.f32 %v3461, %v3198
        %v3583 = vmul.f32 %v3461, %v3200
        %v3584 = vmul.f32 %v3461, %v3202
        %v3585 = vmul.f32 %v3461, %v3204
        %v3586 = vmul.f32 %v3461, %v3206
        %v3587 = vmul.f32 %v3461, %v3208
        %v3588 = vmul.f32 %v3461, %v3210
        %v3589 = vmul.f32 %v3461, %v3212
        %v3590 = vmul.f32 %v3461, %v3214
        %v3591 = vmul.f32 %v3461, %v3216
        %v3592 = vmul.f32 %v3461, %v3218
        %v3593 = vmul.f32 %v3461, %v3220
        %v3594 = vmul.f32 %v3461, %v3222
        %v3595 = vmul.f32 %v3461, %v3224
        %v3596 = vmul.f32 %v3461, %v3226
        %v3597 = vmul.f32 %v3461, %v3228
        %v3598 = vmul.f32 %v3461, %v3230
        %v3599 = vmul.f32 %v3461, %v3232
        %v3600 = vmul.f32 %v3461, %v3234
        %v3601 = vmul.f32 %v3461, %v3236
        %v3602 = vmul.f32 %v3461, %v3238
        %v3603 = vmul.f32 %v3461, %v3240
        %v3604 = vmul.f32 %v3461, %v3242
        %v3605 = vmul.f32 %v3461, %v3244
        %v3606 = vmul.f32 %v3461, %v3246
        %v3607 = vmul.f32 %v3461, %v3248
        %v3608 = vmul.f32 %v3461, %v3250
        %v3609 = vmul.f32 %v3461, %v3252
        %v3610 = vmul.f32 %v3461, %v3254
        %v3611 = vmul.f32 %v3461, %v3256
        %v3612 = vmul.f32 %v3461, %v3258
        %v3613 = vmul.f32 %v3461, %v3260
        %v3614 = vmul.f32 %v3461, %v3262
        %v3615 = vmul.f32 %v3461, %v3264
        %v3616 = vmul.f32 %v3461, %v3266
        %v3617 = vmul.f32 %v3461, %v3268
        %v3618 = vmul.f32 %v3461, %v3270
        %v3619 = vmul.f32 %v3461, %v3272
        %v3620 = vmul.f32 %v3461, %v3274
        %v3621 = vmul.f32 %v3461, %v3276
        %v3622 = vmul.f32 %v3461, %v3278
        %v3623 = vmul.f32 %v3461, %v3280
        %v3624 = vmul.f32 %v3461, %v3282
        %v3625 = vmul.f32 %v3461, %v3284
        %v3626 = vmul.f32 %v3461, %v3286
        %v3627 = vmul.f32 %v3461, %v3288
        %v3628 = vmul.f32 %v3461, %v3290
        %v3629 = vmul.f32 %v3461, %v3292
        %v3630 = vmul.f32 %v3461, %v3294
        %v3631 = vmul.f32 %v3461, %v3296
        %v3632 = vmul.f32 %v3461, %v3298
        %v3633 = vmul.f32 %v3461, %v3300
        %v3634 = vmul.f32 %v3461, %v3302
        %v3635 = vmul.f32 %v3461, %v3304
        %v3636 = vmul.f32 %v3461, %v3306
        %v3637 = vmul.f32 %v3461, %v3308
        %v3638 = vmul.f32 %v3461, %v3310
        %v3639 = vmul.f32 %v3461, %v3312
        %v3640 = vmul.f32 %v3461, %v3314
        %v3641 = vmul.f32 %v3461, %v3316
        %v3642 = vmul.f32 %v3461, %v3318
        %v3643 = vmul.f32 %v3461, %v3320
        %v3644 = vmul.f32 %v3461, %v3322
        %v3645 = vmul.f32 %v3461, %v3324
        %v3646 = vmul.f32 %v3461, %v3326
        %v3647 = vmul.f32 %v3461, %v3328
        %v3648 = vmul.f32 %v3461, %v3330
        %v3649 = vmul.f32 %v3461, %v3332
        %v3650 = vmul.f32 %v3461, %v3334
        %v3651 = vmul.f32 %v3461, %v3336
        %v3652 = vmul.f32 %v3461, %v3338
        %v3653 = vmul.f32 %v3461, %v3340
        %v3654 = vmul.f32 %v3461, %v3342
        %v3655 = vmul.f32 %v3461, %v3344
        %v3656 = vmul.f32 %v3461, %v3346
        %v3657 = vmul.f32 %v3461, %v3348
        %v3658 = vmul.f32 %v3461, %v3350
        %v3659 = vmul.f32 %v3461, %v3352
        %v3660 = vmul.f32 %v3461, %v3354
        %v3661 = vmul.f32 %v3461, %v3356
        %v3662 = vmul.f32 %v3461, %v3358
        %v3663 = vmul.f32 %v3461, %v3360
        %v3664 = vmul.f32 %v3461, %v3362
        %v3665 = vmul.f32 %v3461, %v3364
        %v3666 = vmul.f32 %v3461, %v3366
        %v3667 = vmul.f32 %v3461, %v3368
        %v3668 = vmul.f32 %v3461, %v3370
        %v3669 = vmul.f32 %v3461, %v3372
        %v3670 = vmul.f32 %v3461, %v3374
        %v3671 = vmul.f32 %v3461, %v3376
        %v3672 = vmul.f32 %v3461, %v3378
        %v3673 = vmul.f32 %v3461, %v3380
        %v3674 = vmul.f32 %v3461, %v3382
        %v3675 = vmul.f32 %v3461, %v3384
        %v3676 = vmul.f32 %v3461, %v3386
        %v3677 = vmul.f32 %v3461, %v3388
        %v3678 = vmul.f32 %v3461, %v3390
        %v3679 = vmul.f32 %v3461, %v3392
        %v3680 = vmul.f32 %v3461, %v3394
        %v3681 = vmul.f32 %v3461, %v3396
        %v3682 = vmul.f32 %v3461, %v3398
        %v3683 = vmul.f32 %v3461, %v3400
        %v3684 = vmul.f32 %v3461, %v3402
        %v3685 = vmul.f32 %v3461, %v3404
        %v3686 = vmul.f32 %v3461, %v3406
        %v3687 = vmul.f32 %v3461, %v3408
        %v3688 = vmul.f32 %v3461, %v3410
        %v3689 = vmul.f32 %v3461, %v3412
        %v3690 = vmul.f32 %v3461, %v3414
        %v3691 = vmul.f32 %v3461, %v3416
        %v3692 = vmul.f32 %v3461, %v3418
        %v3693 = vmul.f32 %v3461, %v3420
        %v3694 = vmul.f32 %v3461, %v3422
        %v3695 = vmul.f32 %v3461, %v3424
        %v3696 = vmul.f32 %v3461, %v3426
        %v3697 = vmul.f32 %v3461, %v3428
        %v3698 = vmul.f32 %v3461, %v3430
        %v3699 = vmul.f32 %v3461, %v3432
        %v3700 = vmul.f32 %v3461, %v3434
        %v3701 = vmul.f32 %v3461, %v3436
        %v3702 = vmul.f32 %v3461, %v3438
        %v3703 = vmul.f32 %v3461, %v3440
        %v3704 = vmul.f32 %v3461, %v3442
        %v3705 = vmul.f32 %v3461, %v3444
        %v3706 = vmul.f32 %v3461, %v3446
        %v3707 = vmul.f32 %v3461, %v3448
        %v3708 = vmul.f32 %v3461, %v3450
        %v3709 = vmul.f32 %v3461, %v3452
        %v3710 = vmul.f32 %v3461, %v3454
        %v3711 = vmul.f32 %v3461, %v3456
        %v3712 = vmul.f32 %v3461, %v3458
        %v3713 = vmul.f32 %v3461, %v3460
        %v3714 = vadd.f32 %v2450, %v3462
        %v3715 = vadd.f32 %v2451, %v3463
        %v3716 = vadd.f32 %v2452, %v3464
        %v3717 = vadd.f32 %v2453, %v3465
        %v3718 = vadd.f32 %v2454, %v3466
        %v3719 = vadd.f32 %v2455, %v3467
        %v3720 = vadd.f32 %v2456, %v3468
        %v3721 = vadd.f32 %v2457, %v3469
        %v3722 = vadd.f32 %v2458, %v3470
        %v3723 = vadd.f32 %v2459, %v3471
        %v3724 = vadd.f32 %v2460, %v3472
        %v3725 = vadd.f32 %v2461, %v3473
        %v3726 = vadd.f32 %v2462, %v3474
        %v3727 = vadd.f32 %v2463, %v3475
        %v3728 = vadd.f32 %v2464, %v3476
        %v3729 = vadd.f32 %v2465, %v3477
        %v3730 = vadd.f32 %v2466, %v3478
        %v3731 = vadd.f32 %v2467, %v3479
        %v3732 = vadd.f32 %v2468, %v3480
        %v3733 = vadd.f32 %v2469, %v3481
        %v3734 = vadd.f32 %v2470, %v3482
        %v3735 = vadd.f32 %v2471, %v3483
        %v3736 = vadd.f32 %v2472, %v3484
        %v3737 = vadd.f32 %v2473, %v3485
        %v3738 = vadd.f32 %v2474, %v3486
        %v3739 = vadd.f32 %v2475, %v3487
        %v3740 = vadd.f32 %v2476, %v3488
        %v3741 = vadd.f32 %v2477, %v3489
        %v3742 = vadd.f32 %v2478, %v3490
        %v3743 = vadd.f32 %v2479, %v3491
        %v3744 = vadd.f32 %v2480, %v3492
        %v3745 = vadd.f32 %v2481, %v3493
        %v3746 = vadd.f32 %v2482, %v3494
        %v3747 = vadd.f32 %v2483, %v3495
        %v3748 = vadd.f32 %v2484, %v3496
        %v3749 = vadd.f32 %v2485, %v3497
        %v3750 = vadd.f32 %v2486, %v3498
        %v3751 = vadd.f32 %v2487, %v3499
        %v3752 = vadd.f32 %v2488, %v3500
        %v3753 = vadd.f32 %v2489, %v3501
        %v3754 = vadd.f32 %v2490, %v3502
        %v3755 = vadd.f32 %v2491, %v3503
        %v3756 = vadd.f32 %v2492, %v3504
        %v3757 = vadd.f32 %v2493, %v3505
        %v3758 = vadd.f32 %v2494, %v3506
        %v3759 = vadd.f32 %v2495, %v3507
        %v3760 = vadd.f32 %v2496, %v3508
        %v3761 = vadd.f32 %v2497, %v3509
        %v3762 = vadd.f32 %v2498, %v3510
        %v3763 = vadd.f32 %v2499, %v3511
        %v3764 = vadd.f32 %v2500, %v3512
        %v3765 = vadd.f32 %v2501, %v3513
        %v3766 = vadd.f32 %v2502, %v3514
        %v3767 = vadd.f32 %v2503, %v3515
        %v3768 = vadd.f32 %v2504, %v3516
        %v3769 = vadd.f32 %v2505, %v3517
        %v3770 = vadd.f32 %v2506, %v3518
        %v3771 = vadd.f32 %v2507, %v3519
        %v3772 = vadd.f32 %v2508, %v3520
        %v3773 = vadd.f32 %v2509, %v3521
        %v3774 = vadd.f32 %v2510, %v3522
        %v3775 = vadd.f32 %v2511, %v3523
        %v3776 = vadd.f32 %v2512, %v3524
        %v3777 = vadd.f32 %v2513, %v3525
        %v3778 = vadd.f32 %v2514, %v3526
        %v3779 = vadd.f32 %v2515, %v3527
        %v3780 = vadd.f32 %v2516, %v3528
        %v3781 = vadd.f32 %v2517, %v3529
        %v3782 = vadd.f32 %v2518, %v3530
        %v3783 = vadd.f32 %v2519, %v3531
        %v3784 = vadd.f32 %v2520, %v3532
        %v3785 = vadd.f32 %v2521, %v3533
        %v3786 = vadd.f32 %v2522, %v3534
        %v3787 = vadd.f32 %v2523, %v3535
        %v3788 = vadd.f32 %v2524, %v3536
        %v3789 = vadd.f32 %v2525, %v3537
        %v3790 = vadd.f32 %v2526, %v3538
        %v3791 = vadd.f32 %v2527, %v3539
        %v3792 = vadd.f32 %v2528, %v3540
        %v3793 = vadd.f32 %v2529, %v3541
        %v3794 = vadd.f32 %v2530, %v3542
        %v3795 = vadd.f32 %v2531, %v3543
        %v3796 = vadd.f32 %v2532, %v3544
        %v3797 = vadd.f32 %v2533, %v3545
        %v3798 = vadd.f32 %v2534, %v3546
        %v3799 = vadd.f32 %v2535, %v3547
        %v3800 = vadd.f32 %v2536, %v3548
        %v3801 = vadd.f32 %v2537, %v3549
        %v3802 = vadd.f32 %v2538, %v3550
        %v3803 = vadd.f32 %v2539, %v3551
        %v3804 = vadd.f32 %v2540, %v3552
        %v3805 = vadd.f32 %v2541, %v3553
        %v3806 = vadd.f32 %v2542, %v3554
        %v3807 = vadd.f32 %v2543, %v3555
        %v3808 = vadd.f32 %v2544, %v3556
        %v3809 = vadd.f32 %v2545, %v3557
        %v3810 = vadd.f32 %v2546, %v3558
        %v3811 = vadd.f32 %v2547, %v3559
        %v3812 = vadd.f32 %v2548, %v3560
        %v3813 = vadd.f32 %v2549, %v3561
        %v3814 = vadd.f32 %v2550, %v3562
        %v3815 = vadd.f32 %v2551, %v3563
        %v3816 = vadd.f32 %v2552, %v3564
        %v3817 = vadd.f32 %v2553, %v3565
        %v3818 = vadd.f32 %v2554, %v3566
        %v3819 = vadd.f32 %v2555, %v3567
        %v3820 = vadd.f32 %v2556, %v3568
        %v3821 = vadd.f32 %v2557, %v3569
        %v3822 = vadd.f32 %v2558, %v3570
        %v3823 = vadd.f32 %v2559, %v3571
        %v3824 = vadd.f32 %v2560, %v3572
        %v3825 = vadd.f32 %v2561, %v3573
        %v3826 = vadd.f32 %v2562, %v3574
        %v3827 = vadd.f32 %v2563, %v3575
        %v3828 = vadd.f32 %v2564, %v3576
        %v3829 = vadd.f32 %v2565, %v3577
        %v3830 = vadd.f32 %v2566, %v3578
        %v3831 = vadd.f32 %v2567, %v3579
        %v3832 = vadd.f32 %v2568, %v3580
        %v3833 = vadd.f32 %v2569, %v3581
        %v3834 = vadd.f32 %v2570, %v3582
        %v3835 = vadd.f32 %v2571, %v3583
        %v3836 = vadd.f32 %v2572, %v3584
        %v3837 = vadd.f32 %v2573, %v3585
        %v3838 = vadd.f32 %v2574, %v3586
        %v3839 = vadd.f32 %v2575, %v3587
        %v3840 = vadd.f32 %v2576, %v3588
        %v3841 = vadd.f32 %v2577, %v3589
        %v3842 = vadd.f32 %v2578, %v3590
        %v3843 = vadd.f32 %v2579, %v3591
        %v3844 = vadd.f32 %v2580, %v3592
        %v3845 = vadd.f32 %v2581, %v3593
        %v3846 = vadd.f32 %v2582, %v3594
        %v3847 = vadd.f32 %v2583, %v3595
        %v3848 = vadd.f32 %v2584, %v3596
        %v3849 = vadd.f32 %v2585, %v3597
        %v3850 = vadd.f32 %v2586, %v3598
        %v3851 = vadd.f32 %v2587, %v3599
        %v3852 = vadd.f32 %v2588, %v3600
        %v3853 = vadd.f32 %v2589, %v3601
        %v3854 = vadd.f32 %v2590, %v3602
        %v3855 = vadd.f32 %v2591, %v3603
        %v3856 = vadd.f32 %v2592, %v3604
        %v3857 = vadd.f32 %v2593, %v3605
        %v3858 = vadd.f32 %v2594, %v3606
        %v3859 = vadd.f32 %v2595, %v3607
        %v3860 = vadd.f32 %v2596, %v3608
        %v3861 = vadd.f32 %v2597, %v3609
        %v3862 = vadd.f32 %v2598, %v3610
        %v3863 = vadd.f32 %v2599, %v3611
        %v3864 = vadd.f32 %v2600, %v3612
        %v3865 = vadd.f32 %v2601, %v3613
        %v3866 = vadd.f32 %v2602, %v3614
        %v3867 = vadd.f32 %v2603, %v3615
        %v3868 = vadd.f32 %v2604, %v3616
        %v3869 = vadd.f32 %v2605, %v3617
        %v3870 = vadd.f32 %v2606, %v3618
        %v3871 = vadd.f32 %v2607, %v3619
        %v3872 = vadd.f32 %v2608, %v3620
        %v3873 = vadd.f32 %v2609, %v3621
        %v3874 = vadd.f32 %v2610, %v3622
        %v3875 = vadd.f32 %v2611, %v3623
        %v3876 = vadd.f32 %v2612, %v3624
        %v3877 = vadd.f32 %v2613, %v3625
        %v3878 = vadd.f32 %v2614, %v3626
        %v3879 = vadd.f32 %v2615, %v3627
        %v3880 = vadd.f32 %v2616, %v3628
        %v3881 = vadd.f32 %v2617, %v3629
        %v3882 = vadd.f32 %v2618, %v3630
        %v3883 = vadd.f32 %v2619, %v3631
        %v3884 = vadd.f32 %v2620, %v3632
        %v3885 = vadd.f32 %v2621, %v3633
        %v3886 = vadd.f32 %v2622, %v3634
        %v3887 = vadd.f32 %v2623, %v3635
        %v3888 = vadd.f32 %v2624, %v3636
        %v3889 = vadd.f32 %v2625, %v3637
        %v3890 = vadd.f32 %v2626, %v3638
        %v3891 = vadd.f32 %v2627, %v3639
        %v3892 = vadd.f32 %v2628, %v3640
        %v3893 = vadd.f32 %v2629, %v3641
        %v3894 = vadd.f32 %v2630, %v3642
        %v3895 = vadd.f32 %v2631, %v3643
        %v3896 = vadd.f32 %v2632, %v3644
        %v3897 = vadd.f32 %v2633, %v3645
        %v3898 = vadd.f32 %v2634, %v3646
        %v3899 = vadd.f32 %v2635, %v3647
        %v3900 = vadd.f32 %v2636, %v3648
        %v3901 = vadd.f32 %v2637, %v3649
        %v3902 = vadd.f32 %v2638, %v3650
        %v3903 = vadd.f32 %v2639, %v3651
        %v3904 = vadd.f32 %v2640, %v3652
        %v3905 = vadd.f32 %v2641, %v3653
        %v3906 = vadd.f32 %v2642, %v3654
        %v3907 = vadd.f32 %v2643, %v3655
        %v3908 = vadd.f32 %v2644, %v3656
        %v3909 = vadd.f32 %v2645, %v3657
        %v3910 = vadd.f32 %v2646, %v3658
        %v3911 = vadd.f32 %v2647, %v3659
        %v3912 = vadd.f32 %v2648, %v3660
        %v3913 = vadd.f32 %v2649, %v3661
        %v3914 = vadd.f32 %v2650, %v3662
        %v3915 = vadd.f32 %v2651, %v3663
        %v3916 = vadd.f32 %v2652, %v3664
        %v3917 = vadd.f32 %v2653, %v3665
        %v3918 = vadd.f32 %v2654, %v3666
        %v3919 = vadd.f32 %v2655, %v3667
        %v3920 = vadd.f32 %v2656, %v3668
        %v3921 = vadd.f32 %v2657, %v3669
        %v3922 = vadd.f32 %v2658, %v3670
        %v3923 = vadd.f32 %v2659, %v3671
        %v3924 = vadd.f32 %v2660, %v3672
        %v3925 = vadd.f32 %v2661, %v3673
        %v3926 = vadd.f32 %v2662, %v3674
        %v3927 = vadd.f32 %v2663, %v3675
        %v3928 = vadd.f32 %v2664, %v3676
        %v3929 = vadd.f32 %v2665, %v3677
        %v3930 = vadd.f32 %v2666, %v3678
        %v3931 = vadd.f32 %v2667, %v3679
        %v3932 = vadd.f32 %v2668, %v3680
        %v3933 = vadd.f32 %v2669, %v3681
        %v3934 = vadd.f32 %v2670, %v3682
        %v3935 = vadd.f32 %v2671, %v3683
        %v3936 = vadd.f32 %v2672, %v3684
        %v3937 = vadd.f32 %v2673, %v3685
        %v3938 = vadd.f32 %v2674, %v3686
        %v3939 = vadd.f32 %v2675, %v3687
        %v3940 = vadd.f32 %v2676, %v3688
        %v3941 = vadd.f32 %v2677, %v3689
        %v3942 = vadd.f32 %v2678, %v3690
        %v3943 = vadd.f32 %v2679, %v3691
        %v3944 = vadd.f32 %v2680, %v3692
        %v3945 = vadd.f32 %v2681, %v3693
        %v3946 = vadd.f32 %v2682, %v3694
        %v3947 = vadd.f32 %v2683, %v3695
        %v3948 = vadd.f32 %v2684, %v3696
        %v3949 = vadd.f32 %v2685, %v3697
        %v3950 = vadd.f32 %v2686, %v3698
        %v3951 = vadd.f32 %v2687, %v3699
        %v3952 = vadd.f32 %v2688, %v3700
        %v3953 = vadd.f32 %v2689, %v3701
        %v3954 = vadd.f32 %v2690, %v3702
        %v3955 = vadd.f32 %v2691, %v3703
        %v3956 = vadd.f32 %v2692, %v3704
        %v3957 = vadd.f32 %v2693, %v3705
        %v3958 = vadd.f32 %v2694, %v3706
        %v3959 = vadd.f32 %v2695, %v3707
        %v3960 = vadd.f32 %v2696, %v3708
        %v3961 = vadd.f32 %v2697, %v3709
        %v3962 = vadd.f32 %v2698, %v3710
        %v3963 = vadd.f32 %v2699, %v3711
        %v3964 = vadd.f32 %v2700, %v3712
        %v3965 = vadd.f32 %v2701, %v3713
        %3966 = vst [vmem:[%s268] sm:$0xff] %v3714
        %3967 = vst [vmem:[%s268 + $0x8] sm:$0xff] %v3715
        %3968 = vst [vmem:[%s268 + $0x10] sm:$0xff] %v3716
        %3969 = vst [vmem:[%s268 + $0x18] sm:$0xff] %v3717
        %3970 = vst [vmem:[%s268 + $0x20] sm:$0xff] %v3718
        %3971 = vst [vmem:[%s268 + $0x28] sm:$0xff] %v3719
        %3972 = vst [vmem:[%s268 + $0x30] sm:$0xff] %v3720
        %3973 = vst [vmem:[%s268 + $0x38] sm:$0xff] %v3721
        %3974 = vst [vmem:[%s268 + $0x40] sm:$0xff] %v3722
        %3975 = vst [vmem:[%s268 + $0x48] sm:$0xff] %v3723
        %3976 = vst [vmem:[%s268 + $0x50] sm:$0xff] %v3724
        %3977 = vst [vmem:[%s268 + $0x58] sm:$0xff] %v3725
        %3978 = vst [vmem:[%s268 + $0x60] sm:$0xff] %v3726
        %3979 = vst [vmem:[%s268 + $0x68] sm:$0xff] %v3727
        %3980 = vst [vmem:[%s268 + $0x70] sm:$0xff] %v3728
        %3981 = vst [vmem:[%s268 + $0x78] sm:$0xff] %v3729
        %3982 = vst [vmem:[%s268 + $0x80] sm:$0xff] %v3730
        %3983 = vst [vmem:[%s268 + $0x88] sm:$0xff] %v3731
        %3984 = vst [vmem:[%s268 + $0x90] sm:$0xff] %v3732
        %3985 = vst [vmem:[%s268 + $0x98] sm:$0xff] %v3733
        %3986 = vst [vmem:[%s268 + $0xa0] sm:$0xff] %v3734
        %3987 = vst [vmem:[%s268 + $0xa8] sm:$0xff] %v3735
        %3988 = vst [vmem:[%s268 + $0xb0] sm:$0xff] %v3736
        %3989 = vst [vmem:[%s268 + $0xb8] sm:$0xff] %v3737
        %3990 = vst [vmem:[%s268 + $0xc0] sm:$0xff] %v3738
        %3991 = vst [vmem:[%s268 + $0xc8] sm:$0xff] %v3739
        %3992 = vst [vmem:[%s268 + $0xd0] sm:$0xff] %v3740
        %3993 = vst [vmem:[%s268 + $0xd8] sm:$0xff] %v3741
        %3994 = vst [vmem:[%s268 + $0xe0] sm:$0xff] %v3742
        %3995 = vst [vmem:[%s268 + $0xe8] sm:$0xff] %v3743
        %3996 = vst [vmem:[%s268 + $0xf0] sm:$0xff] %v3744
        %3997 = vst [vmem:[%s268 + $0xf8] sm:$0xff] %v3745
        %3998 = vst [vmem:[%s268 + $0x100] sm:$0xff] %v3746
        %3999 = vst [vmem:[%s268 + $0x108] sm:$0xff] %v3747
        %4000 = vst [vmem:[%s268 + $0x110] sm:$0xff] %v3748
        %4001 = vst [vmem:[%s268 + $0x118] sm:$0xff] %v3749
        %4002 = vst [vmem:[%s268 + $0x120] sm:$0xff] %v3750
        %4003 = vst [vmem:[%s268 + $0x128] sm:$0xff] %v3751
        %4004 = vst [vmem:[%s268 + $0x130] sm:$0xff] %v3752
        %4005 = vst [vmem:[%s268 + $0x138] sm:$0xff] %v3753
        %4006 = vst [vmem:[%s268 + $0x140] sm:$0xff] %v3754
        %4007 = vst [vmem:[%s268 + $0x148] sm:$0xff] %v3755
        %4008 = vst [vmem:[%s268 + $0x150] sm:$0xff] %v3756
        %4009 = vst [vmem:[%s268 + $0x158] sm:$0xff] %v3757
        %4010 = vst [vmem:[%s268 + $0x160] sm:$0xff] %v3758
        %4011 = vst [vmem:[%s268 + $0x168] sm:$0xff] %v3759
        %4012 = vst [vmem:[%s268 + $0x170] sm:$0xff] %v3760
        %4013 = vst [vmem:[%s268 + $0x178] sm:$0xff] %v3761
        %4014 = vst [vmem:[%s268 + $0x180] sm:$0xff] %v3762
        %4015 = vst [vmem:[%s268 + $0x188] sm:$0xff] %v3763
        %4016 = vst [vmem:[%s268 + $0x190] sm:$0xff] %v3764
        %4017 = vst [vmem:[%s268 + $0x198] sm:$0xff] %v3765
        %4018 = vst [vmem:[%s268 + $0x1a0] sm:$0xff] %v3766
        %4019 = vst [vmem:[%s268 + $0x1a8] sm:$0xff] %v3767
        %4020 = vst [vmem:[%s268 + $0x1b0] sm:$0xff] %v3768
        %4021 = vst [vmem:[%s268 + $0x1b8] sm:$0xff] %v3769
        %4022 = vst [vmem:[%s268 + $0x1c0] sm:$0xff] %v3770
        %4023 = vst [vmem:[%s268 + $0x1c8] sm:$0xff] %v3771
        %4024 = vst [vmem:[%s268 + $0x1d0] sm:$0xff] %v3772
        %4025 = vst [vmem:[%s268 + $0x1d8] sm:$0xff] %v3773
        %4026 = vst [vmem:[%s268 + $0x1e0] sm:$0xff] %v3774
        %4027 = vst [vmem:[%s268 + $0x1e8] sm:$0xff] %v3775
        %4028 = vst [vmem:[%s268 + $0x1f0] sm:$0xff] %v3776
        %4029 = vst [vmem:[%s268 + $0x1f8] sm:$0xff] %v3777
        %4030 = vst [vmem:[%s268 + $0x200] sm:$0xff] %v3778
        %4031 = vst [vmem:[%s268 + $0x208] sm:$0xff] %v3779
        %4032 = vst [vmem:[%s268 + $0x210] sm:$0xff] %v3780
        %4033 = vst [vmem:[%s268 + $0x218] sm:$0xff] %v3781
        %4034 = vst [vmem:[%s268 + $0x220] sm:$0xff] %v3782
        %4035 = vst [vmem:[%s268 + $0x228] sm:$0xff] %v3783
        %4036 = vst [vmem:[%s268 + $0x230] sm:$0xff] %v3784
        %4037 = vst [vmem:[%s268 + $0x238] sm:$0xff] %v3785
        %4038 = vst [vmem:[%s268 + $0x240] sm:$0xff] %v3786
        %4039 = vst [vmem:[%s268 + $0x248] sm:$0xff] %v3787
        %4040 = vst [vmem:[%s268 + $0x250] sm:$0xff] %v3788
        %4041 = vst [vmem:[%s268 + $0x258] sm:$0xff] %v3789
        %4042 = vst [vmem:[%s268 + $0x260] sm:$0xff] %v3790
        %4043 = vst [vmem:[%s268 + $0x268] sm:$0xff] %v3791
        %4044 = vst [vmem:[%s268 + $0x270] sm:$0xff] %v3792
        %4045 = vst [vmem:[%s268 + $0x278] sm:$0xff] %v3793
        %4046 = vst [vmem:[%s268 + $0x280] sm:$0xff] %v3794
        %4047 = vst [vmem:[%s268 + $0x288] sm:$0xff] %v3795
        %4048 = vst [vmem:[%s268 + $0x290] sm:$0xff] %v3796
        %4049 = vst [vmem:[%s268 + $0x298] sm:$0xff] %v3797
        %4050 = vst [vmem:[%s268 + $0x2a0] sm:$0xff] %v3798
        %4051 = vst [vmem:[%s268 + $0x2a8] sm:$0xff] %v3799
        %4052 = vst [vmem:[%s268 + $0x2b0] sm:$0xff] %v3800
        %4053 = vst [vmem:[%s268 + $0x2b8] sm:$0xff] %v3801
        %4054 = vst [vmem:[%s268 + $0x2c0] sm:$0xff] %v3802
        %4055 = vst [vmem:[%s268 + $0x2c8] sm:$0xff] %v3803
        %4056 = vst [vmem:[%s268 + $0x2d0] sm:$0xff] %v3804
        %4057 = vst [vmem:[%s268 + $0x2d8] sm:$0xff] %v3805
        %4058 = vst [vmem:[%s268 + $0x2e0] sm:$0xff] %v3806
        %4059 = vst [vmem:[%s268 + $0x2e8] sm:$0xff] %v3807
        %4060 = vst [vmem:[%s268 + $0x2f0] sm:$0xff] %v3808
        %4061 = vst [vmem:[%s268 + $0x2f8] sm:$0xff] %v3809
        %4062 = vst [vmem:[%s268 + $0x300] sm:$0xff] %v3810
        %4063 = vst [vmem:[%s268 + $0x308] sm:$0xff] %v3811
        %4064 = vst [vmem:[%s268 + $0x310] sm:$0xff] %v3812
        %4065 = vst [vmem:[%s268 + $0x318] sm:$0xff] %v3813
        %4066 = vst [vmem:[%s268 + $0x320] sm:$0xff] %v3814
        %4067 = vst [vmem:[%s268 + $0x328] sm:$0xff] %v3815
        %4068 = vst [vmem:[%s268 + $0x330] sm:$0xff] %v3816
        %4069 = vst [vmem:[%s268 + $0x338] sm:$0xff] %v3817
        %4070 = vst [vmem:[%s268 + $0x340] sm:$0xff] %v3818
        %4071 = vst [vmem:[%s268 + $0x348] sm:$0xff] %v3819
        %4072 = vst [vmem:[%s268 + $0x350] sm:$0xff] %v3820
        %4073 = vst [vmem:[%s268 + $0x358] sm:$0xff] %v3821
        %4074 = vst [vmem:[%s268 + $0x360] sm:$0xff] %v3822
        %4075 = vst [vmem:[%s268 + $0x368] sm:$0xff] %v3823
        %4076 = vst [vmem:[%s268 + $0x370] sm:$0xff] %v3824
        %4077 = vst [vmem:[%s268 + $0x378] sm:$0xff] %v3825
        %4078 = vst [vmem:[%s268 + $0x380] sm:$0xff] %v3826
        %4079 = vst [vmem:[%s268 + $0x388] sm:$0xff] %v3827
        %4080 = vst [vmem:[%s268 + $0x390] sm:$0xff] %v3828
        %4081 = vst [vmem:[%s268 + $0x398] sm:$0xff] %v3829
        %4082 = vst [vmem:[%s268 + $0x3a0] sm:$0xff] %v3830
        %4083 = vst [vmem:[%s268 + $0x3a8] sm:$0xff] %v3831
        %4084 = vst [vmem:[%s268 + $0x3b0] sm:$0xff] %v3832
        %4085 = vst [vmem:[%s268 + $0x3b8] sm:$0xff] %v3833
        %4086 = vst [vmem:[%s268 + $0x3c0] sm:$0xff] %v3834
        %4087 = vst [vmem:[%s268 + $0x3c8] sm:$0xff] %v3835
        %4088 = vst [vmem:[%s268 + $0x3d0] sm:$0xff] %v3836
        %4089 = vst [vmem:[%s268 + $0x3d8] sm:$0xff] %v3837
        %4090 = vst [vmem:[%s268 + $0x3e0] sm:$0xff] %v3838
        %4091 = vst [vmem:[%s268 + $0x3e8] sm:$0xff] %v3839
        %4092 = vst [vmem:[%s268 + $0x3f0] sm:$0xff] %v3840
        %4093 = vst [vmem:[%s268 + $0x3f8] sm:$0xff] %v3841
        %4094 = vst [vmem:[%s268 + $0x400] sm:$0xff] %v3842
        %4095 = vst [vmem:[%s268 + $0x408] sm:$0xff] %v3843
        %4096 = vst [vmem:[%s268 + $0x410] sm:$0xff] %v3844
        %4097 = vst [vmem:[%s268 + $0x418] sm:$0xff] %v3845
        %4098 = vst [vmem:[%s268 + $0x420] sm:$0xff] %v3846
        %4099 = vst [vmem:[%s268 + $0x428] sm:$0xff] %v3847
        %4100 = vst [vmem:[%s268 + $0x430] sm:$0xff] %v3848
        %4101 = vst [vmem:[%s268 + $0x438] sm:$0xff] %v3849
        %4102 = vst [vmem:[%s268 + $0x440] sm:$0xff] %v3850
        %4103 = vst [vmem:[%s268 + $0x448] sm:$0xff] %v3851
        %4104 = vst [vmem:[%s268 + $0x450] sm:$0xff] %v3852
        %4105 = vst [vmem:[%s268 + $0x458] sm:$0xff] %v3853
        %4106 = vst [vmem:[%s268 + $0x460] sm:$0xff] %v3854
        %4107 = vst [vmem:[%s268 + $0x468] sm:$0xff] %v3855
        %4108 = vst [vmem:[%s268 + $0x470] sm:$0xff] %v3856
        %4109 = vst [vmem:[%s268 + $0x478] sm:$0xff] %v3857
        %4110 = vst [vmem:[%s268 + $0x480] sm:$0xff] %v3858
        %4111 = vst [vmem:[%s268 + $0x488] sm:$0xff] %v3859
        %4112 = vst [vmem:[%s268 + $0x490] sm:$0xff] %v3860
        %4113 = vst [vmem:[%s268 + $0x498] sm:$0xff] %v3861
        %4114 = vst [vmem:[%s268 + $0x4a0] sm:$0xff] %v3862
        %4115 = vst [vmem:[%s268 + $0x4a8] sm:$0xff] %v3863
        %4116 = vst [vmem:[%s268 + $0x4b0] sm:$0xff] %v3864
        %4117 = vst [vmem:[%s268 + $0x4b8] sm:$0xff] %v3865
        %4118 = vst [vmem:[%s268 + $0x4c0] sm:$0xff] %v3866
        %4119 = vst [vmem:[%s268 + $0x4c8] sm:$0xff] %v3867
        %4120 = vst [vmem:[%s268 + $0x4d0] sm:$0xff] %v3868
        %4121 = vst [vmem:[%s268 + $0x4d8] sm:$0xff] %v3869
        %4122 = vst [vmem:[%s268 + $0x4e0] sm:$0xff] %v3870
        %4123 = vst [vmem:[%s268 + $0x4e8] sm:$0xff] %v3871
        %4124 = vst [vmem:[%s268 + $0x4f0] sm:$0xff] %v3872
        %4125 = vst [vmem:[%s268 + $0x4f8] sm:$0xff] %v3873
        %4126 = vst [vmem:[%s268 + $0x500] sm:$0xff] %v3874
        %4127 = vst [vmem:[%s268 + $0x508] sm:$0xff] %v3875
        %4128 = vst [vmem:[%s268 + $0x510] sm:$0xff] %v3876
        %4129 = vst [vmem:[%s268 + $0x518] sm:$0xff] %v3877
        %4130 = vst [vmem:[%s268 + $0x520] sm:$0xff] %v3878
        %4131 = vst [vmem:[%s268 + $0x528] sm:$0xff] %v3879
        %4132 = vst [vmem:[%s268 + $0x530] sm:$0xff] %v3880
        %4133 = vst [vmem:[%s268 + $0x538] sm:$0xff] %v3881
        %4134 = vst [vmem:[%s268 + $0x540] sm:$0xff] %v3882
        %4135 = vst [vmem:[%s268 + $0x548] sm:$0xff] %v3883
        %4136 = vst [vmem:[%s268 + $0x550] sm:$0xff] %v3884
        %4137 = vst [vmem:[%s268 + $0x558] sm:$0xff] %v3885
        %4138 = vst [vmem:[%s268 + $0x560] sm:$0xff] %v3886
        %4139 = vst [vmem:[%s268 + $0x568] sm:$0xff] %v3887
        %4140 = vst [vmem:[%s268 + $0x570] sm:$0xff] %v3888
        %4141 = vst [vmem:[%s268 + $0x578] sm:$0xff] %v3889
        %4142 = vst [vmem:[%s268 + $0x580] sm:$0xff] %v3890
        %4143 = vst [vmem:[%s268 + $0x588] sm:$0xff] %v3891
        %4144 = vst [vmem:[%s268 + $0x590] sm:$0xff] %v3892
        %4145 = vst [vmem:[%s268 + $0x598] sm:$0xff] %v3893
        %4146 = vst [vmem:[%s268 + $0x5a0] sm:$0xff] %v3894
        %4147 = vst [vmem:[%s268 + $0x5a8] sm:$0xff] %v3895
        %4148 = vst [vmem:[%s268 + $0x5b0] sm:$0xff] %v3896
        %4149 = vst [vmem:[%s268 + $0x5b8] sm:$0xff] %v3897
        %4150 = vst [vmem:[%s268 + $0x5c0] sm:$0xff] %v3898
        %4151 = vst [vmem:[%s268 + $0x5c8] sm:$0xff] %v3899
        %4152 = vst [vmem:[%s268 + $0x5d0] sm:$0xff] %v3900
        %4153 = vst [vmem:[%s268 + $0x5d8] sm:$0xff] %v3901
        %4154 = vst [vmem:[%s268 + $0x5e0] sm:$0xff] %v3902
        %4155 = vst [vmem:[%s268 + $0x5e8] sm:$0xff] %v3903
        %4156 = vst [vmem:[%s268 + $0x5f0] sm:$0xff] %v3904
        %4157 = vst [vmem:[%s268 + $0x5f8] sm:$0xff] %v3905
        %4158 = vst [vmem:[%s268 + $0x600] sm:$0xff] %v3906
        %4159 = vst [vmem:[%s268 + $0x608] sm:$0xff] %v3907
        %4160 = vst [vmem:[%s268 + $0x610] sm:$0xff] %v3908
        %4161 = vst [vmem:[%s268 + $0x618] sm:$0xff] %v3909
        %4162 = vst [vmem:[%s268 + $0x620] sm:$0xff] %v3910
        %4163 = vst [vmem:[%s268 + $0x628] sm:$0xff] %v3911
        %4164 = vst [vmem:[%s268 + $0x630] sm:$0xff] %v3912
        %4165 = vst [vmem:[%s268 + $0x638] sm:$0xff] %v3913
        %4166 = vst [vmem:[%s268 + $0x640] sm:$0xff] %v3914
        %4167 = vst [vmem:[%s268 + $0x648] sm:$0xff] %v3915
        %4168 = vst [vmem:[%s268 + $0x650] sm:$0xff] %v3916
        %4169 = vst [vmem:[%s268 + $0x658] sm:$0xff] %v3917
        %4170 = vst [vmem:[%s268 + $0x660] sm:$0xff] %v3918
        %4171 = vst [vmem:[%s268 + $0x668] sm:$0xff] %v3919
        %4172 = vst [vmem:[%s268 + $0x670] sm:$0xff] %v3920
        %4173 = vst [vmem:[%s268 + $0x678] sm:$0xff] %v3921
        %4174 = vst [vmem:[%s268 + $0x680] sm:$0xff] %v3922
        %4175 = vst [vmem:[%s268 + $0x688] sm:$0xff] %v3923
        %4176 = vst [vmem:[%s268 + $0x690] sm:$0xff] %v3924
        %4177 = vst [vmem:[%s268 + $0x698] sm:$0xff] %v3925
        %4178 = vst [vmem:[%s268 + $0x6a0] sm:$0xff] %v3926
        %4179 = vst [vmem:[%s268 + $0x6a8] sm:$0xff] %v3927
        %4180 = vst [vmem:[%s268 + $0x6b0] sm:$0xff] %v3928
        %4181 = vst [vmem:[%s268 + $0x6b8] sm:$0xff] %v3929
        %4182 = vst [vmem:[%s268 + $0x6c0] sm:$0xff] %v3930
        %4183 = vst [vmem:[%s268 + $0x6c8] sm:$0xff] %v3931
        %4184 = vst [vmem:[%s268 + $0x6d0] sm:$0xff] %v3932
        %4185 = vst [vmem:[%s268 + $0x6d8] sm:$0xff] %v3933
        %4186 = vst [vmem:[%s268 + $0x6e0] sm:$0xff] %v3934
        %4187 = vst [vmem:[%s268 + $0x6e8] sm:$0xff] %v3935
        %4188 = vst [vmem:[%s268 + $0x6f0] sm:$0xff] %v3936
        %4189 = vst [vmem:[%s268 + $0x6f8] sm:$0xff] %v3937
        %4190 = vst [vmem:[%s268 + $0x700] sm:$0xff] %v3938
        %4191 = vst [vmem:[%s268 + $0x708] sm:$0xff] %v3939
        %4192 = vst [vmem:[%s268 + $0x710] sm:$0xff] %v3940
        %4193 = vst [vmem:[%s268 + $0x718] sm:$0xff] %v3941
        %4194 = vst [vmem:[%s268 + $0x720] sm:$0xff] %v3942
        %4195 = vst [vmem:[%s268 + $0x728] sm:$0xff] %v3943
        %4196 = vst [vmem:[%s268 + $0x730] sm:$0xff] %v3944
        %4197 = vst [vmem:[%s268 + $0x738] sm:$0xff] %v3945
        %4198 = vst [vmem:[%s268 + $0x740] sm:$0xff] %v3946
        %4199 = vst [vmem:[%s268 + $0x748] sm:$0xff] %v3947
        %4200 = vst [vmem:[%s268 + $0x750] sm:$0xff] %v3948
        %4201 = vst [vmem:[%s268 + $0x758] sm:$0xff] %v3949
        %4202 = vst [vmem:[%s268 + $0x760] sm:$0xff] %v3950
        %4203 = vst [vmem:[%s268 + $0x768] sm:$0xff] %v3951
        %4204 = vst [vmem:[%s268 + $0x770] sm:$0xff] %v3952
        %4205 = vst [vmem:[%s268 + $0x778] sm:$0xff] %v3953
        %4206 = vst [vmem:[%s268 + $0x780] sm:$0xff] %v3954
        %4207 = vst [vmem:[%s268 + $0x788] sm:$0xff] %v3955
        %4208 = vst [vmem:[%s268 + $0x790] sm:$0xff] %v3956
        %4209 = vst [vmem:[%s268 + $0x798] sm:$0xff] %v3957
        %4210 = vst [vmem:[%s268 + $0x7a0] sm:$0xff] %v3958
        %4211 = vst [vmem:[%s268 + $0x7a8] sm:$0xff] %v3959
        %4212 = vst [vmem:[%s268 + $0x7b0] sm:$0xff] %v3960
        %4213 = vst [vmem:[%s268 + $0x7b8] sm:$0xff] %v3961
        %4214 = vst [vmem:[%s268 + $0x7c0] sm:$0xff] %v3962
        %4215 = vst [vmem:[%s268 + $0x7c8] sm:$0xff] %v3963
        %4216 = vst [vmem:[%s268 + $0x7d0] sm:$0xff] %v3964
        %4217 = vst [vmem:[%s268 + $0x7d8] sm:$0xff] %v3965
        %s4218 = sand.u32 %s139, 1
        %s4219 = scalar_lea.sflag [#allocation4], %s4218
        %s4220 = sand.u32 %s139, 1
        %s4221 = smul.addr %s4220, 2016
        %s4222 = scalar_lea.vmem [#allocation9], %s4221
        // Predicated region
        $region49: #{tpu_custom_call.1} parent=35 // pred_check
          %p4223 = pneg %p149
        $region50: #{tpu_custom_call.1} parent=35 // pred_check_branch
          %4225 = sbr.rel (%p4223) target = $region52
        $region51: #{tpu_custom_call.1} parent=35 // pred_region
          %s4226 = smul.u32 63, %s27
          %s4227 = smul.u32 4, %s28
          %s4229 = ssub.s32 32256, 32256
          %4230 = vsyncadd %s4219, %s4229
          %s4231 = smul.addr %s4226, 8
          %s4232 = sadd.s32 %s4227, %s4231
          %s4233 = smul.addr %s4232, 128
          %s4234 = scalar_lea.hbm %s4, %s4233
          %s4235 = sshll.u32 %s4222, 4
          %s4236 = int_to_ptr.vmem [resolvable:$true] %s4235
          %4241 = dma.vmem_to_hbm [thread:$0]  %s4236, 32256, %s4234, %s4219, 512, 1024, 32
        $region52: #{tpu_custom_call.1} parent=35 // pred_fallthru
          _
      $region36: #{tpu_custom_call.1} parent=5 // pred_fallthru
        _
      %p4242 = scmp.le.s32.totalorder 2, %s18
      // Predicated region
      $region53: #{tpu_custom_call.1} parent=5 // pred_check
        %p4243 = pneg %p4242
      $region54: #{tpu_custom_call.1} parent=5 // pred_check_branch
        %4245 = sbr.rel (%p4243) target = $region56
      $region55: #{tpu_custom_call.1} parent=5 // pred_region
        %s4246 = ssub.s32 %s18, 2
        // Predicated region
        $region57: #{tpu_custom_call.1} parent=55 // pred_check
          %p4247 = pneg %p155
        $region58: #{tpu_custom_call.1} parent=55 // pred_check_branch
          %4249 = sbr.rel (%p4247) target = $region60
        $region59: #{tpu_custom_call.1} parent=55 // pred_region
          %s4250 = sand.u32 %s140, 1
          %s4251 = scalar_lea.sflag [#allocation4], %s4250
          %s4252 = sand.u32 %s140, 1
          %s4253 = smul.addr %s4252, 2016
          %s4254 = scalar_lea.vmem [#allocation9], %s4253
          %4255 = dma.done %s4251, 32256
        $region60: #{tpu_custom_call.1} parent=55 // pred_fallthru
          _
      $region56: #{tpu_custom_call.1} parent=5 // pred_fallthru
        _
    $region6: #{tpu_custom_call.1} parent=1 // loop_footer
      %s22 = sadd.s32 1, %s18
    $region7: #{tpu_custom_call.1} parent=1 // loop_footer_branch
      %17 = sbr.rel target = $region3
    $region8: #{tpu_custom_call.1} parent=1 // loop_exit
      _
    %4256 = vsyncpa [#allocation3], 1
    %s4257 = scalar_lea.sflag [#allocation3], 1
    %4258 = vsyncpa %s4257, 1
    %4259 = vsyncpa [#allocation4], 1
    %s4260 = scalar_lea.sflag [#allocation4], 1
    %4261 = vsyncpa %s4260, 1
    %4262 = vsyncpa [#allocation5], 1
    %s4263 = scalar_lea.sflag [#allocation5], 1
    %4264 = vsyncpa %s4263, 1
    %4265 = vsyncpa [#allocation7], 1

</llo_original>
